<compile_context>
chip_gen: v7x
topology: tpu7x:2x2x1
jax: 0.10.0
libtpu: 0.0.40
codegen_flags: <defaults>
</compile_context>

<pallas_src>
import math
import functools

import jax
import jax.numpy as jnp
from jax.experimental import pallas as pl
from jax.experimental.pallas import tpu as pltpu

_NEG_BIG = -1e30  # finite "-inf": masked keys get exp(.)=0, no NaN on all-masked rows


def _mha_kernel(q_ref, kp_ref, vp_ref, mask_ref, wq_ref, bq_ref, wo_ref, bo_ref,
                out_ref, qp_sc, acc_sc, m_sc, l_sc, ctx_sc, *, num_heads):
    H = num_heads
    E = qp_sc.shape[1]
    D = E // H
    scale = 1.0 / math.sqrt(D)
    kv = pl.program_id(2)

    # --- per-(batch, q-tile) init: project Q once, reset online-softmax state.
    @pl.when(kv == 0)
    def _():
        qp = jnp.dot(q_ref[0], wq_ref[...],
                     preferred_element_type=jnp.float32) + bq_ref[...]
        qp_sc[...] = (qp * scale).astype(jnp.bfloat16)      # fold 1/sqrt(D) once
        m_sc[...] = jnp.full_like(m_sc, _NEG_BIG)
        l_sc[...] = jnp.zeros_like(l_sc)
        acc_sc[...] = jnp.zeros_like(acc_sc)

    k = kp_ref[0]                       # (TK, E) bf16, pre-projected in wrapper
    v = vp_ref[0]                       # (TK, E) bf16, pre-projected in wrapper
    TQ = qp_sc.shape[0]
    TK = k.shape[0]
    # Hoisted: JAX does not CSE broadcast_in_dim, so broadcast the mask to
    # (TQ, TK) once instead of once per head.
    mask_b = jnp.broadcast_to(mask_ref[0], (TQ, TK))        # f32, 0.0 / -1e30

    # Per-head attention with online softmax.  H is small & static.
    # TODO(synk): for H >= 8 switch to lax.fori_loop(..., unroll=2) with
    # pl.ds(h*D, D) slices to bound vreg live ranges, and pair heads so ctx
    # stores are full-128-lane when head_dim < 128.
    for h in range(H):
        lo, hi = h * D, (h + 1) * D
        qh = qp_sc[:, lo:hi]            # (TQ, D) bf16, already scaled
        kh = k[:, lo:hi]                # (TK, D) bf16
        vh = v[:, lo:hi]                # (TK, D) bf16

        # scores = qh @ kh^T (contract both last dims; no in-kernel transpose).
        s = jax.lax.dot_general(qh, kh, (((1,), (1,)), ((), ())),
                                preferred_element_type=jnp.float32)   # (TQ, TK)
        s = s + mask_b

        m_prev = m_sc[:, h:h + 1]
        m_new = jnp.maximum(m_prev, jnp.max(s, axis=-1, keepdims=True))
        alpha = jnp.exp(m_prev - m_new)
        p = jnp.exp(s - m_new)
        l_sc[:, h:h + 1] = alpha * l_sc[:, h:h + 1] + jnp.sum(p, axis=-1, keepdims=True)
        acc_sc[:, lo:hi] = alpha * acc_sc[:, lo:hi] + jnp.dot(
            p.astype(jnp.bfloat16), vh, preferred_element_type=jnp.float32)
        m_sc[:, h:h + 1] = m_new

    # --- finalize: per-head normalize into a bf16 ctx scratch, fused out-proj.
    @pl.when(kv == pl.num_programs(2) - 1)
    def _():
        for h in range(H):
            lo, hi = h * D, (h + 1) * D
            inv = pl.reciprocal(l_sc[:, h:h + 1], approx=True)
            ctx_sc[:, lo:hi] = (acc_sc[:, lo:hi] * inv).astype(jnp.bfloat16)
        out = jnp.dot(ctx_sc[...], wo_ref[...],
                      preferred_element_type=jnp.float32) + bo_ref[...]
        out_ref[0] = out.astype(out_ref.dtype)


def _round_up(x, m):
    return -(-x // m) * m


def _vmem_cap_bytes():
    try:
        return int(pltpu.get_tpu_info().vmem_capacity_bytes)
    except Exception:
        return 64 * 1024 * 1024          # conservative (v7x-sized) fallback


@functools.partial(
    jax.jit,
    static_argnames=("num_heads", "block_q", "block_kv", "single_buffer_weights",
                     "out_dtype", "vmem_limit"))
def _cross_attention_impl(query, key, value, add_mask, in_w, in_b, out_w, out_b, *,
                          num_heads, block_q, block_kv, single_buffer_weights,
                          out_dtype, vmem_limit):
    B, Lq, E = query.shape
    Lk = key.shape[1]
    H = num_heads

    # Split packed in-proj, pre-transpose, bf16 matmul operands, f32 biases.
    wq_t = in_w[:E].T.astype(jnp.bfloat16)
    wk_t = in_w[E:2 * E].T.astype(jnp.bfloat16)
    wv_t = in_w[2 * E:].T.astype(jnp.bfloat16)
    wo_t = out_w.T.astype(jnp.bfloat16)
    bq = in_b[:E].reshape(1, E).astype(jnp.float32)
    bk = in_b[E:2 * E].reshape(1, E).astype(jnp.float32)
    bv = in_b[2 * E:].reshape(1, E).astype(jnp.float32)
    bo = out_b.reshape(1, E).astype(jnp.float32)

    # K/V projections ONCE, as single XLA matmuls (no per-q-tile recompute).
    k2 = key.astype(jnp.bfloat16).reshape(B * Lk, E)
    v2 = value.astype(jnp.bfloat16).reshape(B * Lk, E)
    kp_b = (jnp.dot(k2, wk_t, preferred_element_type=jnp.float32) + bk
            ).astype(jnp.bfloat16).reshape(B, Lk, E)
    vp_b = (jnp.dot(v2, wv_t, preferred_element_type=jnp.float32) + bv
            ).astype(jnp.bfloat16).reshape(B, Lk, E)
    q_b = query.astype(jnp.bfloat16)

    # Pad Lq / Lk up to tile multiples; padded keys are masked with -1e30,
    # padded query rows are sliced off the output.
    n_q = -(-Lq // block_q)
    n_kv = -(-Lk // block_kv)
    lq_pad, lk_pad = n_q * block_q, n_kv * block_kv
    if lq_pad != Lq:
        q_b = jnp.pad(q_b, ((0, 0), (0, lq_pad - Lq), (0, 0)))
    if lk_pad != Lk:
        kp_b = jnp.pad(kp_b, ((0, 0), (0, lk_pad - Lk), (0, 0)))
        vp_b = jnp.pad(vp_b, ((0, 0), (0, lk_pad - Lk), (0, 0)))
        add_mask = jnp.pad(add_mask, ((0, 0), (0, 0), (0, lk_pad - Lk)),
                           constant_values=_NEG_BIG)

    grid = (B, n_q, n_kv)
    q_map = lambda b, qi, ki: (b, qi, 0)
    kv_map = lambda b, qi, ki: (b, ki, 0)
    mask_map = lambda b, qi, ki: (b, 0, ki)
    const_map = lambda b, qi, ki: (0, 0)

    # Resident weights: single VMEM buffer (their block index never changes).
    w_kw = {"pipeline_mode": pl.Buffered(1)} if single_buffer_weights else {}

    kernel = functools.partial(_mha_kernel, num_heads=H)

    out = pl.pallas_call(
        kernel,
        out_shape=jax.ShapeDtypeStruct((B, lq_pad, E), out_dtype),
        grid_spec=pltpu.PrefetchScalarGridSpec(
            num_scalar_prefetch=0,
            grid=grid,
            in_specs=[
                pl.BlockSpec((1, block_q, E), q_map),        # query (bf16)
                pl.BlockSpec((1, block_kv, E), kv_map),      # projected K (bf16)
                pl.BlockSpec((1, block_kv, E), kv_map),      # projected V (bf16)
                pl.BlockSpec((1, 1, block_kv), mask_map),    # additive mask (f32)
                pl.BlockSpec((E, E), const_map, **w_kw),     # Wq^T (resident)
                pl.BlockSpec((1, E), const_map, **w_kw),     # bq
                pl.BlockSpec((E, E), const_map, **w_kw),     # Wo^T (resident)
                pl.BlockSpec((1, E), const_map, **w_kw),     # bo
            ],
            out_specs=pl.BlockSpec((1, block_q, E), q_map),
            scratch_shapes=[
                pltpu.VMEM((block_q, E), jnp.bfloat16),      # scaled Q-proj cache
                pltpu.VMEM((block_q, E), jnp.float32),       # online-softmax acc
                pltpu.VMEM((block_q, H), jnp.float32),       # running max per head
                pltpu.VMEM((block_q, H), jnp.float32),       # running sum per head
                pltpu.VMEM((block_q, E), jnp.bfloat16),      # normalized ctx (bf16)
            ]),
        compiler_params=pltpu.CompilerParams(
            dimension_semantics=("parallel", "parallel", "arbitrary"),
            vmem_limit_bytes=vmem_limit),
    )(q_b, kp_b, vp_b, add_mask, wq_t, bq, wo_t, bo)

    if lq_pad != Lq:
        out = out[:, :Lq, :]
    return out


def cross_attention(query, key, value, spatial_mask, params, *, num_heads,
                    block_q=None, block_kv=None, out_dtype=jnp.float32):
    """nn.MultiheadAttention(E, H, batch_first=True)(q, k, v,
    key_padding_mask=~spatial_mask) forward pass as a Pallas TPU kernel."""
    B, Lq, E = query.shape
    Lk = key.shape[1]
    assert E % num_heads == 0, "embed_dim must be divisible by num_heads"

    if spatial_mask is not None:
        assert spatial_mask.shape == (B, Lk), (
            f"Mask shape {spatial_mask.shape} doesn't match key shape {key.shape}")
        add_mask = jnp.where(spatial_mask[:, None, :].astype(bool),
                             0.0, _NEG_BIG).astype(jnp.float32)       # (B, 1, Lk)
    else:
        add_mask = jnp.zeros((B, 1, Lk), jnp.float32)

    vmem_cap = _vmem_cap_bytes()
    big_vmem = vmem_cap >= 100 * 1024 * 1024     # 128 MiB v5e/v6e vs 64 MiB v7x

    if block_q is None:
        target_q = 512 if big_vmem else 256
        block_q = min(target_q, _round_up(Lq, 8))
    if block_kv is None:
        block_kv = Lk if Lk <= 1024 else 512      # flash KV tiling for long Lk
    if Lk > block_kv:
        assert block_kv % 128 == 0, "block_kv must be a multiple of 128 when tiling Lk"
    if Lq > block_q:
        assert block_q % 8 == 0, "block_q must be a multiple of 8 when tiling Lq"

    # Rough per-step VMEM footprint -> scoped-VMEM limit, capped at ~85% of
    # physical (respects v7x's 64 MiB while raising v5e/v6e scoped defaults).
    est = (2 * block_q * E * 2                    # q block (bf16, double-buffered)
           + 2 * 2 * block_kv * E * 2             # K/V blocks (bf16, double-buffered)
           + 2 * block_kv * 4                     # mask block
           + 2 * 2 * 2 * E * E                    # Wq/Wo (conservative: 2 buffers)
           + 2 * block_q * E * 4                  # output block (f32)
           + block_q * E * (2 + 4 + 2)            # qp/acc/ctx scratch
           + 4 * block_q * block_kv * 4)          # live (TQ, TK) intermediates
    vmem_limit = int(min(int(0.85 * vmem_cap), max(32 * 1024 * 1024, 2 * est)))

    kwargs = dict(num_heads=num_heads, block_q=int(block_q), block_kv=int(block_kv),
                  out_dtype=out_dtype, vmem_limit=vmem_limit)
    args = (query, key, value, add_mask,
            params["in_proj_weight"], params["in_proj_bias"],
            params["out_proj_weight"], params["out_proj_bias"])
    try:
        return _cross_attention_impl(*args, single_buffer_weights=True, **kwargs)
    except Exception:
        # pipeline_mode=pl.Buffered(1) not supported by this JAX/Mosaic build;
        # fall back to default (double-buffered) resident weights.
        return _cross_attention_impl(*args, single_buffer_weights=False, **kwargs)


def mha_reference(query, key, value, spatial_mask, params, num_heads):
    """Pure-JAX (f32) reference matching torch.nn.MultiheadAttention semantics."""
    B, Lq, E = query.shape
    H, D = num_heads, E // num_heads
    in_w, in_b = params["in_proj_weight"], params["in_proj_bias"]
    wq, wk, wv = in_w[:E], in_w[E:2 * E], in_w[2 * E:]
    bq, bk, bv = in_b[:E], in_b[E:2 * E], in_b[2 * E:]
    qp = query @ wq.T + bq
    kp = key @ wk.T + bk
    vp = value @ wv.T + bv
    qh = qp.reshape(B, Lq, H, D).transpose(0, 2, 1, 3)
    kh = kp.reshape(B, -1, H, D).transpose(0, 2, 1, 3)
    vh = vp.reshape(B, -1, H, D).transpose(0, 2, 1, 3)
    s = jnp.einsum('bhqd,bhkd->bhqk', qh, kh) / math.sqrt(D)
    if spatial_mask is not None:
        s = s + jnp.where(spatial_mask, 0.0, -jnp.inf)[:, None, None, :]
    attn = jax.nn.softmax(s, axis=-1)
    ctx = jnp.einsum('bhqk,bhkd->bhqd', attn, vh)
    ctx = ctx.transpose(0, 2, 1, 3).reshape(B, Lq, E)
    return ctx @ params["out_proj_weight"].T + params["out_proj_bias"]


if __name__ == "__main__":
    B, Lq, Lk, E, H = 2, 8, 16, 32, 4

    key0 = jax.random.PRNGKey(0)
    k1, k2, k3, k4, k5, k6, k7 = jax.random.split(key0, 7)

    query = jax.random.normal(k1, (B, Lq, E), dtype=jnp.float32)
    key_t = jax.random.normal(k2, (B, Lk, E), dtype=jnp.float32)
    value = jax.random.normal(k3, (B, Lk, E), dtype=jnp.float32)

    # spatial_mask: True = valid key position (last few keys of batch 1 masked).
    lens = jnp.array([Lk, Lk - 5], dtype=jnp.int32)
    spatial_mask = jnp.arange(Lk)[None, :] < lens[:, None]          # (B, Lk) bool

    # Deterministic synthetic parameters (same shapes as nn.MultiheadAttention).
    params = {
        "in_proj_weight": 0.1 * jax.random.normal(k4, (3 * E, E), dtype=jnp.float32),
        "in_proj_bias": 0.1 * jax.random.normal(k5, (3 * E,), dtype=jnp.float32),
        "out_proj_weight": 0.1 * jax.random.normal(k6, (E, E), dtype=jnp.float32),
        "out_proj_bias": 0.1 * jax.random.normal(k7, (E,), dtype=jnp.float32),
    }

    out = cross_attention(query, key_t, value, spatial_mask, params, num_heads=H)
    out = jax.block_until_ready(out)

    ref = mha_reference(query, key_t, value, spatial_mask, params, H)
    # Kernel runs matmuls in bf16 (f32 accumulation), so allow bf16-level error.
    max_err = float(jnp.max(jnp.abs(out - ref)))
    assert max_err < 3e-2, f"mismatch vs reference: max abs err = {max_err}"

    print("KERNEL_OK")
</pallas_src>

<mosaic_0001>
module attributes {stable_mosaic.version = 11 : i64} {
  func.func @_mha_kernel(%arg0: i32, %arg1: i32, %arg2: i32, %arg3: memref<1x8x32xbf16, #tpu.memory_space<vmem>>, %arg4: memref<1x16x32xbf16, #tpu.memory_space<vmem>>, %arg5: memref<1x16x32xbf16, #tpu.memory_space<vmem>>, %arg6: memref<1x1x16xf32, #tpu.memory_space<vmem>>, %arg7: memref<32x32xbf16, #tpu.memory_space<vmem>>, %arg8: memref<1x32xf32, #tpu.memory_space<vmem>>, %arg9: memref<32x32xbf16, #tpu.memory_space<vmem>>, %arg10: memref<1x32xf32, #tpu.memory_space<vmem>>, %arg11: memref<1x8x32xf32, #tpu.memory_space<vmem>>, %arg12: memref<8x32xbf16, #tpu.memory_space<vmem>>, %arg13: memref<8x32xf32, #tpu.memory_space<vmem>>, %arg14: memref<8x4xf32, #tpu.memory_space<vmem>>, %arg15: memref<8x4xf32, #tpu.memory_space<vmem>>, %arg16: memref<8x32xbf16, #tpu.memory_space<vmem>>) attributes {dimension_semantics = [#tpu.dimension_semantics<parallel>, #tpu.dimension_semantics<parallel>, #tpu.dimension_semantics<arbitrary>], iteration_bounds = array<i64: 2, 1, 1>, scalar_prefetch = 0 : i64, scratch_operands = 5 : i64, tpu.core_type = #tpu.core_type<tc>, window_params = [{transform_indices = @transform_0, window_bounds = array<i64: 1, 8, 32>}, {transform_indices = @transform_1, window_bounds = array<i64: 1, 16, 32>}, {transform_indices = @transform_2, window_bounds = array<i64: 1, 16, 32>}, {transform_indices = @transform_3, window_bounds = array<i64: 1, 1, 16>}, {pipeline_mode = #tpu.pipeline_mode<synchronous>, transform_indices = @transform_4, window_bounds = array<i64: 32, 32>}, {pipeline_mode = #tpu.pipeline_mode<synchronous>, transform_indices = @transform_5, window_bounds = array<i64: 1, 32>}, {pipeline_mode = #tpu.pipeline_mode<synchronous>, transform_indices = @transform_6, window_bounds = array<i64: 32, 32>}, {pipeline_mode = #tpu.pipeline_mode<synchronous>, transform_indices = @transform_7, window_bounds = array<i64: 1, 32>}, {transform_indices = @transform_8, window_bounds = array<i64: 1, 8, 32>}]} {
    %c0_i32 = arith.constant 0 : i32
    %0 = arith.cmpi eq, %arg2, %c0_i32 : i32
    %1 = arith.extui %0 : i1 to i32
    %c0_i32_0 = arith.constant 0 : i32
    %2 = arith.cmpi ne, %1, %c0_i32_0 : i32
    scf.if %2 {
      %c0_76 = arith.constant 0 : index
      %c0_77 = arith.constant 0 : index
      %c0_78 = arith.constant 0 : index
      %126 = vector.load %arg3[%c0_76, %c0_77, %c0_78] : memref<1x8x32xbf16, #tpu.memory_space<vmem>>, vector<1x8x32xbf16>
      %127 = vector.shape_cast %126 : vector<1x8x32xbf16> to vector<8x32xbf16>
      %c0_79 = arith.constant 0 : index
      %c0_80 = arith.constant 0 : index
      %128 = vector.load %arg7[%c0_79, %c0_80] : memref<32x32xbf16, #tpu.memory_space<vmem>>, vector<32x32xbf16>
      %cst_81 = arith.constant dense<0.000000e+00> : vector<8x32xf32>
      %129 = tpu.matmul %127, %128, %cst_81 {dimension_numbers = #tpu.dot_dimension_numbers<[1], [0], [0], [1], [0, 0, 1, 1], [], []>} : vector<8x32xbf16>, vector<32x32xbf16>, vector<8x32xf32> -> vector<8x32xf32>
      %c0_82 = arith.constant 0 : index
      %c0_83 = arith.constant 0 : index
      %130 = vector.load %arg8[%c0_82, %c0_83] : memref<1x32xf32, #tpu.memory_space<vmem>>, vector<1x32xf32>
      %131 = vector.broadcast %130 : vector<1x32xf32> to vector<8x32xf32>
      %132 = arith.addf %129, %131 : vector<8x32xf32>
      %cst_84 = arith.constant 0.353553385 : f32
      %133 = vector.broadcast %cst_84 : f32 to vector<8x32xf32>
      %134 = arith.mulf %132, %133 : vector<8x32xf32>
      %135 = arith.truncf %134 : vector<8x32xf32> to vector<8x32xbf16>
      %c0_85 = arith.constant 0 : index
      %c0_86 = arith.constant 0 : index
      %136 = vector.load %arg12[%c0_85, %c0_86] : memref<8x32xbf16, #tpu.memory_space<vmem>>, vector<8x32xbf16>
      tpu.vector_store %arg12[%c0_85, %c0_86], %135 {strides = array<i32>} : memref<8x32xbf16, #tpu.memory_space<vmem>>, vector<8x32xbf16>,
      %cst_87 = arith.constant -1.000000e+30 : f32
      %137 = vector.broadcast %cst_87 : f32 to vector<8x4xf32>
      %c0_88 = arith.constant 0 : index
      %c0_89 = arith.constant 0 : index
      %138 = vector.load %arg14[%c0_88, %c0_89] : memref<8x4xf32, #tpu.memory_space<vmem>>, vector<8x4xf32>
      tpu.vector_store %arg14[%c0_88, %c0_89], %137 {strides = array<i32>} : memref<8x4xf32, #tpu.memory_space<vmem>>, vector<8x4xf32>,
      %cst_90 = arith.constant 0.000000e+00 : f32
      %139 = vector.broadcast %cst_90 : f32 to vector<8x4xf32>
      %c0_91 = arith.constant 0 : index
      %c0_92 = arith.constant 0 : index
      %140 = vector.load %arg15[%c0_91, %c0_92] : memref<8x4xf32, #tpu.memory_space<vmem>>, vector<8x4xf32>
      tpu.vector_store %arg15[%c0_91, %c0_92], %139 {strides = array<i32>} : memref<8x4xf32, #tpu.memory_space<vmem>>, vector<8x4xf32>,
      %cst_93 = arith.constant 0.000000e+00 : f32
      %141 = vector.broadcast %cst_93 : f32 to vector<8x32xf32>
      %c0_94 = arith.constant 0 : index
      %c0_95 = arith.constant 0 : index
      %142 = vector.load %arg13[%c0_94, %c0_95] : memref<8x32xf32, #tpu.memory_space<vmem>>, vector<8x32xf32>
      tpu.vector_store %arg13[%c0_94, %c0_95], %141 {strides = array<i32>} : memref<8x32xf32, #tpu.memory_space<vmem>>, vector<8x32xf32>,
    } else {
    }
    %c0 = arith.constant 0 : index
    %c0_1 = arith.constant 0 : index
    %c0_2 = arith.constant 0 : index
    %3 = vector.load %arg4[%c0, %c0_1, %c0_2] : memref<1x16x32xbf16, #tpu.memory_space<vmem>>, vector<1x16x32xbf16>
    %4 = vector.shape_cast %3 : vector<1x16x32xbf16> to vector<16x32xbf16>
    %c0_3 = arith.constant 0 : index
    %c0_4 = arith.constant 0 : index
    %c0_5 = arith.constant 0 : index
    %5 = vector.load %arg5[%c0_3, %c0_4, %c0_5] : memref<1x16x32xbf16, #tpu.memory_space<vmem>>, vector<1x16x32xbf16>
    %6 = vector.shape_cast %5 : vector<1x16x32xbf16> to vector<16x32xbf16>
    %c0_6 = arith.constant 0 : index
    %c0_7 = arith.constant 0 : index
    %c0_8 = arith.constant 0 : index
    %7 = vector.load %arg6[%c0_6, %c0_7, %c0_8] : memref<1x1x16xf32, #tpu.memory_space<vmem>>, vector<1x1x16xf32>
    %8 = vector.shape_cast %7 : vector<1x1x16xf32> to vector<1x16xf32>
    %9 = vector.shape_cast %8 : vector<1x16xf32> to vector<1x16xf32>
    %10 = vector.broadcast %9 : vector<1x16xf32> to vector<8x16xf32>
    %c0_9 = arith.constant 0 : index
    %c0_10 = arith.constant 0 : index
    %11 = vector.load %arg12[%c0_9, %c0_10] : memref<8x32xbf16, #tpu.memory_space<vmem>>, vector<8x8xbf16>
    %12 = vector.extract_strided_slice %4 {offsets = [0, 0], sizes = [16, 8], strides = [1, 1]} : vector<16x32xbf16> to vector<16x8xbf16>
    %13 = vector.extract_strided_slice %6 {offsets = [0, 0], sizes = [16, 8], strides = [1, 1]} : vector<16x32xbf16> to vector<16x8xbf16>
    %cst = arith.constant dense<0.000000e+00> : vector<8x16xf32>
    %14 = tpu.matmul %11, %12, %cst {dimension_numbers = #tpu.dot_dimension_numbers<[1], [1], [0], [0], [0, 0, 1, 0], [], []>} : vector<8x8xbf16>, vector<16x8xbf16>, vector<8x16xf32> -> vector<8x16xf32>
    %15 = arith.addf %14, %10 : vector<8x16xf32>
    %c0_11 = arith.constant 0 : index
    %c0_12 = arith.constant 0 : index
    %16 = vector.load %arg14[%c0_11, %c0_12] : memref<8x4xf32, #tpu.memory_space<vmem>>, vector<8x1xf32>
    %cst_13 = arith.constant dense<0xFF800000> : vector<8xf32>
    %17 = vector.multi_reduction <maximumf>, %15, %cst_13 [1] : vector<8x16xf32> to vector<8xf32>
    %18 = vector.shape_cast %17 : vector<8xf32> to vector<8x1xf32>
    %19 = arith.maximumf %16, %18 : vector<8x1xf32>
    %20 = arith.subf %16, %19 : vector<8x1xf32>
    %21 = math.exp %20 : vector<8x1xf32>
    %22 = vector.broadcast %19 : vector<8x1xf32> to vector<8x16xf32>
    %23 = arith.subf %15, %22 : vector<8x16xf32>
    %24 = math.exp %23 : vector<8x16xf32>
    %c0_14 = arith.constant 0 : index
    %c0_15 = arith.constant 0 : index
    %25 = vector.load %arg15[%c0_14, %c0_15] : memref<8x4xf32, #tpu.memory_space<vmem>>, vector<8x1xf32>
    %26 = arith.mulf %21, %25 : vector<8x1xf32>
    %cst_16 = arith.constant dense<0.000000e+00> : vector<8xf32>
    %27 = vector.multi_reduction <add>, %24, %cst_16 [1] : vector<8x16xf32> to vector<8xf32>
    %28 = vector.shape_cast %27 : vector<8xf32> to vector<8x1xf32>
    %29 = arith.addf %26, %28 : vector<8x1xf32>
    %c0_17 = arith.constant 0 : index
    %c0_18 = arith.constant 0 : index
    %30 = vector.load %arg15[%c0_17, %c0_18] : memref<8x4xf32, #tpu.memory_space<vmem>>, vector<8x1xf32>
    tpu.vector_store %arg15[%c0_17, %c0_18], %29 {strides = array<i32>} : memref<8x4xf32, #tpu.memory_space<vmem>>, vector<8x1xf32>,
    %c0_19 = arith.constant 0 : index
    %c0_20 = arith.constant 0 : index
    %31 = vector.load %arg13[%c0_19, %c0_20] : memref<8x32xf32, #tpu.memory_space<vmem>>, vector<8x8xf32>
    %32 = vector.broadcast %21 : vector<8x1xf32> to vector<8x8xf32>
    %33 = arith.mulf %32, %31 : vector<8x8xf32>
    %34 = arith.truncf %24 : vector<8x16xf32> to vector<8x16xbf16>
    %cst_21 = arith.constant dense<0.000000e+00> : vector<8x8xf32>
    %35 = tpu.matmul %34, %13, %cst_21 {dimension_numbers = #tpu.dot_dimension_numbers<[1], [0], [0], [1], [0, 0, 1, 1], [], []>} : vector<8x16xbf16>, vector<16x8xbf16>, vector<8x8xf32> -> vector<8x8xf32>
    %36 = arith.addf %33, %35 : vector<8x8xf32>
    %c0_22 = arith.constant 0 : index
    %c0_23 = arith.constant 0 : index
    %37 = vector.load %arg13[%c0_22, %c0_23] : memref<8x32xf32, #tpu.memory_space<vmem>>, vector<8x8xf32>
    tpu.vector_store %arg13[%c0_22, %c0_23], %36 {strides = array<i32>} : memref<8x32xf32, #tpu.memory_space<vmem>>, vector<8x8xf32>,
    %c0_24 = arith.constant 0 : index
    %c0_25 = arith.constant 0 : index
    %38 = vector.load %arg14[%c0_24, %c0_25] : memref<8x4xf32, #tpu.memory_space<vmem>>, vector<8x1xf32>
    tpu.vector_store %arg14[%c0_24, %c0_25], %19 {strides = array<i32>} : memref<8x4xf32, #tpu.memory_space<vmem>>, vector<8x1xf32>,
    %c0_26 = arith.constant 0 : index
    %c8 = arith.constant 8 : index
    %39 = vector.load %arg12[%c0_26, %c8] : memref<8x32xbf16, #tpu.memory_space<vmem>>, vector<8x8xbf16>
    %40 = vector.extract_strided_slice %4 {offsets = [0, 8], sizes = [16, 8], strides = [1, 1]} : vector<16x32xbf16> to vector<16x8xbf16>
    %41 = vector.extract_strided_slice %6 {offsets = [0, 8], sizes = [16, 8], strides = [1, 1]} : vector<16x32xbf16> to vector<16x8xbf16>
    %cst_27 = arith.constant dense<0.000000e+00> : vector<8x16xf32>
    %42 = tpu.matmul %39, %40, %cst_27 {dimension_numbers = #tpu.dot_dimension_numbers<[1], [1], [0], [0], [0, 0, 1, 0], [], []>} : vector<8x8xbf16>, vector<16x8xbf16>, vector<8x16xf32> -> vector<8x16xf32>
    %43 = arith.addf %42, %10 : vector<8x16xf32>
    %c0_28 = arith.constant 0 : index
    %c1 = arith.constant 1 : index
    %44 = vector.load %arg14[%c0_28, %c1] : memref<8x4xf32, #tpu.memory_space<vmem>>, vector<8x1xf32>
    %cst_29 = arith.constant dense<0xFF800000> : vector<8xf32>
    %45 = vector.multi_reduction <maximumf>, %43, %cst_29 [1] : vector<8x16xf32> to vector<8xf32>
    %46 = vector.shape_cast %45 : vector<8xf32> to vector<8x1xf32>
    %47 = arith.maximumf %44, %46 : vector<8x1xf32>
    %48 = arith.subf %44, %47 : vector<8x1xf32>
    %49 = math.exp %48 : vector<8x1xf32>
    %50 = vector.broadcast %47 : vector<8x1xf32> to vector<8x16xf32>
    %51 = arith.subf %43, %50 : vector<8x16xf32>
    %52 = math.exp %51 : vector<8x16xf32>
    %c0_30 = arith.constant 0 : index
    %c1_31 = arith.constant 1 : index
    %53 = vector.load %arg15[%c0_30, %c1_31] : memref<8x4xf32, #tpu.memory_space<vmem>>, vector<8x1xf32>
    %54 = arith.mulf %49, %53 : vector<8x1xf32>
    %cst_32 = arith.constant dense<0.000000e+00> : vector<8xf32>
    %55 = vector.multi_reduction <add>, %52, %cst_32 [1] : vector<8x16xf32> to vector<8xf32>
    %56 = vector.shape_cast %55 : vector<8xf32> to vector<8x1xf32>
    %57 = arith.addf %54, %56 : vector<8x1xf32>
    %c0_33 = arith.constant 0 : index
    %c1_34 = arith.constant 1 : index
    %58 = vector.load %arg15[%c0_33, %c1_34] : memref<8x4xf32, #tpu.memory_space<vmem>>, vector<8x1xf32>
    tpu.vector_store %arg15[%c0_33, %c1_34], %57 {strides = array<i32>} : memref<8x4xf32, #tpu.memory_space<vmem>>, vector<8x1xf32>,
    %c0_35 = arith.constant 0 : index
    %c8_36 = arith.constant 8 : index
    %59 = vector.load %arg13[%c0_35, %c8_36] : memref<8x32xf32, #tpu.memory_space<vmem>>, vector<8x8xf32>
    %60 = vector.broadcast %49 : vector<8x1xf32> to vector<8x8xf32>
    %61 = arith.mulf %60, %59 : vector<8x8xf32>
    %62 = arith.truncf %52 : vector<8x16xf32> to vector<8x16xbf16>
    %cst_37 = arith.constant dense<0.000000e+00> : vector<8x8xf32>
    %63 = tpu.matmul %62, %41, %cst_37 {dimension_numbers = #tpu.dot_dimension_numbers<[1], [0], [0], [1], [0, 0, 1, 1], [], []>} : vector<8x16xbf16>, vector<16x8xbf16>, vector<8x8xf32> -> vector<8x8xf32>
    %64 = arith.addf %61, %63 : vector<8x8xf32>
    %c0_38 = arith.constant 0 : index
    %c8_39 = arith.constant 8 : index
    %65 = vector.load %arg13[%c0_38, %c8_39] : memref<8x32xf32, #tpu.memory_space<vmem>>, vector<8x8xf32>
    tpu.vector_store %arg13[%c0_38, %c8_39], %64 {strides = array<i32>} : memref<8x32xf32, #tpu.memory_space<vmem>>, vector<8x8xf32>,
    %c0_40 = arith.constant 0 : index
    %c1_41 = arith.constant 1 : index
    %66 = vector.load %arg14[%c0_40, %c1_41] : memref<8x4xf32, #tpu.memory_space<vmem>>, vector<8x1xf32>
    tpu.vector_store %arg14[%c0_40, %c1_41], %47 {strides = array<i32>} : memref<8x4xf32, #tpu.memory_space<vmem>>, vector<8x1xf32>,
    %c0_42 = arith.constant 0 : index
    %c16 = arith.constant 16 : index
    %67 = vector.load %arg12[%c0_42, %c16] : memref<8x32xbf16, #tpu.memory_space<vmem>>, vector<8x8xbf16>
    %68 = vector.extract_strided_slice %4 {offsets = [0, 16], sizes = [16, 8], strides = [1, 1]} : vector<16x32xbf16> to vector<16x8xbf16>
    %69 = vector.extract_strided_slice %6 {offsets = [0, 16], sizes = [16, 8], strides = [1, 1]} : vector<16x32xbf16> to vector<16x8xbf16>
    %cst_43 = arith.constant dense<0.000000e+00> : vector<8x16xf32>
    %70 = tpu.matmul %67, %68, %cst_43 {dimension_numbers = #tpu.dot_dimension_numbers<[1], [1], [0], [0], [0, 0, 1, 0], [], []>} : vector<8x8xbf16>, vector<16x8xbf16>, vector<8x16xf32> -> vector<8x16xf32>
    %71 = arith.addf %70, %10 : vector<8x16xf32>
    %c0_44 = arith.constant 0 : index
    %c2 = arith.constant 2 : index
    %72 = vector.load %arg14[%c0_44, %c2] : memref<8x4xf32, #tpu.memory_space<vmem>>, vector<8x1xf32>
    %cst_45 = arith.constant dense<0xFF800000> : vector<8xf32>
    %73 = vector.multi_reduction <maximumf>, %71, %cst_45 [1] : vector<8x16xf32> to vector<8xf32>
    %74 = vector.shape_cast %73 : vector<8xf32> to vector<8x1xf32>
    %75 = arith.maximumf %72, %74 : vector<8x1xf32>
    %76 = arith.subf %72, %75 : vector<8x1xf32>
    %77 = math.exp %76 : vector<8x1xf32>
    %78 = vector.broadcast %75 : vector<8x1xf32> to vector<8x16xf32>
    %79 = arith.subf %71, %78 : vector<8x16xf32>
    %80 = math.exp %79 : vector<8x16xf32>
    %c0_46 = arith.constant 0 : index
    %c2_47 = arith.constant 2 : index
    %81 = vector.load %arg15[%c0_46, %c2_47] : memref<8x4xf32, #tpu.memory_space<vmem>>, vector<8x1xf32>
    %82 = arith.mulf %77, %81 : vector<8x1xf32>
    %cst_48 = arith.constant dense<0.000000e+00> : vector<8xf32>
    %83 = vector.multi_reduction <add>, %80, %cst_48 [1] : vector<8x16xf32> to vector<8xf32>
    %84 = vector.shape_cast %83 : vector<8xf32> to vector<8x1xf32>
    %85 = arith.addf %82, %84 : vector<8x1xf32>
    %c0_49 = arith.constant 0 : index
    %c2_50 = arith.constant 2 : index
    %86 = vector.load %arg15[%c0_49, %c2_50] : memref<8x4xf32, #tpu.memory_space<vmem>>, vector<8x1xf32>
    tpu.vector_store %arg15[%c0_49, %c2_50], %85 {strides = array<i32>} : memref<8x4xf32, #tpu.memory_space<vmem>>, vector<8x1xf32>,
    %c0_51 = arith.constant 0 : index
    %c16_52 = arith.constant 16 : index
    %87 = vector.load %arg13[%c0_51, %c16_52] : memref<8x32xf32, #tpu.memory_space<vmem>>, vector<8x8xf32>
    %88 = vector.broadcast %77 : vector<8x1xf32> to vector<8x8xf32>
    %89 = arith.mulf %88, %87 : vector<8x8xf32>
    %90 = arith.truncf %80 : vector<8x16xf32> to vector<8x16xbf16>
    %cst_53 = arith.constant dense<0.000000e+00> : vector<8x8xf32>
    %91 = tpu.matmul %90, %69, %cst_53 {dimension_numbers = #tpu.dot_dimension_numbers<[1], [0], [0], [1], [0, 0, 1, 1], [], []>} : vector<8x16xbf16>, vector<16x8xbf16>, vector<8x8xf32> -> vector<8x8xf32>
    %92 = arith.addf %89, %91 : vector<8x8xf32>
    %c0_54 = arith.constant 0 : index
    %c16_55 = arith.constant 16 : index
    %93 = vector.load %arg13[%c0_54, %c16_55] : memref<8x32xf32, #tpu.memory_space<vmem>>, vector<8x8xf32>
    tpu.vector_store %arg13[%c0_54, %c16_55], %92 {strides = array<i32>} : memref<8x32xf32, #tpu.memory_space<vmem>>, vector<8x8xf32>,
    %c0_56 = arith.constant 0 : index
    %c2_57 = arith.constant 2 : index
    %94 = vector.load %arg14[%c0_56, %c2_57] : memref<8x4xf32, #tpu.memory_space<vmem>>, vector<8x1xf32>
    tpu.vector_store %arg14[%c0_56, %c2_57], %75 {strides = array<i32>} : memref<8x4xf32, #tpu.memory_space<vmem>>, vector<8x1xf32>,
    %c0_58 = arith.constant 0 : index
    %c24 = arith.constant 24 : index
    %95 = vector.load %arg12[%c0_58, %c24] : memref<8x32xbf16, #tpu.memory_space<vmem>>, vector<8x8xbf16>
    %96 = vector.extract_strided_slice %4 {offsets = [0, 24], sizes = [16, 8], strides = [1, 1]} : vector<16x32xbf16> to vector<16x8xbf16>
    %97 = vector.extract_strided_slice %6 {offsets = [0, 24], sizes = [16, 8], strides = [1, 1]} : vector<16x32xbf16> to vector<16x8xbf16>
    %cst_59 = arith.constant dense<0.000000e+00> : vector<8x16xf32>
    %98 = tpu.matmul %95, %96, %cst_59 {dimension_numbers = #tpu.dot_dimension_numbers<[1], [1], [0], [0], [0, 0, 1, 0], [], []>} : vector<8x8xbf16>, vector<16x8xbf16>, vector<8x16xf32> -> vector<8x16xf32>
    %99 = arith.addf %98, %10 : vector<8x16xf32>
    %c0_60 = arith.constant 0 : index
    %c3 = arith.constant 3 : index
    %100 = vector.load %arg14[%c0_60, %c3] : memref<8x4xf32, #tpu.memory_space<vmem>>, vector<8x1xf32>
    %cst_61 = arith.constant dense<0xFF800000> : vector<8xf32>
    %101 = vector.multi_reduction <maximumf>, %99, %cst_61 [1] : vector<8x16xf32> to vector<8xf32>
    %102 = vector.shape_cast %101 : vector<8xf32> to vector<8x1xf32>
    %103 = arith.maximumf %100, %102 : vector<8x1xf32>
    %104 = arith.subf %100, %103 : vector<8x1xf32>
    %105 = math.exp %104 : vector<8x1xf32>
    %106 = vector.broadcast %103 : vector<8x1xf32> to vector<8x16xf32>
    %107 = arith.subf %99, %106 : vector<8x16xf32>
    %108 = math.exp %107 : vector<8x16xf32>
    %c0_62 = arith.constant 0 : index
    %c3_63 = arith.constant 3 : index
    %109 = vector.load %arg15[%c0_62, %c3_63] : memref<8x4xf32, #tpu.memory_space<vmem>>, vector<8x1xf32>
    %110 = arith.mulf %105, %109 : vector<8x1xf32>
    %cst_64 = arith.constant dense<0.000000e+00> : vector<8xf32>
    %111 = vector.multi_reduction <add>, %108, %cst_64 [1] : vector<8x16xf32> to vector<8xf32>
    %112 = vector.shape_cast %111 : vector<8xf32> to vector<8x1xf32>
    %113 = arith.addf %110, %112 : vector<8x1xf32>
    %c0_65 = arith.constant 0 : index
    %c3_66 = arith.constant 3 : index
    %114 = vector.load %arg15[%c0_65, %c3_66] : memref<8x4xf32, #tpu.memory_space<vmem>>, vector<8x1xf32>
    tpu.vector_store %arg15[%c0_65, %c3_66], %113 {strides = array<i32>} : memref<8x4xf32, #tpu.memory_space<vmem>>, vector<8x1xf32>,
    %c0_67 = arith.constant 0 : index
    %c24_68 = arith.constant 24 : index
    %115 = vector.load %arg13[%c0_67, %c24_68] : memref<8x32xf32, #tpu.memory_space<vmem>>, vector<8x8xf32>
    %116 = vector.broadcast %105 : vector<8x1xf32> to vector<8x8xf32>
    %117 = arith.mulf %116, %115 : vector<8x8xf32>
    %118 = arith.truncf %108 : vector<8x16xf32> to vector<8x16xbf16>
    %cst_69 = arith.constant dense<0.000000e+00> : vector<8x8xf32>
    %119 = tpu.matmul %118, %97, %cst_69 {dimension_numbers = #tpu.dot_dimension_numbers<[1], [0], [0], [1], [0, 0, 1, 1], [], []>} : vector<8x16xbf16>, vector<16x8xbf16>, vector<8x8xf32> -> vector<8x8xf32>
    %120 = arith.addf %117, %119 : vector<8x8xf32>
    %c0_70 = arith.constant 0 : index
    %c24_71 = arith.constant 24 : index
    %121 = vector.load %arg13[%c0_70, %c24_71] : memref<8x32xf32, #tpu.memory_space<vmem>>, vector<8x8xf32>
    tpu.vector_store %arg13[%c0_70, %c24_71], %120 {strides = array<i32>} : memref<8x32xf32, #tpu.memory_space<vmem>>, vector<8x8xf32>,
    %c0_72 = arith.constant 0 : index
    %c3_73 = arith.constant 3 : index
    %122 = vector.load %arg14[%c0_72, %c3_73] : memref<8x4xf32, #tpu.memory_space<vmem>>, vector<8x1xf32>
    tpu.vector_store %arg14[%c0_72, %c3_73], %103 {strides = array<i32>} : memref<8x4xf32, #tpu.memory_space<vmem>>, vector<8x1xf32>,
    %c0_i32_74 = arith.constant 0 : i32
    %123 = arith.cmpi eq, %arg2, %c0_i32_74 : i32
    %124 = arith.extui %123 : i1 to i32
    %c0_i32_75 = arith.constant 0 : i32
    %125 = arith.cmpi ne, %124, %c0_i32_75 : i32
    scf.if %125 {
      %c0_76 = arith.constant 0 : index
      %c0_77 = arith.constant 0 : index
      %126 = vector.load %arg15[%c0_76, %c0_77] : memref<8x4xf32, #tpu.memory_space<vmem>>, vector<8x1xf32>
      %127 = tpu.reciprocal %126 {approx = true} : vector<8x1xf32> -> vector<8x1xf32>
      %c0_78 = arith.constant 0 : index
      %c0_79 = arith.constant 0 : index
      %128 = vector.load %arg13[%c0_78, %c0_79] : memref<8x32xf32, #tpu.memory_space<vmem>>, vector<8x8xf32>
      %129 = vector.broadcast %127 : vector<8x1xf32> to vector<8x8xf32>
      %130 = arith.mulf %128, %129 : vector<8x8xf32>
      %131 = arith.truncf %130 : vector<8x8xf32> to vector<8x8xbf16>
      %c0_80 = arith.constant 0 : index
      %c0_81 = arith.constant 0 : index
      %132 = vector.load %arg16[%c0_80, %c0_81] : memref<8x32xbf16, #tpu.memory_space<vmem>>, vector<8x8xbf16>
      tpu.vector_store %arg16[%c0_80, %c0_81], %131 {strides = array<i32>} : memref<8x32xbf16, #tpu.memory_space<vmem>>, vector<8x8xbf16>,
      %c0_82 = arith.constant 0 : index
      %c1_83 = arith.constant 1 : index
      %133 = vector.load %arg15[%c0_82, %c1_83] : memref<8x4xf32, #tpu.memory_space<vmem>>, vector<8x1xf32>
      %134 = tpu.reciprocal %133 {approx = true} : vector<8x1xf32> -> vector<8x1xf32>
      %c0_84 = arith.constant 0 : index
      %c8_85 = arith.constant 8 : index
      %135 = vector.load %arg13[%c0_84, %c8_85] : memref<8x32xf32, #tpu.memory_space<vmem>>, vector<8x8xf32>
      %136 = vector.broadcast %134 : vector<8x1xf32> to vector<8x8xf32>
      %137 = arith.mulf %135, %136 : vector<8x8xf32>
      %138 = arith.truncf %137 : vector<8x8xf32> to vector<8x8xbf16>
      %c0_86 = arith.constant 0 : index
      %c8_87 = arith.constant 8 : index
      %139 = vector.load %arg16[%c0_86, %c8_87] : memref<8x32xbf16, #tpu.memory_space<vmem>>, vector<8x8xbf16>
      tpu.vector_store %arg16[%c0_86, %c8_87], %138 {strides = array<i32>} : memref<8x32xbf16, #tpu.memory_space<vmem>>, vector<8x8xbf16>,
      %c0_88 = arith.constant 0 : index
      %c2_89 = arith.constant 2 : index
      %140 = vector.load %arg15[%c0_88, %c2_89] : memref<8x4xf32, #tpu.memory_space<vmem>>, vector<8x1xf32>
      %141 = tpu.reciprocal %140 {approx = true} : vector<8x1xf32> -> vector<8x1xf32>
      %c0_90 = arith.constant 0 : index
      %c16_91 = arith.constant 16 : index
      %142 = vector.load %arg13[%c0_90, %c16_91] : memref<8x32xf32, #tpu.memory_space<vmem>>, vector<8x8xf32>
      %143 = vector.broadcast %141 : vector<8x1xf32> to vector<8x8xf32>
      %144 = arith.mulf %142, %143 : vector<8x8xf32>
      %145 = arith.truncf %144 : vector<8x8xf32> to vector<8x8xbf16>
      %c0_92 = arith.constant 0 : index
      %c16_93 = arith.constant 16 : index
      %146 = vector.load %arg16[%c0_92, %c16_93] : memref<8x32xbf16, #tpu.memory_space<vmem>>, vector<8x8xbf16>
      tpu.vector_store %arg16[%c0_92, %c16_93], %145 {strides = array<i32>} : memref<8x32xbf16, #tpu.memory_space<vmem>>, vector<8x8xbf16>,
      %c0_94 = arith.constant 0 : index
      %c3_95 = arith.constant 3 : index
      %147 = vector.load %arg15[%c0_94, %c3_95] : memref<8x4xf32, #tpu.memory_space<vmem>>, vector<8x1xf32>
      %148 = tpu.reciprocal %147 {approx = true} : vector<8x1xf32> -> vector<8x1xf32>
      %c0_96 = arith.constant 0 : index
      %c24_97 = arith.constant 24 : index
      %149 = vector.load %arg13[%c0_96, %c24_97] : memref<8x32xf32, #tpu.memory_space<vmem>>, vector<8x8xf32>
      %150 = vector.broadcast %148 : vector<8x1xf32> to vector<8x8xf32>
      %151 = arith.mulf %149, %150 : vector<8x8xf32>
      %152 = arith.truncf %151 : vector<8x8xf32> to vector<8x8xbf16>
      %c0_98 = arith.constant 0 : index
      %c24_99 = arith.constant 24 : index
      %153 = vector.load %arg16[%c0_98, %c24_99] : memref<8x32xbf16, #tpu.memory_space<vmem>>, vector<8x8xbf16>
      tpu.vector_store %arg16[%c0_98, %c24_99], %152 {strides = array<i32>} : memref<8x32xbf16, #tpu.memory_space<vmem>>, vector<8x8xbf16>,
      %c0_100 = arith.constant 0 : index
      %c0_101 = arith.constant 0 : index
      %154 = vector.load %arg16[%c0_100, %c0_101] : memref<8x32xbf16, #tpu.memory_space<vmem>>, vector<8x32xbf16>
      %c0_102 = arith.constant 0 : index
      %c0_103 = arith.constant 0 : index
      %155 = vector.load %arg9[%c0_102, %c0_103] : memref<32x32xbf16, #tpu.memory_space<vmem>>, vector<32x32xbf16>
      %cst_104 = arith.constant dense<0.000000e+00> : vector<8x32xf32>
      %156 = tpu.matmul %154, %155, %cst_104 {dimension_numbers = #tpu.dot_dimension_numbers<[1], [0], [0], [1], [0, 0, 1, 1], [], []>} : vector<8x32xbf16>, vector<32x32xbf16>, vector<8x32xf32> -> vector<8x32xf32>
      %c0_105 = arith.constant 0 : index
      %c0_106 = arith.constant 0 : index
      %157 = vector.load %arg10[%c0_105, %c0_106] : memref<1x32xf32, #tpu.memory_space<vmem>>, vector<1x32xf32>
      %158 = vector.broadcast %157 : vector<1x32xf32> to vector<8x32xf32>
      %159 = arith.addf %156, %158 : vector<8x32xf32>
      %c0_107 = arith.constant 0 : index
      %c0_108 = arith.constant 0 : index
      %c0_109 = arith.constant 0 : index
      %160 = vector.load %arg11[%c0_107, %c0_108, %c0_109] : memref<1x8x32xf32, #tpu.memory_space<vmem>>, vector<1x8x32xf32>
      %161 = vector.shape_cast %160 : vector<1x8x32xf32> to vector<8x32xf32>
      %162 = vector.shape_cast %159 : vector<8x32xf32> to vector<1x8x32xf32>
      tpu.vector_store %arg11[%c0_107, %c0_108, %c0_109], %162 {strides = array<i32>} : memref<1x8x32xf32, #tpu.memory_space<vmem>>, vector<1x8x32xf32>,
    } else {
    }
    return
  }
  func.func @transform_0(%arg0: i32, %arg1: i32, %arg2: i32) -> (i32, i32, i32) {
    %c0_i32 = arith.constant 0 : i32
    %c0_i32_0 = arith.constant 0 : i32
    return %arg0, %arg1, %c0_i32 : i32, i32, i32
  }
  func.func @transform_1(%arg0: i32, %arg1: i32, %arg2: i32) -> (i32, i32, i32) {
    %c0_i32 = arith.constant 0 : i32
    %c0_i32_0 = arith.constant 0 : i32
    return %arg0, %arg2, %c0_i32 : i32, i32, i32
  }
  func.func @transform_2(%arg0: i32, %arg1: i32, %arg2: i32) -> (i32, i32, i32) {
    %c0_i32 = arith.constant 0 : i32
    %c0_i32_0 = arith.constant 0 : i32
    return %arg0, %arg2, %c0_i32 : i32, i32, i32
  }
  func.func @transform_3(%arg0: i32, %arg1: i32, %arg2: i32) -> (i32, i32, i32) {
    %c0_i32 = arith.constant 0 : i32
    %c0_i32_0 = arith.constant 0 : i32
    return %arg0, %c0_i32, %arg2 : i32, i32, i32
  }
  func.func @transform_4(%arg0: i32, %arg1: i32, %arg2: i32) -> (i32, i32) {
    %c0_i32 = arith.constant 0 : i32
    %c0_i32_0 = arith.constant 0 : i32
    %c0_i32_1 = arith.constant 0 : i32
    return %c0_i32, %c0_i32_0 : i32, i32
  }
  func.func @transform_5(%arg0: i32, %arg1: i32, %arg2: i32) -> (i32, i32) {
    %c0_i32 = arith.constant 0 : i32
    %c0_i32_0 = arith.constant 0 : i32
    %c0_i32_1 = arith.constant 0 : i32
    return %c0_i32, %c0_i32_0 : i32, i32
  }
  func.func @transform_6(%arg0: i32, %arg1: i32, %arg2: i32) -> (i32, i32) {
    %c0_i32 = arith.constant 0 : i32
    %c0_i32_0 = arith.constant 0 : i32
    %c0_i32_1 = arith.constant 0 : i32
    return %c0_i32, %c0_i32_0 : i32, i32
  }
  func.func @transform_7(%arg0: i32, %arg1: i32, %arg2: i32) -> (i32, i32) {
    %c0_i32 = arith.constant 0 : i32
    %c0_i32_0 = arith.constant 0 : i32
    %c0_i32_1 = arith.constant 0 : i32
    return %c0_i32, %c0_i32_0 : i32, i32
  }
  func.func @transform_8(%arg0: i32, %arg1: i32, %arg2: i32) -> (i32, i32, i32) {
    %c0_i32 = arith.constant 0 : i32
    %c0_i32_0 = arith.constant 0 : i32
    return %arg0, %arg1, %c0_i32 : i32, i32, i32
  }
}

module attributes {stable_mosaic.version = 11 : i64} {
  func.func @_mha_kernel(%arg0: i32, %arg1: i32, %arg2: i32, %arg3: memref<1x8x32xbf16, #tpu.memory_space<vmem>>, %arg4: memref<1x16x32xbf16, #tpu.memory_space<vmem>>, %arg5: memref<1x16x32xbf16, #tpu.memory_space<vmem>>, %arg6: memref<1x1x16xf32, #tpu.memory_space<vmem>>, %arg7: memref<32x32xbf16, #tpu.memory_space<vmem>>, %arg8: memref<1x32xf32, #tpu.memory_space<vmem>>, %arg9: memref<32x32xbf16, #tpu.memory_space<vmem>>, %arg10: memref<1x32xf32, #tpu.memory_space<vmem>>, %arg11: memref<1x8x32xf32, #tpu.memory_space<vmem>>, %arg12: memref<8x32xbf16, #tpu.memory_space<vmem>>, %arg13: memref<8x32xf32, #tpu.memory_space<vmem>>, %arg14: memref<8x4xf32, #tpu.memory_space<vmem>>, %arg15: memref<8x4xf32, #tpu.memory_space<vmem>>, %arg16: memref<8x32xbf16, #tpu.memory_space<vmem>>) attributes {dimension_semantics = [#tpu.dimension_semantics<parallel>, #tpu.dimension_semantics<parallel>, #tpu.dimension_semantics<arbitrary>], iteration_bounds = array<i64: 2, 1, 1>, scalar_prefetch = 0 : i64, scratch_operands = 5 : i64, tpu.core_type = #tpu.core_type<tc>, window_params = [{transform_indices = @transform_0, window_bounds = array<i64: 1, 8, 32>}, {transform_indices = @transform_1, window_bounds = array<i64: 1, 16, 32>}, {transform_indices = @transform_2, window_bounds = array<i64: 1, 16, 32>}, {transform_indices = @transform_3, window_bounds = array<i64: 1, 1, 16>}, {pipeline_mode = #tpu.pipeline_mode<synchronous>, transform_indices = @transform_4, window_bounds = array<i64: 32, 32>}, {pipeline_mode = #tpu.pipeline_mode<synchronous>, transform_indices = @transform_5, window_bounds = array<i64: 1, 32>}, {pipeline_mode = #tpu.pipeline_mode<synchronous>, transform_indices = @transform_6, window_bounds = array<i64: 32, 32>}, {pipeline_mode = #tpu.pipeline_mode<synchronous>, transform_indices = @transform_7, window_bounds = array<i64: 1, 32>}, {transform_indices = @transform_8, window_bounds = array<i64: 1, 8, 32>}]} {
    %c0_i32 = arith.constant 0 : i32
    %0 = arith.cmpi eq, %arg2, %c0_i32 : i32
    %1 = arith.extui %0 : i1 to i32
    %c0_i32_0 = arith.constant 0 : i32
    %2 = arith.cmpi ne, %1, %c0_i32_0 : i32
    scf.if %2 {
      %c0_76 = arith.constant 0 : index
      %c0_77 = arith.constant 0 : index
      %c0_78 = arith.constant 0 : index
      %126 = vector.load %arg3[%c0_76, %c0_77, %c0_78] : memref<1x8x32xbf16, #tpu.memory_space<vmem>>, vector<1x8x32xbf16>
      %127 = vector.shape_cast %126 : vector<1x8x32xbf16> to vector<8x32xbf16>
      %c0_79 = arith.constant 0 : index
      %c0_80 = arith.constant 0 : index
      %128 = vector.load %arg7[%c0_79, %c0_80] : memref<32x32xbf16, #tpu.memory_space<vmem>>, vector<32x32xbf16>
      %cst_81 = arith.constant dense<0.000000e+00> : vector<8x32xf32>
      %129 = tpu.matmul %127, %128, %cst_81 {dimension_numbers = #tpu.dot_dimension_numbers<[1], [0], [0], [1], [0, 0, 1, 1], [], []>} : vector<8x32xbf16>, vector<32x32xbf16>, vector<8x32xf32> -> vector<8x32xf32>
      %c0_82 = arith.constant 0 : index
      %c0_83 = arith.constant 0 : index
      %130 = vector.load %arg8[%c0_82, %c0_83] : memref<1x32xf32, #tpu.memory_space<vmem>>, vector<1x32xf32>
      %131 = vector.broadcast %130 : vector<1x32xf32> to vector<8x32xf32>
      %132 = arith.addf %129, %131 : vector<8x32xf32>
      %cst_84 = arith.constant 0.353553385 : f32
      %133 = vector.broadcast %cst_84 : f32 to vector<8x32xf32>
      %134 = arith.mulf %132, %133 : vector<8x32xf32>
      %135 = arith.truncf %134 : vector<8x32xf32> to vector<8x32xbf16>
      %c0_85 = arith.constant 0 : index
      %c0_86 = arith.constant 0 : index
      %136 = vector.load %arg12[%c0_85, %c0_86] : memref<8x32xbf16, #tpu.memory_space<vmem>>, vector<8x32xbf16>
      tpu.vector_store %arg12[%c0_85, %c0_86], %135 {strides = array<i32>} : memref<8x32xbf16, #tpu.memory_space<vmem>>, vector<8x32xbf16>,
      %cst_87 = arith.constant -1.000000e+30 : f32
      %137 = vector.broadcast %cst_87 : f32 to vector<8x4xf32>
      %c0_88 = arith.constant 0 : index
      %c0_89 = arith.constant 0 : index
      %138 = vector.load %arg14[%c0_88, %c0_89] : memref<8x4xf32, #tpu.memory_space<vmem>>, vector<8x4xf32>
      tpu.vector_store %arg14[%c0_88, %c0_89], %137 {strides = array<i32>} : memref<8x4xf32, #tpu.memory_space<vmem>>, vector<8x4xf32>,
      %cst_90 = arith.constant 0.000000e+00 : f32
      %139 = vector.broadcast %cst_90 : f32 to vector<8x4xf32>
      %c0_91 = arith.constant 0 : index
      %c0_92 = arith.constant 0 : index
      %140 = vector.load %arg15[%c0_91, %c0_92] : memref<8x4xf32, #tpu.memory_space<vmem>>, vector<8x4xf32>
      tpu.vector_store %arg15[%c0_91, %c0_92], %139 {strides = array<i32>} : memref<8x4xf32, #tpu.memory_space<vmem>>, vector<8x4xf32>,
      %cst_93 = arith.constant 0.000000e+00 : f32
      %141 = vector.broadcast %cst_93 : f32 to vector<8x32xf32>
      %c0_94 = arith.constant 0 : index
      %c0_95 = arith.constant 0 : index
      %142 = vector.load %arg13[%c0_94, %c0_95] : memref<8x32xf32, #tpu.memory_space<vmem>>, vector<8x32xf32>
      tpu.vector_store %arg13[%c0_94, %c0_95], %141 {strides = array<i32>} : memref<8x32xf32, #tpu.memory_space<vmem>>, vector<8x32xf32>,
    } else {
    }
    %c0 = arith.constant 0 : index
    %c0_1 = arith.constant 0 : index
    %c0_2 = arith.constant 0 : index
    %3 = vector.load %arg4[%c0, %c0_1, %c0_2] : memref<1x16x32xbf16, #tpu.memory_space<vmem>>, vector<1x16x32xbf16>
    %4 = vector.shape_cast %3 : vector<1x16x32xbf16> to vector<16x32xbf16>
    %c0_3 = arith.constant 0 : index
    %c0_4 = arith.constant 0 : index
    %c0_5 = arith.constant 0 : index
    %5 = vector.load %arg5[%c0_3, %c0_4, %c0_5] : memref<1x16x32xbf16, #tpu.memory_space<vmem>>, vector<1x16x32xbf16>
    %6 = vector.shape_cast %5 : vector<1x16x32xbf16> to vector<16x32xbf16>
    %c0_6 = arith.constant 0 : index
    %c0_7 = arith.constant 0 : index
    %c0_8 = arith.constant 0 : index
    %7 = vector.load %arg6[%c0_6, %c0_7, %c0_8] : memref<1x1x16xf32, #tpu.memory_space<vmem>>, vector<1x1x16xf32>
    %8 = vector.shape_cast %7 : vector<1x1x16xf32> to vector<1x16xf32>
    %9 = vector.shape_cast %8 : vector<1x16xf32> to vector<1x16xf32>
    %10 = vector.broadcast %9 : vector<1x16xf32> to vector<8x16xf32>
    %c0_9 = arith.constant 0 : index
    %c0_10 = arith.constant 0 : index
    %11 = vector.load %arg12[%c0_9, %c0_10] : memref<8x32xbf16, #tpu.memory_space<vmem>>, vector<8x8xbf16>
    %12 = vector.extract_strided_slice %4 {offsets = [0, 0], sizes = [16, 8], strides = [1, 1]} : vector<16x32xbf16> to vector<16x8xbf16>
    %13 = vector.extract_strided_slice %6 {offsets = [0, 0], sizes = [16, 8], strides = [1, 1]} : vector<16x32xbf16> to vector<16x8xbf16>
    %cst = arith.constant dense<0.000000e+00> : vector<8x16xf32>
    %14 = tpu.matmul %11, %12, %cst {dimension_numbers = #tpu.dot_dimension_numbers<[1], [1], [0], [0], [0, 0, 1, 0], [], []>} : vector<8x8xbf16>, vector<16x8xbf16>, vector<8x16xf32> -> vector<8x16xf32>
    %15 = arith.addf %14, %10 : vector<8x16xf32>
    %c0_11 = arith.constant 0 : index
    %c0_12 = arith.constant 0 : index
    %16 = vector.load %arg14[%c0_11, %c0_12] : memref<8x4xf32, #tpu.memory_space<vmem>>, vector<8x1xf32>
    %cst_13 = arith.constant dense<0xFF800000> : vector<8xf32>
    %17 = vector.multi_reduction <maximumf>, %15, %cst_13 [1] : vector<8x16xf32> to vector<8xf32>
    %18 = vector.shape_cast %17 : vector<8xf32> to vector<8x1xf32>
    %19 = arith.maximumf %16, %18 : vector<8x1xf32>
    %20 = arith.subf %16, %19 : vector<8x1xf32>
    %21 = math.exp %20 : vector<8x1xf32>
    %22 = vector.broadcast %19 : vector<8x1xf32> to vector<8x16xf32>
    %23 = arith.subf %15, %22 : vector<8x16xf32>
    %24 = math.exp %23 : vector<8x16xf32>
    %c0_14 = arith.constant 0 : index
    %c0_15 = arith.constant 0 : index
    %25 = vector.load %arg15[%c0_14, %c0_15] : memref<8x4xf32, #tpu.memory_space<vmem>>, vector<8x1xf32>
    %26 = arith.mulf %21, %25 : vector<8x1xf32>
    %cst_16 = arith.constant dense<0.000000e+00> : vector<8xf32>
    %27 = vector.multi_reduction <add>, %24, %cst_16 [1] : vector<8x16xf32> to vector<8xf32>
    %28 = vector.shape_cast %27 : vector<8xf32> to vector<8x1xf32>
    %29 = arith.addf %26, %28 : vector<8x1xf32>
    %c0_17 = arith.constant 0 : index
    %c0_18 = arith.constant 0 : index
    %30 = vector.load %arg15[%c0_17, %c0_18] : memref<8x4xf32, #tpu.memory_space<vmem>>, vector<8x1xf32>
    tpu.vector_store %arg15[%c0_17, %c0_18], %29 {strides = array<i32>} : memref<8x4xf32, #tpu.memory_space<vmem>>, vector<8x1xf32>,
    %c0_19 = arith.constant 0 : index
    %c0_20 = arith.constant 0 : index
    %31 = vector.load %arg13[%c0_19, %c0_20] : memref<8x32xf32, #tpu.memory_space<vmem>>, vector<8x8xf32>
    %32 = vector.broadcast %21 : vector<8x1xf32> to vector<8x8xf32>
    %33 = arith.mulf %32, %31 : vector<8x8xf32>
    %34 = arith.truncf %24 : vector<8x16xf32> to vector<8x16xbf16>
    %cst_21 = arith.constant dense<0.000000e+00> : vector<8x8xf32>
    %35 = tpu.matmul %34, %13, %cst_21 {dimension_numbers = #tpu.dot_dimension_numbers<[1], [0], [0], [1], [0, 0, 1, 1], [], []>} : vector<8x16xbf16>, vector<16x8xbf16>, vector<8x8xf32> -> vector<8x8xf32>
    %36 = arith.addf %33, %35 : vector<8x8xf32>
    %c0_22 = arith.constant 0 : index
    %c0_23 = arith.constant 0 : index
    %37 = vector.load %arg13[%c0_22, %c0_23] : memref<8x32xf32, #tpu.memory_space<vmem>>, vector<8x8xf32>
    tpu.vector_store %arg13[%c0_22, %c0_23], %36 {strides = array<i32>} : memref<8x32xf32, #tpu.memory_space<vmem>>, vector<8x8xf32>,
    %c0_24 = arith.constant 0 : index
    %c0_25 = arith.constant 0 : index
    %38 = vector.load %arg14[%c0_24, %c0_25] : memref<8x4xf32, #tpu.memory_space<vmem>>, vector<8x1xf32>
    tpu.vector_store %arg14[%c0_24, %c0_25], %19 {strides = array<i32>} : memref<8x4xf32, #tpu.memory_space<vmem>>, vector<8x1xf32>,
    %c0_26 = arith.constant 0 : index
    %c8 = arith.constant 8 : index
    %39 = vector.load %arg12[%c0_26, %c8] : memref<8x32xbf16, #tpu.memory_space<vmem>>, vector<8x8xbf16>
    %40 = vector.extract_strided_slice %4 {offsets = [0, 8], sizes = [16, 8], strides = [1, 1]} : vector<16x32xbf16> to vector<16x8xbf16>
    %41 = vector.extract_strided_slice %6 {offsets = [0, 8], sizes = [16, 8], strides = [1, 1]} : vector<16x32xbf16> to vector<16x8xbf16>
    %cst_27 = arith.constant dense<0.000000e+00> : vector<8x16xf32>
    %42 = tpu.matmul %39, %40, %cst_27 {dimension_numbers = #tpu.dot_dimension_numbers<[1], [1], [0], [0], [0, 0, 1, 0], [], []>} : vector<8x8xbf16>, vector<16x8xbf16>, vector<8x16xf32> -> vector<8x16xf32>
    %43 = arith.addf %42, %10 : vector<8x16xf32>
    %c0_28 = arith.constant 0 : index
    %c1 = arith.constant 1 : index
    %44 = vector.load %arg14[%c0_28, %c1] : memref<8x4xf32, #tpu.memory_space<vmem>>, vector<8x1xf32>
    %cst_29 = arith.constant dense<0xFF800000> : vector<8xf32>
    %45 = vector.multi_reduction <maximumf>, %43, %cst_29 [1] : vector<8x16xf32> to vector<8xf32>
    %46 = vector.shape_cast %45 : vector<8xf32> to vector<8x1xf32>
    %47 = arith.maximumf %44, %46 : vector<8x1xf32>
    %48 = arith.subf %44, %47 : vector<8x1xf32>
    %49 = math.exp %48 : vector<8x1xf32>
    %50 = vector.broadcast %47 : vector<8x1xf32> to vector<8x16xf32>
    %51 = arith.subf %43, %50 : vector<8x16xf32>
    %52 = math.exp %51 : vector<8x16xf32>
    %c0_30 = arith.constant 0 : index
    %c1_31 = arith.constant 1 : index
    %53 = vector.load %arg15[%c0_30, %c1_31] : memref<8x4xf32, #tpu.memory_space<vmem>>, vector<8x1xf32>
    %54 = arith.mulf %49, %53 : vector<8x1xf32>
    %cst_32 = arith.constant dense<0.000000e+00> : vector<8xf32>
    %55 = vector.multi_reduction <add>, %52, %cst_32 [1] : vector<8x16xf32> to vector<8xf32>
    %56 = vector.shape_cast %55 : vector<8xf32> to vector<8x1xf32>
    %57 = arith.addf %54, %56 : vector<8x1xf32>
    %c0_33 = arith.constant 0 : index
    %c1_34 = arith.constant 1 : index
    %58 = vector.load %arg15[%c0_33, %c1_34] : memref<8x4xf32, #tpu.memory_space<vmem>>, vector<8x1xf32>
    tpu.vector_store %arg15[%c0_33, %c1_34], %57 {strides = array<i32>} : memref<8x4xf32, #tpu.memory_space<vmem>>, vector<8x1xf32>,
    %c0_35 = arith.constant 0 : index
    %c8_36 = arith.constant 8 : index
    %59 = vector.load %arg13[%c0_35, %c8_36] : memref<8x32xf32, #tpu.memory_space<vmem>>, vector<8x8xf32>
    %60 = vector.broadcast %49 : vector<8x1xf32> to vector<8x8xf32>
    %61 = arith.mulf %60, %59 : vector<8x8xf32>
    %62 = arith.truncf %52 : vector<8x16xf32> to vector<8x16xbf16>
    %cst_37 = arith.constant dense<0.000000e+00> : vector<8x8xf32>
    %63 = tpu.matmul %62, %41, %cst_37 {dimension_numbers = #tpu.dot_dimension_numbers<[1], [0], [0], [1], [0, 0, 1, 1], [], []>} : vector<8x16xbf16>, vector<16x8xbf16>, vector<8x8xf32> -> vector<8x8xf32>
    %64 = arith.addf %61, %63 : vector<8x8xf32>
    %c0_38 = arith.constant 0 : index
    %c8_39 = arith.constant 8 : index
    %65 = vector.load %arg13[%c0_38, %c8_39] : memref<8x32xf32, #tpu.memory_space<vmem>>, vector<8x8xf32>
    tpu.vector_store %arg13[%c0_38, %c8_39], %64 {strides = array<i32>} : memref<8x32xf32, #tpu.memory_space<vmem>>, vector<8x8xf32>,
    %c0_40 = arith.constant 0 : index
    %c1_41 = arith.constant 1 : index
    %66 = vector.load %arg14[%c0_40, %c1_41] : memref<8x4xf32, #tpu.memory_space<vmem>>, vector<8x1xf32>
    tpu.vector_store %arg14[%c0_40, %c1_41], %47 {strides = array<i32>} : memref<8x4xf32, #tpu.memory_space<vmem>>, vector<8x1xf32>,
    %c0_42 = arith.constant 0 : index
    %c16 = arith.constant 16 : index
    %67 = vector.load %arg12[%c0_42, %c16] : memref<8x32xbf16, #tpu.memory_space<vmem>>, vector<8x8xbf16>
    %68 = vector.extract_strided_slice %4 {offsets = [0, 16], sizes = [16, 8], strides = [1, 1]} : vector<16x32xbf16> to vector<16x8xbf16>
    %69 = vector.extract_strided_slice %6 {offsets = [0, 16], sizes = [16, 8], strides = [1, 1]} : vector<16x32xbf16> to vector<16x8xbf16>
    %cst_43 = arith.constant dense<0.000000e+00> : vector<8x16xf32>
    %70 = tpu.matmul %67, %68, %cst_43 {dimension_numbers = #tpu.dot_dimension_numbers<[1], [1], [0], [0], [0, 0, 1, 0], [], []>} : vector<8x8xbf16>, vector<16x8xbf16>, vector<8x16xf32> -> vector<8x16xf32>
    %71 = arith.addf %70, %10 : vector<8x16xf32>
    %c0_44 = arith.constant 0 : index
    %c2 = arith.constant 2 : index
    %72 = vector.load %arg14[%c0_44, %c2] : memref<8x4xf32, #tpu.memory_space<vmem>>, vector<8x1xf32>
    %cst_45 = arith.constant dense<0xFF800000> : vector<8xf32>
    %73 = vector.multi_reduction <maximumf>, %71, %cst_45 [1] : vector<8x16xf32> to vector<8xf32>
    %74 = vector.shape_cast %73 : vector<8xf32> to vector<8x1xf32>
    %75 = arith.maximumf %72, %74 : vector<8x1xf32>
    %76 = arith.subf %72, %75 : vector<8x1xf32>
    %77 = math.exp %76 : vector<8x1xf32>
    %78 = vector.broadcast %75 : vector<8x1xf32> to vector<8x16xf32>
    %79 = arith.subf %71, %78 : vector<8x16xf32>
    %80 = math.exp %79 : vector<8x16xf32>
    %c0_46 = arith.constant 0 : index
    %c2_47 = arith.constant 2 : index
    %81 = vector.load %arg15[%c0_46, %c2_47] : memref<8x4xf32, #tpu.memory_space<vmem>>, vector<8x1xf32>
    %82 = arith.mulf %77, %81 : vector<8x1xf32>
    %cst_48 = arith.constant dense<0.000000e+00> : vector<8xf32>
    %83 = vector.multi_reduction <add>, %80, %cst_48 [1] : vector<8x16xf32> to vector<8xf32>
    %84 = vector.shape_cast %83 : vector<8xf32> to vector<8x1xf32>
    %85 = arith.addf %82, %84 : vector<8x1xf32>
    %c0_49 = arith.constant 0 : index
    %c2_50 = arith.constant 2 : index
    %86 = vector.load %arg15[%c0_49, %c2_50] : memref<8x4xf32, #tpu.memory_space<vmem>>, vector<8x1xf32>
    tpu.vector_store %arg15[%c0_49, %c2_50], %85 {strides = array<i32>} : memref<8x4xf32, #tpu.memory_space<vmem>>, vector<8x1xf32>,
    %c0_51 = arith.constant 0 : index
    %c16_52 = arith.constant 16 : index
    %87 = vector.load %arg13[%c0_51, %c16_52] : memref<8x32xf32, #tpu.memory_space<vmem>>, vector<8x8xf32>
    %88 = vector.broadcast %77 : vector<8x1xf32> to vector<8x8xf32>
    %89 = arith.mulf %88, %87 : vector<8x8xf32>
    %90 = arith.truncf %80 : vector<8x16xf32> to vector<8x16xbf16>
    %cst_53 = arith.constant dense<0.000000e+00> : vector<8x8xf32>
    %91 = tpu.matmul %90, %69, %cst_53 {dimension_numbers = #tpu.dot_dimension_numbers<[1], [0], [0], [1], [0, 0, 1, 1], [], []>} : vector<8x16xbf16>, vector<16x8xbf16>, vector<8x8xf32> -> vector<8x8xf32>
    %92 = arith.addf %89, %91 : vector<8x8xf32>
    %c0_54 = arith.constant 0 : index
    %c16_55 = arith.constant 16 : index
    %93 = vector.load %arg13[%c0_54, %c16_55] : memref<8x32xf32, #tpu.memory_space<vmem>>, vector<8x8xf32>
    tpu.vector_store %arg13[%c0_54, %c16_55], %92 {strides = array<i32>} : memref<8x32xf32, #tpu.memory_space<vmem>>, vector<8x8xf32>,
    %c0_56 = arith.constant 0 : index
    %c2_57 = arith.constant 2 : index
    %94 = vector.load %arg14[%c0_56, %c2_57] : memref<8x4xf32, #tpu.memory_space<vmem>>, vector<8x1xf32>
    tpu.vector_store %arg14[%c0_56, %c2_57], %75 {strides = array<i32>} : memref<8x4xf32, #tpu.memory_space<vmem>>, vector<8x1xf32>,
    %c0_58 = arith.constant 0 : index
    %c24 = arith.constant 24 : index
    %95 = vector.load %arg12[%c0_58, %c24] : memref<8x32xbf16, #tpu.memory_space<vmem>>, vector<8x8xbf16>
    %96 = vector.extract_strided_slice %4 {offsets = [0, 24], sizes = [16, 8], strides = [1, 1]} : vector<16x32xbf16> to vector<16x8xbf16>
    %97 = vector.extract_strided_slice %6 {offsets = [0, 24], sizes = [16, 8], strides = [1, 1]} : vector<16x32xbf16> to vector<16x8xbf16>
    %cst_59 = arith.constant dense<0.000000e+00> : vector<8x16xf32>
    %98 = tpu.matmul %95, %96, %cst_59 {dimension_numbers = #tpu.dot_dimension_numbers<[1], [1], [0], [0], [0, 0, 1, 0], [], []>} : vector<8x8xbf16>, vector<16x8xbf16>, vector<8x16xf32> -> vector<8x16xf32>
    %99 = arith.addf %98, %10 : vector<8x16xf32>
    %c0_60 = arith.constant 0 : index
    %c3 = arith.constant 3 : index
    %100 = vector.load %arg14[%c0_60, %c3] : memref<8x4xf32, #tpu.memory_space<vmem>>, vector<8x1xf32>
    %cst_61 = arith.constant dense<0xFF800000> : vector<8xf32>
    %101 = vector.multi_reduction <maximumf>, %99, %cst_61 [1] : vector<8x16xf32> to vector<8xf32>
    %102 = vector.shape_cast %101 : vector<8xf32> to vector<8x1xf32>
    %103 = arith.maximumf %100, %102 : vector<8x1xf32>
    %104 = arith.subf %100, %103 : vector<8x1xf32>
    %105 = math.exp %104 : vector<8x1xf32>
    %106 = vector.broadcast %103 : vector<8x1xf32> to vector<8x16xf32>
    %107 = arith.subf %99, %106 : vector<8x16xf32>
    %108 = math.exp %107 : vector<8x16xf32>
    %c0_62 = arith.constant 0 : index
    %c3_63 = arith.constant 3 : index
    %109 = vector.load %arg15[%c0_62, %c3_63] : memref<8x4xf32, #tpu.memory_space<vmem>>, vector<8x1xf32>
    %110 = arith.mulf %105, %109 : vector<8x1xf32>
    %cst_64 = arith.constant dense<0.000000e+00> : vector<8xf32>
    %111 = vector.multi_reduction <add>, %108, %cst_64 [1] : vector<8x16xf32> to vector<8xf32>
    %112 = vector.shape_cast %111 : vector<8xf32> to vector<8x1xf32>
    %113 = arith.addf %110, %112 : vector<8x1xf32>
    %c0_65 = arith.constant 0 : index
    %c3_66 = arith.constant 3 : index
    %114 = vector.load %arg15[%c0_65, %c3_66] : memref<8x4xf32, #tpu.memory_space<vmem>>, vector<8x1xf32>
    tpu.vector_store %arg15[%c0_65, %c3_66], %113 {strides = array<i32>} : memref<8x4xf32, #tpu.memory_space<vmem>>, vector<8x1xf32>,
    %c0_67 = arith.constant 0 : index
    %c24_68 = arith.constant 24 : index
    %115 = vector.load %arg13[%c0_67, %c24_68] : memref<8x32xf32, #tpu.memory_space<vmem>>, vector<8x8xf32>
    %116 = vector.broadcast %105 : vector<8x1xf32> to vector<8x8xf32>
    %117 = arith.mulf %116, %115 : vector<8x8xf32>
    %118 = arith.truncf %108 : vector<8x16xf32> to vector<8x16xbf16>
    %cst_69 = arith.constant dense<0.000000e+00> : vector<8x8xf32>
    %119 = tpu.matmul %118, %97, %cst_69 {dimension_numbers = #tpu.dot_dimension_numbers<[1], [0], [0], [1], [0, 0, 1, 1], [], []>} : vector<8x16xbf16>, vector<16x8xbf16>, vector<8x8xf32> -> vector<8x8xf32>
    %120 = arith.addf %117, %119 : vector<8x8xf32>
    %c0_70 = arith.constant 0 : index
    %c24_71 = arith.constant 24 : index
    %121 = vector.load %arg13[%c0_70, %c24_71] : memref<8x32xf32, #tpu.memory_space<vmem>>, vector<8x8xf32>
    tpu.vector_store %arg13[%c0_70, %c24_71], %120 {strides = array<i32>} : memref<8x32xf32, #tpu.memory_space<vmem>>, vector<8x8xf32>,
    %c0_72 = arith.constant 0 : index
    %c3_73 = arith.constant 3 : index
    %122 = vector.load %arg14[%c0_72, %c3_73] : memref<8x4xf32, #tpu.memory_space<vmem>>, vector<8x1xf32>
    tpu.vector_store %arg14[%c0_72, %c3_73], %103 {strides = array<i32>} : memref<8x4xf32, #tpu.memory_space<vmem>>, vector<8x1xf32>,
    %c0_i32_74 = arith.constant 0 : i32
    %123 = arith.cmpi eq, %arg2, %c0_i32_74 : i32
    %124 = arith.extui %123 : i1 to i32
    %c0_i32_75 = arith.constant 0 : i32
    %125 = arith.cmpi ne, %124, %c0_i32_75 : i32
    scf.if %125 {
      %c0_76 = arith.constant 0 : index
      %c0_77 = arith.constant 0 : index
      %126 = vector.load %arg15[%c0_76, %c0_77] : memref<8x4xf32, #tpu.memory_space<vmem>>, vector<8x1xf32>
      %127 = tpu.reciprocal %126 {approx = true} : vector<8x1xf32> -> vector<8x1xf32>
      %c0_78 = arith.constant 0 : index
      %c0_79 = arith.constant 0 : index
      %128 = vector.load %arg13[%c0_78, %c0_79] : memref<8x32xf32, #tpu.memory_space<vmem>>, vector<8x8xf32>
      %129 = vector.broadcast %127 : vector<8x1xf32> to vector<8x8xf32>
      %130 = arith.mulf %128, %129 : vector<8x8xf32>
      %131 = arith.truncf %130 : vector<8x8xf32> to vector<8x8xbf16>
      %c0_80 = arith.constant 0 : index
      %c0_81 = arith.constant 0 : index
      %132 = vector.load %arg16[%c0_80, %c0_81] : memref<8x32xbf16, #tpu.memory_space<vmem>>, vector<8x8xbf16>
      tpu.vector_store %arg16[%c0_80, %c0_81], %131 {strides = array<i32>} : memref<8x32xbf16, #tpu.memory_space<vmem>>, vector<8x8xbf16>,
      %c0_82 = arith.constant 0 : index
      %c1_83 = arith.constant 1 : index
      %133 = vector.load %arg15[%c0_82, %c1_83] : memref<8x4xf32, #tpu.memory_space<vmem>>, vector<8x1xf32>
      %134 = tpu.reciprocal %133 {approx = true} : vector<8x1xf32> -> vector<8x1xf32>
      %c0_84 = arith.constant 0 : index
      %c8_85 = arith.constant 8 : index
      %135 = vector.load %arg13[%c0_84, %c8_85] : memref<8x32xf32, #tpu.memory_space<vmem>>, vector<8x8xf32>
      %136 = vector.broadcast %134 : vector<8x1xf32> to vector<8x8xf32>
      %137 = arith.mulf %135, %136 : vector<8x8xf32>
      %138 = arith.truncf %137 : vector<8x8xf32> to vector<8x8xbf16>
      %c0_86 = arith.constant 0 : index
      %c8_87 = arith.constant 8 : index
      %139 = vector.load %arg16[%c0_86, %c8_87] : memref<8x32xbf16, #tpu.memory_space<vmem>>, vector<8x8xbf16>
      tpu.vector_store %arg16[%c0_86, %c8_87], %138 {strides = array<i32>} : memref<8x32xbf16, #tpu.memory_space<vmem>>, vector<8x8xbf16>,
      %c0_88 = arith.constant 0 : index
      %c2_89 = arith.constant 2 : index
      %140 = vector.load %arg15[%c0_88, %c2_89] : memref<8x4xf32, #tpu.memory_space<vmem>>, vector<8x1xf32>
      %141 = tpu.reciprocal %140 {approx = true} : vector<8x1xf32> -> vector<8x1xf32>
      %c0_90 = arith.constant 0 : index
      %c16_91 = arith.constant 16 : index
      %142 = vector.load %arg13[%c0_90, %c16_91] : memref<8x32xf32, #tpu.memory_space<vmem>>, vector<8x8xf32>
      %143 = vector.broadcast %141 : vector<8x1xf32> to vector<8x8xf32>
      %144 = arith.mulf %142, %143 : vector<8x8xf32>
      %145 = arith.truncf %144 : vector<8x8xf32> to vector<8x8xbf16>
      %c0_92 = arith.constant 0 : index
      %c16_93 = arith.constant 16 : index
      %146 = vector.load %arg16[%c0_92, %c16_93] : memref<8x32xbf16, #tpu.memory_space<vmem>>, vector<8x8xbf16>
      tpu.vector_store %arg16[%c0_92, %c16_93], %145 {strides = array<i32>} : memref<8x32xbf16, #tpu.memory_space<vmem>>, vector<8x8xbf16>,
      %c0_94 = arith.constant 0 : index
      %c3_95 = arith.constant 3 : index
      %147 = vector.load %arg15[%c0_94, %c3_95] : memref<8x4xf32, #tpu.memory_space<vmem>>, vector<8x1xf32>
      %148 = tpu.reciprocal %147 {approx = true} : vector<8x1xf32> -> vector<8x1xf32>
      %c0_96 = arith.constant 0 : index
      %c24_97 = arith.constant 24 : index
      %149 = vector.load %arg13[%c0_96, %c24_97] : memref<8x32xf32, #tpu.memory_space<vmem>>, vector<8x8xf32>
      %150 = vector.broadcast %148 : vector<8x1xf32> to vector<8x8xf32>
      %151 = arith.mulf %149, %150 : vector<8x8xf32>
      %152 = arith.truncf %151 : vector<8x8xf32> to vector<8x8xbf16>
      %c0_98 = arith.constant 0 : index
      %c24_99 = arith.constant 24 : index
      %153 = vector.load %arg16[%c0_98, %c24_99] : memref<8x32xbf16, #tpu.memory_space<vmem>>, vector<8x8xbf16>
      tpu.vector_store %arg16[%c0_98, %c24_99], %152 {strides = array<i32>} : memref<8x32xbf16, #tpu.memory_space<vmem>>, vector<8x8xbf16>,
      %c0_100 = arith.constant 0 : index
      %c0_101 = arith.constant 0 : index
      %154 = vector.load %arg16[%c0_100, %c0_101] : memref<8x32xbf16, #tpu.memory_space<vmem>>, vector<8x32xbf16>
      %c0_102 = arith.constant 0 : index
      %c0_103 = arith.constant 0 : index
      %155 = vector.load %arg9[%c0_102, %c0_103] : memref<32x32xbf16, #tpu.memory_space<vmem>>, vector<32x32xbf16>
      %cst_104 = arith.constant dense<0.000000e+00> : vector<8x32xf32>
      %156 = tpu.matmul %154, %155, %cst_104 {dimension_numbers = #tpu.dot_dimension_numbers<[1], [0], [0], [1], [0, 0, 1, 1], [], []>} : vector<8x32xbf16>, vector<32x32xbf16>, vector<8x32xf32> -> vector<8x32xf32>
      %c0_105 = arith.constant 0 : index
      %c0_106 = arith.constant 0 : index
      %157 = vector.load %arg10[%c0_105, %c0_106] : memref<1x32xf32, #tpu.memory_space<vmem>>, vector<1x32xf32>
      %158 = vector.broadcast %157 : vector<1x32xf32> to vector<8x32xf32>
      %159 = arith.addf %156, %158 : vector<8x32xf32>
      %c0_107 = arith.constant 0 : index
      %c0_108 = arith.constant 0 : index
      %c0_109 = arith.constant 0 : index
      %160 = vector.load %arg11[%c0_107, %c0_108, %c0_109] : memref<1x8x32xf32, #tpu.memory_space<vmem>>, vector<1x8x32xf32>
      %161 = vector.shape_cast %160 : vector<1x8x32xf32> to vector<8x32xf32>
      %162 = vector.shape_cast %159 : vector<8x32xf32> to vector<1x8x32xf32>
      tpu.vector_store %arg11[%c0_107, %c0_108, %c0_109], %162 {strides = array<i32>} : memref<1x8x32xf32, #tpu.memory_space<vmem>>, vector<1x8x32xf32>,
    } else {
    }
    return
  }
  func.func @transform_0(%arg0: i32, %arg1: i32, %arg2: i32) -> (i32, i32, i32) {
    %c0_i32 = arith.constant 0 : i32
    %c0_i32_0 = arith.constant 0 : i32
    return %arg0, %arg1, %c0_i32 : i32, i32, i32
  }
  func.func @transform_1(%arg0: i32, %arg1: i32, %arg2: i32) -> (i32, i32, i32) {
    %c0_i32 = arith.constant 0 : i32
    %c0_i32_0 = arith.constant 0 : i32
    return %arg0, %arg2, %c0_i32 : i32, i32, i32
  }
  func.func @transform_2(%arg0: i32, %arg1: i32, %arg2: i32) -> (i32, i32, i32) {
    %c0_i32 = arith.constant 0 : i32
    %c0_i32_0 = arith.constant 0 : i32
    return %arg0, %arg2, %c0_i32 : i32, i32, i32
  }
  func.func @transform_3(%arg0: i32, %arg1: i32, %arg2: i32) -> (i32, i32, i32) {
    %c0_i32 = arith.constant 0 : i32
    %c0_i32_0 = arith.constant 0 : i32
    return %arg0, %c0_i32, %arg2 : i32, i32, i32
  }
  func.func @transform_4(%arg0: i32, %arg1: i32, %arg2: i32) -> (i32, i32) {
    %c0_i32 = arith.constant 0 : i32
    %c0_i32_0 = arith.constant 0 : i32
    %c0_i32_1 = arith.constant 0 : i32
    return %c0_i32, %c0_i32_0 : i32, i32
  }
  func.func @transform_5(%arg0: i32, %arg1: i32, %arg2: i32) -> (i32, i32) {
    %c0_i32 = arith.constant 0 : i32
    %c0_i32_0 = arith.constant 0 : i32
    %c0_i32_1 = arith.constant 0 : i32
    return %c0_i32, %c0_i32_0 : i32, i32
  }
  func.func @transform_6(%arg0: i32, %arg1: i32, %arg2: i32) -> (i32, i32) {
    %c0_i32 = arith.constant 0 : i32
    %c0_i32_0 = arith.constant 0 : i32
    %c0_i32_1 = arith.constant 0 : i32
    return %c0_i32, %c0_i32_0 : i32, i32
  }
  func.func @transform_7(%arg0: i32, %arg1: i32, %arg2: i32) -> (i32, i32) {
    %c0_i32 = arith.constant 0 : i32
    %c0_i32_0 = arith.constant 0 : i32
    %c0_i32_1 = arith.constant 0 : i32
    return %c0_i32, %c0_i32_0 : i32, i32
  }
  func.func @transform_8(%arg0: i32, %arg1: i32, %arg2: i32) -> (i32, i32, i32) {
    %c0_i32 = arith.constant 0 : i32
    %c0_i32_0 = arith.constant 0 : i32
    return %arg0, %arg1, %c0_i32 : i32, i32, i32
  }
}

</mosaic_0001>

<llo_original>
// kernel: _cross_attention_impl.1
$region0: #{_cross_attention_impl.1}
  #allocation0 [shape = 'u32[]', space=smem, size = 0x4, offset = 0x4, fixed_abs, tag = 'smem constant byte address 0x4 - core index']
  #allocation1 [shape = 'u32[144,128]{1,0:T(1,128)}', space=vmem, size = 0x12000, scoped, tag = 'internal scratch']
  #allocation2 [shape = 'bf16[8,32]{1,0:T(8,128)(2,1)}', space=vmem, size = 0x800, scoped, tag = 'scratch operand']
  #allocation3 [shape = 'f32[8,32]{1,0:T(8,128)}', space=vmem, size = 0x1000, scoped, tag = 'scratch operand']
  #allocation4 [shape = 'f32[8,4]{1,0:T(8,128)}', space=vmem, size = 0x1000, scoped, tag = 'scratch operand']
  #allocation5 [shape = 'f32[8,4]{1,0:T(8,128)}', space=vmem, size = 0x1000, scoped, tag = 'scratch operand']
  #allocation6 [shape = 'bf16[8,32]{1,0:T(8,128)(2,1)}', space=vmem, size = 0x800, scoped, tag = 'scratch operand']
  %s0 = inlined_call_operand.vmem [shape: bf16[2,8,32], index: 0, kind: input, shape index: {}]
  %s1 = inlined_call_operand.vmem [shape: bf16[2,16,32], index: 1, kind: input, shape index: {}]
  %s2 = inlined_call_operand.vmem [shape: bf16[2,16,32], index: 2, kind: input, shape index: {}]
  %s3 = inlined_call_operand.vmem [shape: f32[2,1,16], index: 3, kind: input, shape index: {}]
  %s4 = inlined_call_operand.vmem [shape: bf16[32,32], index: 4, kind: input, shape index: {}]
  %s5 = inlined_call_operand.vmem [shape: f32[1,32], index: 5, kind: input, shape index: {}]
  %s6 = inlined_call_operand.vmem [shape: bf16[32,32], index: 6, kind: input, shape index: {}]
  %s7 = inlined_call_operand.vmem [shape: f32[1,32], index: 7, kind: input, shape index: {}]
  %s8 = inlined_call_operand.hbm [shape: f32[2,8,32], index: 8, kind: output, shape index: {}]
  %s9 = sld [smem:[#allocation0]]
  $region73: #{_cross_attention_impl.1} parent=0
    _
  %s11 = ssub.s32 1, %s9
  %s12 = scalar_select 0, %s11, %s9
  $region1: #{_cross_attention_impl.1} parent=0
    #allocation7 [shape = 'u8[8192]{0}', space=vmem, size = 0x2000, scoped, tag = 'output window, operand 0']
    #allocation8 [shape = 's32[2]{0}', space=sflag, size = 0x8, scoped, tag = 'scoped memory for _cross_attention_impl.1']
    %13 = vsyncpa [#allocation8], 0
    %s14 = scalar_lea.sflag [#allocation8], 1
    %15 = vsyncpa %s14, 0
    loop: start=0, step=1, limit=4
    $region2: #{_cross_attention_impl.1} parent=1 // loop_pre_header
      _
    $region3: #{_cross_attention_impl.1} parent=1 // loop_header
      %s17 = sphi 0, %s21
      %p18 = scmp.ge.s32.totalorder %s17, 4
      %s24 = sphi 0, %s43
      %s25 = sphi 0, %s39
      %s26 = sphi 0, %s35
      %s27 = sphi 0, %s24
      %s28 = sphi 0, %s25
      %s29 = sphi 0, %s26
      %s30 = sphi 0, %s27
      %s31 = sphi 0, %s28
      %s32 = sphi 0, %s29
      %s48 = sphi 0, %s50
      %s51 = sphi 0, %s48
      %s52 = sphi 0, %s51
      %s68 = sphi 0, %s52
      %s76 = sphi 0, %s78
      %s79 = sphi 0, %s76
      %s80 = sphi 0, %s79
      %s96 = sphi 0, %s80
      %s104 = sphi 0, %s106
      %s107 = sphi 0, %s104
      %s108 = sphi 0, %s107
      %s124 = sphi 0, %s108
      %s132 = sphi 0, %s134
      %s135 = sphi 0, %s132
      %s136 = sphi 0, %s135
      %s152 = sphi 0, %s136
      %s156 = sphi 0, %s156
      %s158 = sphi 0, %s156
      %s159 = sphi 0, %s158
      %s173 = sphi 0, %s159
      %s177 = sphi 0, %s177
      %s179 = sphi 0, %s177
      %s180 = sphi 0, %s179
      %s194 = sphi 0, %s180
      %s198 = sphi 0, %s198
      %s200 = sphi 0, %s198
      %s201 = sphi 0, %s200
      %s215 = sphi 0, %s201
      %s219 = sphi 0, %s219
      %s221 = sphi 0, %s219
      %s222 = sphi 0, %s221
      %s236 = sphi 0, %s222
      %s244 = sphi 0, %s246
      %s247 = sphi 0, %s244
      %s248 = sphi 0, %s247
      %s264 = sphi 0, %s248
    $region4: #{_cross_attention_impl.1} parent=1 // loop_header_branch
      %20 = sbr.rel (%p18) target = $region8
    $region5: #{_cross_attention_impl.1} parent=1 // loop_body
      %s22 = ssub.s32 %s17, 1
      %s23 = ssub.s32 %s17, 2
      %s33 = sadd.s32 1, %s26
      %p34 = scmp.ge.s32.totalorder %s33, 1
      %s35 = scalar_select %p34, 0, %s33
      %s36 = sadd.s32 1, %s25
      %s37 = scalar_select %p34, %s36, %s25
      %p38 = scmp.ge.s32.totalorder %s37, 1
      %s39 = scalar_select %p38, 0, %s37
      %s40 = sadd.s32 1, %s24
      %s41 = scalar_select %p38, %s40, %s24
      %p42 = scmp.ge.s32.totalorder %s41, 2
      %s43 = scalar_select %p42, 0, %s41
      %s44 = ssub.s32 %s24, %s43
      %s45 = ssub.s32 %s25, %s39
      %s46 = sor.u32 %s44, %s45
      %p47 = scmp.eq.s32.totalorder %s46, 0
      %s49 = sadd.s32 %s48, 1
      %s50 = scalar_select %p47, %s48, %s49
      %p53 = pneg %p47
      %p54 = scmp.eq.s32.totalorder %s17, 1
      %p55 = por %p53, %p54
      %p56 = scmp.ne.s32.totalorder %s48, %s51
      %p57 = scmp.eq.s32.totalorder %s17, 0
      %p58 = por %p56, %p57
      %p59 = scmp.ne.s32.totalorder %s48, %s51
      %p60 = scmp.eq.s32.totalorder %s22, 1
      %p61 = por %p59, %p60
      %p62 = scmp.ne.s32.totalorder %s51, %s52
      %p63 = scmp.eq.s32.totalorder %s22, 0
      %p64 = por %p62, %p63
      %p65 = scmp.ne.s32.totalorder %s51, %s52
      %p66 = scmp.eq.s32.totalorder %s23, 1
      %p67 = por %p65, %p66
      %p69 = scmp.ne.s32.totalorder %s52, %s68
      %p70 = scmp.eq.s32.totalorder %s23, 0
      %p71 = por %p69, %p70
      %s72 = ssub.s32 %s24, %s43
      %s73 = ssub.s32 %s26, %s35
      %s74 = sor.u32 %s72, %s73
      %p75 = scmp.eq.s32.totalorder %s74, 0
      %s77 = sadd.s32 %s76, 1
      %s78 = scalar_select %p75, %s76, %s77
      %p81 = pneg %p75
      %p82 = scmp.eq.s32.totalorder %s17, 1
      %p83 = por %p81, %p82
      %p84 = scmp.ne.s32.totalorder %s76, %s79
      %p85 = scmp.eq.s32.totalorder %s17, 0
      %p86 = por %p84, %p85
      %p87 = scmp.ne.s32.totalorder %s76, %s79
      %p88 = scmp.eq.s32.totalorder %s22, 1
      %p89 = por %p87, %p88
      %p90 = scmp.ne.s32.totalorder %s79, %s80
      %p91 = scmp.eq.s32.totalorder %s22, 0
      %p92 = por %p90, %p91
      %p93 = scmp.ne.s32.totalorder %s79, %s80
      %p94 = scmp.eq.s32.totalorder %s23, 1
      %p95 = por %p93, %p94
      %p97 = scmp.ne.s32.totalorder %s80, %s96
      %p98 = scmp.eq.s32.totalorder %s23, 0
      %p99 = por %p97, %p98
      %s100 = ssub.s32 %s24, %s43
      %s101 = ssub.s32 %s26, %s35
      %s102 = sor.u32 %s100, %s101
      %p103 = scmp.eq.s32.totalorder %s102, 0
      %s105 = sadd.s32 %s104, 1
      %s106 = scalar_select %p103, %s104, %s105
      %p109 = pneg %p103
      %p110 = scmp.eq.s32.totalorder %s17, 1
      %p111 = por %p109, %p110
      %p112 = scmp.ne.s32.totalorder %s104, %s107
      %p113 = scmp.eq.s32.totalorder %s17, 0
      %p114 = por %p112, %p113
      %p115 = scmp.ne.s32.totalorder %s104, %s107
      %p116 = scmp.eq.s32.totalorder %s22, 1
      %p117 = por %p115, %p116
      %p118 = scmp.ne.s32.totalorder %s107, %s108
      %p119 = scmp.eq.s32.totalorder %s22, 0
      %p120 = por %p118, %p119
      %p121 = scmp.ne.s32.totalorder %s107, %s108
      %p122 = scmp.eq.s32.totalorder %s23, 1
      %p123 = por %p121, %p122
      %p125 = scmp.ne.s32.totalorder %s108, %s124
      %p126 = scmp.eq.s32.totalorder %s23, 0
      %p127 = por %p125, %p126
      %s128 = ssub.s32 %s24, %s43
      %s129 = ssub.s32 %s26, %s35
      %s130 = sor.u32 %s128, %s129
      %p131 = scmp.eq.s32.totalorder %s130, 0
      %s133 = sadd.s32 %s132, 1
      %s134 = scalar_select %p131, %s132, %s133
      %p137 = pneg %p131
      %p138 = scmp.eq.s32.totalorder %s17, 1
      %p139 = por %p137, %p138
      %p140 = scmp.ne.s32.totalorder %s132, %s135
      %p141 = scmp.eq.s32.totalorder %s17, 0
      %p142 = por %p140, %p141
      %p143 = scmp.ne.s32.totalorder %s132, %s135
      %p144 = scmp.eq.s32.totalorder %s22, 1
      %p145 = por %p143, %p144
      %p146 = scmp.ne.s32.totalorder %s135, %s136
      %p147 = scmp.eq.s32.totalorder %s22, 0
      %p148 = por %p146, %p147
      %p149 = scmp.ne.s32.totalorder %s135, %s136
      %p150 = scmp.eq.s32.totalorder %s23, 1
      %p151 = por %p149, %p150
      %p153 = scmp.ne.s32.totalorder %s136, %s152
      %p154 = scmp.eq.s32.totalorder %s23, 0
      %p155 = por %p153, %p154
      %s157 = sadd.s32 %s156, 1
      %p160 = scmp.eq.s32.totalorder %s17, 1
      %p161 = scmp.ne.s32.totalorder %s156, %s158
      %p162 = scmp.eq.s32.totalorder %s17, 0
      %p163 = por %p161, %p162
      %p164 = scmp.ne.s32.totalorder %s156, %s158
      %p165 = scmp.eq.s32.totalorder %s22, 1
      %p166 = por %p164, %p165
      %p167 = scmp.ne.s32.totalorder %s158, %s159
      %p168 = scmp.eq.s32.totalorder %s22, 0
      %p169 = por %p167, %p168
      %p170 = scmp.ne.s32.totalorder %s158, %s159
      %p171 = scmp.eq.s32.totalorder %s23, 1
      %p172 = por %p170, %p171
      %p174 = scmp.ne.s32.totalorder %s159, %s173
      %p175 = scmp.eq.s32.totalorder %s23, 0
      %p176 = por %p174, %p175
      %s178 = sadd.s32 %s177, 1
      %p181 = scmp.eq.s32.totalorder %s17, 1
      %p182 = scmp.ne.s32.totalorder %s177, %s179
      %p183 = scmp.eq.s32.totalorder %s17, 0
      %p184 = por %p182, %p183
      %p185 = scmp.ne.s32.totalorder %s177, %s179
      %p186 = scmp.eq.s32.totalorder %s22, 1
      %p187 = por %p185, %p186
      %p188 = scmp.ne.s32.totalorder %s179, %s180
      %p189 = scmp.eq.s32.totalorder %s22, 0
      %p190 = por %p188, %p189
      %p191 = scmp.ne.s32.totalorder %s179, %s180
      %p192 = scmp.eq.s32.totalorder %s23, 1
      %p193 = por %p191, %p192
      %p195 = scmp.ne.s32.totalorder %s180, %s194
      %p196 = scmp.eq.s32.totalorder %s23, 0
      %p197 = por %p195, %p196
      %s199 = sadd.s32 %s198, 1
      %p202 = scmp.eq.s32.totalorder %s17, 1
      %p203 = scmp.ne.s32.totalorder %s198, %s200
      %p204 = scmp.eq.s32.totalorder %s17, 0
      %p205 = por %p203, %p204
      %p206 = scmp.ne.s32.totalorder %s198, %s200
      %p207 = scmp.eq.s32.totalorder %s22, 1
      %p208 = por %p206, %p207
      %p209 = scmp.ne.s32.totalorder %s200, %s201
      %p210 = scmp.eq.s32.totalorder %s22, 0
      %p211 = por %p209, %p210
      %p212 = scmp.ne.s32.totalorder %s200, %s201
      %p213 = scmp.eq.s32.totalorder %s23, 1
      %p214 = por %p212, %p213
      %p216 = scmp.ne.s32.totalorder %s201, %s215
      %p217 = scmp.eq.s32.totalorder %s23, 0
      %p218 = por %p216, %p217
      %s220 = sadd.s32 %s219, 1
      %p223 = scmp.eq.s32.totalorder %s17, 1
      %p224 = scmp.ne.s32.totalorder %s219, %s221
      %p225 = scmp.eq.s32.totalorder %s17, 0
      %p226 = por %p224, %p225
      %p227 = scmp.ne.s32.totalorder %s219, %s221
      %p228 = scmp.eq.s32.totalorder %s22, 1
      %p229 = por %p227, %p228
      %p230 = scmp.ne.s32.totalorder %s221, %s222
      %p231 = scmp.eq.s32.totalorder %s22, 0
      %p232 = por %p230, %p231
      %p233 = scmp.ne.s32.totalorder %s221, %s222
      %p234 = scmp.eq.s32.totalorder %s23, 1
      %p235 = por %p233, %p234
      %p237 = scmp.ne.s32.totalorder %s222, %s236
      %p238 = scmp.eq.s32.totalorder %s23, 0
      %p239 = por %p237, %p238
      %s240 = ssub.s32 %s24, %s43
      %s241 = ssub.s32 %s25, %s39
      %s242 = sor.u32 %s240, %s241
      %p243 = scmp.eq.s32.totalorder %s242, 0
      %s245 = sadd.s32 %s244, 1
      %s246 = scalar_select %p243, %s244, %s245
      %p249 = pneg %p243
      %p250 = scmp.eq.s32.totalorder %s17, 1
      %p251 = por %p249, %p250
      %p252 = scmp.ne.s32.totalorder %s244, %s247
      %p253 = scmp.eq.s32.totalorder %s17, 0
      %p254 = por %p252, %p253
      %p255 = scmp.ne.s32.totalorder %s244, %s247
      %p256 = scmp.eq.s32.totalorder %s22, 1
      %p257 = por %p255, %p256
      %p258 = scmp.ne.s32.totalorder %s247, %s248
      %p259 = scmp.eq.s32.totalorder %s22, 0
      %p260 = por %p258, %p259
      %p261 = scmp.ne.s32.totalorder %s247, %s248
      %p262 = scmp.eq.s32.totalorder %s23, 1
      %p263 = por %p261, %p262
      %p265 = scmp.ne.s32.totalorder %s248, %s264
      %p266 = scmp.eq.s32.totalorder %s23, 0
      %p267 = por %p265, %p266
      %p268 = scmp.le.s32.totalorder 1, %s17
      %p269 = scmp.lt.s32.totalorder %s17, 3
      %p270 = pnand %p268, %p269
      %p271 = pneg %p270
      // Predicated region
      $region9: #{_cross_attention_impl.1} parent=5 // pred_check
        _
      $region10: #{_cross_attention_impl.1} parent=5 // pred_check_branch
        %273 = sbr.rel (%p270) target = $region12
      $region11: #{_cross_attention_impl.1} parent=5 // pred_region
        %s274 = ssub.s32 %s17, 1
        // Predicated region
        $region13: #{_cross_attention_impl.1} parent=11 // pred_check
          %p275 = pneg %p169
        $region14: #{_cross_attention_impl.1} parent=11 // pred_check_branch
          %277 = sbr.rel (%p275) target = $region16
        $region15: #{_cross_attention_impl.1} parent=11 // pred_region
          _
        $region16: #{_cross_attention_impl.1} parent=11 // pred_fallthru
          _
        // Predicated region
        $region17: #{_cross_attention_impl.1} parent=11 // pred_check
          %p278 = pneg %p190
        $region18: #{_cross_attention_impl.1} parent=11 // pred_check_branch
          %280 = sbr.rel (%p278) target = $region20
        $region19: #{_cross_attention_impl.1} parent=11 // pred_region
          _
        $region20: #{_cross_attention_impl.1} parent=11 // pred_fallthru
          _
        // Predicated region
        $region21: #{_cross_attention_impl.1} parent=11 // pred_check
          %p281 = pneg %p211
        $region22: #{_cross_attention_impl.1} parent=11 // pred_check_branch
          %283 = sbr.rel (%p281) target = $region24
        $region23: #{_cross_attention_impl.1} parent=11 // pred_region
          _
        $region24: #{_cross_attention_impl.1} parent=11 // pred_fallthru
          _
        // Predicated region
        $region25: #{_cross_attention_impl.1} parent=11 // pred_check
          %p284 = pneg %p232
        $region26: #{_cross_attention_impl.1} parent=11 // pred_check_branch
          %286 = sbr.rel (%p284) target = $region28
        $region27: #{_cross_attention_impl.1} parent=11 // pred_region
          _
        $region28: #{_cross_attention_impl.1} parent=11 // pred_fallthru
          _
      $region12: #{_cross_attention_impl.1} parent=5 // pred_fallthru
        _
      %p287 = scmp.lt.s32.totalorder %s17, 2
      // Predicated region
      $region29: #{_cross_attention_impl.1} parent=5 // pred_check
        %p288 = pneg %p287
      $region30: #{_cross_attention_impl.1} parent=5 // pred_check_branch
        %290 = sbr.rel (%p288) target = $region32
      $region31: #{_cross_attention_impl.1} parent=5 // pred_region
        // Predicated region
        $region33: #{_cross_attention_impl.1} parent=31 // pred_check
          %p291 = pneg %p58
        $region34: #{_cross_attention_impl.1} parent=31 // pred_check_branch
          %293 = sbr.rel (%p291) target = $region36
        $region35: #{_cross_attention_impl.1} parent=31 // pred_region
          %p294 = scmp.lt.s32.totalorder %s24, 1
          %s295 = scalar_select %p294, %s24, 1
          %p296 = scmp.lt.s32.totalorder %s25, 0
          %s297 = scalar_select %p296, %s25, 0
          %s298 = sadd.s32 %s297, %s295
          %s299 = smul.addr %s298, 4
          %s300 = scalar_lea.vmem %s0, %s299
        $region36: #{_cross_attention_impl.1} parent=31 // pred_fallthru
          _
        // Predicated region
        $region37: #{_cross_attention_impl.1} parent=31 // pred_check
          %p301 = pneg %p86
        $region38: #{_cross_attention_impl.1} parent=31 // pred_check_branch
          %303 = sbr.rel (%p301) target = $region40
        $region39: #{_cross_attention_impl.1} parent=31 // pred_region
          %s304 = smul.u32 2, %s26
          %p305 = scmp.lt.s32.totalorder %s24, 1
          %s306 = scalar_select %p305, %s24, 1
          %p307 = scmp.lt.s32.totalorder %s304, 1
          %s308 = scalar_select %p307, %s304, 1
          %s309 = smul.addr %s306, 2
          %s310 = sadd.s32 %s308, %s309
          %s311 = smul.addr %s310, 4
          %s312 = scalar_lea.vmem %s1, %s311
          %s313 = smul.u32 2, %s26
        $region40: #{_cross_attention_impl.1} parent=31 // pred_fallthru
          _
        // Predicated region
        $region41: #{_cross_attention_impl.1} parent=31 // pred_check
          %p314 = pneg %p114
        $region42: #{_cross_attention_impl.1} parent=31 // pred_check_branch
          %316 = sbr.rel (%p314) target = $region44
        $region43: #{_cross_attention_impl.1} parent=31 // pred_region
          %s317 = smul.u32 2, %s26
          %p318 = scmp.lt.s32.totalorder %s24, 1
          %s319 = scalar_select %p318, %s24, 1
          %p320 = scmp.lt.s32.totalorder %s317, 1
          %s321 = scalar_select %p320, %s317, 1
          %s322 = smul.addr %s319, 2
          %s323 = sadd.s32 %s321, %s322
          %s324 = smul.addr %s323, 4
          %s325 = scalar_lea.vmem %s2, %s324
          %s326 = smul.u32 2, %s26
        $region44: #{_cross_attention_impl.1} parent=31 // pred_fallthru
          _
        // Predicated region
        $region45: #{_cross_attention_impl.1} parent=31 // pred_check
          %p327 = pneg %p142
        $region46: #{_cross_attention_impl.1} parent=31 // pred_check_branch
          %329 = sbr.rel (%p327) target = $region48
        $region47: #{_cross_attention_impl.1} parent=31 // pred_region
          %p330 = scmp.lt.s32.totalorder %s24, 1
          %s331 = scalar_select %p330, %s24, 1
          %p332 = scmp.lt.s32.totalorder %s26, 0
          %s333 = scalar_select %p332, %s26, 0
          %s334 = sadd.s32 %s333, %s331
          %s335 = scalar_lea.vmem %s3, %s334
        $region48: #{_cross_attention_impl.1} parent=31 // pred_fallthru
          _
      $region32: #{_cross_attention_impl.1} parent=5 // pred_fallthru
        _
      %p336 = scmp.le.s32.totalorder 1, %s17
      %p337 = scmp.lt.s32.totalorder %s17, 3
      %p338 = pnand %p336, %p337
      %p339 = pneg %p338
      // Predicated region
      $region49: #{_cross_attention_impl.1} parent=5 // pred_check
        _
      $region50: #{_cross_attention_impl.1} parent=5 // pred_check_branch
        %341 = sbr.rel (%p338) target = $region52
      $region51: #{_cross_attention_impl.1} parent=5 // pred_region
        %s342 = ssub.s32 %s17, 1
        %p343 = scmp.lt.s32.totalorder %s27, 1
        %s344 = scalar_select %p343, %s27, 1
        %p345 = scmp.lt.s32.totalorder %s28, 0
        %s346 = scalar_select %p345, %s28, 0
        %s347 = sadd.s32 %s346, %s344
        %s348 = smul.addr %s347, 4
        %s349 = scalar_lea.vmem %s0, %s348
        %p350 = pneg %p64
        %p351 = pneg %p61
        %s352 = smul.u32 2, %s29
        %p353 = scmp.lt.s32.totalorder %s27, 1
        %s354 = scalar_select %p353, %s27, 1
        %p355 = scmp.lt.s32.totalorder %s352, 1
        %s356 = scalar_select %p355, %s352, 1
        %s357 = smul.addr %s354, 2
        %s358 = sadd.s32 %s356, %s357
        %s359 = smul.addr %s358, 4
        %s360 = scalar_lea.vmem %s1, %s359
        %p361 = pneg %p92
        %p362 = pneg %p89
        %s363 = smul.u32 2, %s29
        %p364 = scmp.lt.s32.totalorder %s27, 1
        %s365 = scalar_select %p364, %s27, 1
        %p366 = scmp.lt.s32.totalorder %s363, 1
        %s367 = scalar_select %p366, %s363, 1
        %s368 = smul.addr %s365, 2
        %s369 = sadd.s32 %s367, %s368
        %s370 = smul.addr %s369, 4
        %s371 = scalar_lea.vmem %s2, %s370
        %p372 = pneg %p120
        %p373 = pneg %p117
        %p374 = scmp.lt.s32.totalorder %s27, 1
        %s375 = scalar_select %p374, %s27, 1
        %p376 = scmp.lt.s32.totalorder %s29, 0
        %s377 = scalar_select %p376, %s29, 0
        %s378 = sadd.s32 %s377, %s375
        %s379 = scalar_lea.vmem %s3, %s378
        %p380 = pneg %p148
        %p381 = pneg %p145
        %p382 = pneg %p169
        %p383 = pneg %p166
        %p384 = pneg %p190
        %p385 = pneg %p187
        %p386 = pneg %p211
        %p387 = pneg %p208
        %p388 = pneg %p232
        %p389 = pneg %p229
        %p390 = pneg %p260
        %p391 = pneg %p257
        %s392 = sand.u32 %s247, 1
        %s393 = scalar_lea.sflag [#allocation8], %s392
        %s394 = sand.u32 %s247, 1
        %s395 = smul.addr %s394, 8
        %s396 = scalar_lea.vmem [#allocation7], %s395
        %p397 = scmp.lt.s32.totalorder %s27, 1
        %s398 = scalar_select %p397, %s27, 1
        %p399 = scmp.lt.s32.totalorder %s28, 0
        %s400 = scalar_select %p399, %s28, 0
        %s401 = sadd.s32 %s400, %s398
        %s402 = smul.addr %s401, 4
        %s403 = scalar_lea.vmem %s0, %s402
        %s404 = smul.u32 2, %s29
        %p405 = scmp.lt.s32.totalorder %s27, 1
        %s406 = scalar_select %p405, %s27, 1
        %p407 = scmp.lt.s32.totalorder %s404, 1
        %s408 = scalar_select %p407, %s404, 1
        %s409 = smul.addr %s406, 2
        %s410 = sadd.s32 %s408, %s409
        %s411 = smul.addr %s410, 4
        %s412 = scalar_lea.vmem %s1, %s411
        %s413 = smul.u32 2, %s29
        %s414 = smul.u32 2, %s29
        %p415 = scmp.lt.s32.totalorder %s27, 1
        %s416 = scalar_select %p415, %s27, 1
        %p417 = scmp.lt.s32.totalorder %s414, 1
        %s418 = scalar_select %p417, %s414, 1
        %s419 = smul.addr %s416, 2
        %s420 = sadd.s32 %s418, %s419
        %s421 = smul.addr %s420, 4
        %s422 = scalar_lea.vmem %s2, %s421
        %s423 = smul.u32 2, %s29
        %p424 = scmp.lt.s32.totalorder %s27, 1
        %s425 = scalar_select %p424, %s27, 1
        %p426 = scmp.lt.s32.totalorder %s29, 0
        %s427 = scalar_select %p426, %s29, 0
        %s428 = sadd.s32 %s427, %s425
        %s429 = scalar_lea.vmem %s3, %s428
        %p431 = scmp.eq.s32.totalorder %s29, 0
        // Predicated region
        $region53: #{_cross_attention_impl.1} parent=51 // pred_check
          %p432 = pneg %p431
        $region54: #{_cross_attention_impl.1} parent=51 // pred_check_branch
          %434 = sbr.rel (%p432) target = $region56
        $region55: #{_cross_attention_impl.1} parent=51 // pred_region
          %v435 = vld [vmem:[%s403] sm:$0xf]
          %v436 = vld [vmem:[%s4] sm:$0xf]
          %v437 = vld [vmem:[%s4 + $0x4] sm:$0xf]
          %v438 = vld [vmem:[%s4 + $0x8] sm:$0xf]
          %v439 = vld [vmem:[%s4 + $0xc] sm:$0xf]
          %v440 = vld [vmem:[%s5] sm:$0x1]
          %v442 = vlaneseq
          %v443 = vshrl.u32 %v442, 7
          %v444 = vsub.s32 0, %v443
          %v445 = vrot.slane %v440, %v444
          %v451 = vunpack.c.l.b16 %v436
          %v452 = vunpack.c.l.b16 %v437
          %v453 = vunpack.c.l.b16 %v438
          %v454 = vunpack.c.l.b16 %v439
          %v455 = vpack.c.b16 %v452, %v451
          %v456 = vpack.c.b16 %v454, %v453
          %vm459 = vcmask 261120
          %v461 = vsel %vm459, %v435, 0
          %463 = vmatprep.subr.bf16.mxu0 0
          %464 = vmatpush1.bf16.msra.mxu0 %v455
          %465 = vmatprep.subr.bf16.mxu0 0
          %466 = vmatpush1.bf16.msra.mxu0 %v456
          %467 = vmatprep.subr.bf16.mxu0 0
          %468 = vmatpush1.bf16.msra.mxu0 0
          %469 = vmatprep.subr.bf16.mxu0 0
          %470 = vmatpush1.bf16.msra.mxu0 0
          %471 = vmatprep.subr.bf16.mxu0 0
          %472 = vmatpush1.bf16.msra.mxu0 0
          %473 = vmatprep.subr.bf16.mxu0 0
          %474 = vmatpush1.bf16.msra.mxu0 0
          %475 = vmatprep.subr.bf16.mxu0 0
          %476 = vmatpush1.bf16.msra.mxu0 0
          %477 = vmatprep.subr.bf16.mxu0 0
          %478 = vmatpush1.bf16.msra.mxu0 0
          %479 = vmatprep.subr.bf16.mxu0 0
          %480 = vmatpush1.bf16.msra.mxu0 0
          %481 = vmatprep.subr.bf16.mxu0 0
          %482 = vmatpush1.bf16.msra.mxu0 0
          %483 = vmatprep.subr.bf16.mxu0 0
          %484 = vmatpush1.bf16.msra.mxu0 0
          %485 = vmatprep.subr.bf16.mxu0 0
          %486 = vmatpush1.bf16.msra.mxu0 0
          %487 = vmatprep.subr.bf16.mxu0 0
          %488 = vmatpush1.bf16.msra.mxu0 0
          %489 = vmatprep.subr.bf16.mxu0 0
          %490 = vmatpush1.bf16.msra.mxu0 0
          %491 = vmatprep.subr.bf16.mxu0 0
          %492 = vmatpush1.bf16.msra.mxu0 0
          %493 = vmatprep.subr.bf16.mxu0 0
          %494 = vmatpush1.bf16.msra.mxu0 0
          %495 = vmatprep.mubr.bf16.mxu0 0
          %496 = vmatmul.mubr.bf16.gmra.mrb[0].mxu0 %v461
          %v497 = vpop.f32.mrb[0].mxu0
          %v498 = vadd.f32 %v445, %v497
          %v499 = vpop.f32.mrb[0].mxu0
          %v500 = vpop.f32.mrb[0].mxu0
          %v501 = vpop.f32.mrb[0].mxu0
          %502 = vdwg.mxu0
          %v503 = vmul.f32 %v498, 0.35355338
          %v504 = vpack.c.bf16 %v503, %v503
          %vm505 = vcmask 257024
          %506 = vst.msk [vmem:[#allocation2] sm:$0xf] %vm505, %v504
          %vm507 = vcmask 31744
          %508 = vst.msk [vmem:[#allocation4] sm:$0xff] %vm507, -1e+30
          %509 = vst.msk [vmem:[#allocation5] sm:$0xff] %vm507, 0.0
          %510 = vst.msk [vmem:[#allocation3] sm:$0xff] %vm459, 0.0
        $region56: #{_cross_attention_impl.1} parent=51 // pred_fallthru
          _
        %v511 = vld [vmem:[%s412] sm:$0xf]
        %v512 = vld [vmem:[%s412 + $0x4] sm:$0xf]
        %v513 = vld [vmem:[%s422] sm:$0xf]
        %v514 = vld [vmem:[%s422 + $0x4] sm:$0xf]
        %v515 = vld [vmem:[%s429] sm:$0x1]
        %v517 = vlaneseq
        %v518 = vshrl.u32 %v517, 7
        %v519 = vsub.s32 0, %v518
        %v520 = vrot.slane %v515, %v519
        %v522 = vld [vmem:[#allocation2] sm:$0xf]
        %v525 = vunpack.c.l.b16 %v511
        %v526 = vunpack.c.l.b16 %v512
        %v527 = vpack.c.b16 %v526, %v525
        %vm528 = vcmask 64512
        %v530 = vsel %vm528, %v522, 0
        %v533 = vsel %vm528, %v527, 0
        %535 = vmatprep.subr.bf16.mxu0 0
        %536 = vmatpush1.bf16.xpose.msra.mxu0 %v533
        %537 = vmatprep.subr.bf16.mxu0 0
        %538 = vmatpush1.bf16.xpose.msra.mxu0 0
        %539 = vmatprep.subr.bf16.mxu0 0
        %540 = vmatpush1.bf16.xpose.msra.mxu0 0
        %541 = vmatprep.subr.bf16.mxu0 0
        %542 = vmatpush1.bf16.xpose.msra.mxu0 0
        %543 = vmatprep.subr.bf16.mxu0 0
        %544 = vmatpush1.bf16.xpose.msra.mxu0 0
        %545 = vmatprep.subr.bf16.mxu0 0
        %546 = vmatpush1.bf16.xpose.msra.mxu0 0
        %547 = vmatprep.subr.bf16.mxu0 0
        %548 = vmatpush1.bf16.xpose.msra.mxu0 0
        %549 = vmatprep.subr.bf16.mxu0 0
        %550 = vmatpush1.bf16.xpose.msra.mxu0 0
        %551 = vmatprep.subr.bf16.mxu0 0
        %552 = vmatpush1.bf16.xpose.msra.mxu0 0
        %553 = vmatprep.subr.bf16.mxu0 0
        %554 = vmatpush1.bf16.xpose.msra.mxu0 0
        %555 = vmatprep.subr.bf16.mxu0 0
        %556 = vmatpush1.bf16.xpose.msra.mxu0 0
        %557 = vmatprep.subr.bf16.mxu0 0
        %558 = vmatpush1.bf16.xpose.msra.mxu0 0
        %559 = vmatprep.subr.bf16.mxu0 0
        %560 = vmatpush1.bf16.xpose.msra.mxu0 0
        %561 = vmatprep.subr.bf16.mxu0 0
        %562 = vmatpush1.bf16.xpose.msra.mxu0 0
        %563 = vmatprep.subr.bf16.mxu0 0
        %564 = vmatpush1.bf16.xpose.msra.mxu0 0
        %565 = vmatprep.subr.bf16.mxu0 0
        %566 = vmatpush1.bf16.xpose.msra.mxu0 0
        %567 = vmatprep.mubr.bf16.mxu0 0
        %568 = vmatmul.mubr.bf16.gmra.mrb[0].mxu0 %v530
        %v569 = vpop.f32.mrb[0].mxu0
        %v570 = vadd.f32 %v520, %v569
        %v571 = vpop.f32.mrb[0].mxu0
        %v572 = vpop.f32.mrb[0].mxu0
        %v573 = vpop.f32.mrb[0].mxu0
        %574 = vdwg.mxu0
        %v575 = vld [vmem:[#allocation4] sm:$0xff]
        %vm576 = vcmask 130048
        %v577 = vsel %vm576, %v570, -inf
        %578 = vmax.xlane.f32.xlu0 %v577
        %v579 = vpop.xlane.xlu0 %578
        %v580 = vmax.f32 %v575, %v579
        %v581 = vsub.f32 %v575, %v580
        %v582 = vmul.f32 %v581, 1.442695
        %v583 = vpow.pop %v582
        %585 = vset.pattern.permute.xlu0 0
        %586 = vperm.xlu0 %585, %v580
        %v587 = vpop.permute.xlu0 %586
        %v589 = vsub.f32 %v570, %v587
        %v590 = vmul.f32 %v589, 1.442695
        %v591 = vpow.pop %v590
        %v592 = vld [vmem:[#allocation5] sm:$0xff]
        %v593 = vmul.f32 %v583, %v592
        %v594 = vsel %vm576, %v591, 0.0
        %595 = vadd.xlane.f32.xlu0 %v594
        %v596 = vpop.xlane.xlu0 %595
        %v597 = vadd.f32 %v593, %v596
        %vm598 = vcmask 7168
        %599 = vst.msk [vmem:[#allocation5] sm:$0xff] %vm598, %v597
        %v600 = vld [vmem:[#allocation3] sm:$0xff]
        %602 = vset.pattern.permute.xlu0 0
        %603 = vperm.xlu0 %602, %v583
        %v604 = vpop.permute.xlu0 %603
        %v606 = vmul.f32 %v604, %v600
        %v607 = vpack.c.bf16 %v591, %v591
        %v610 = vunpack.c.l.b16 %v513
        %v611 = vunpack.c.l.b16 %v514
        %v612 = vpack.c.b16 %v611, %v610
        %v615 = vsel %vm576, %v607, 0
        %617 = vmatprep.subr.bf16.mxu0 0
        %618 = vmatpush1.bf16.msra.mxu0 %v612
        %619 = vmatprep.subr.bf16.mxu0 0
        %620 = vmatpush1.bf16.msra.mxu0 0
        %621 = vmatprep.subr.bf16.mxu0 0
        %622 = vmatpush1.bf16.msra.mxu0 0
        %623 = vmatprep.subr.bf16.mxu0 0
        %624 = vmatpush1.bf16.msra.mxu0 0
        %625 = vmatprep.subr.bf16.mxu0 0
        %626 = vmatpush1.bf16.msra.mxu0 0
        %627 = vmatprep.subr.bf16.mxu0 0
        %628 = vmatpush1.bf16.msra.mxu0 0
        %629 = vmatprep.subr.bf16.mxu0 0
        %630 = vmatpush1.bf16.msra.mxu0 0
        %631 = vmatprep.subr.bf16.mxu0 0
        %632 = vmatpush1.bf16.msra.mxu0 0
        %633 = vmatprep.subr.bf16.mxu0 0
        %634 = vmatpush1.bf16.msra.mxu0 0
        %635 = vmatprep.subr.bf16.mxu0 0
        %636 = vmatpush1.bf16.msra.mxu0 0
        %637 = vmatprep.subr.bf16.mxu0 0
        %638 = vmatpush1.bf16.msra.mxu0 0
        %639 = vmatprep.subr.bf16.mxu0 0
        %640 = vmatpush1.bf16.msra.mxu0 0
        %641 = vmatprep.subr.bf16.mxu0 0
        %642 = vmatpush1.bf16.msra.mxu0 0
        %643 = vmatprep.subr.bf16.mxu0 0
        %644 = vmatpush1.bf16.msra.mxu0 0
        %645 = vmatprep.subr.bf16.mxu0 0
        %646 = vmatpush1.bf16.msra.mxu0 0
        %647 = vmatprep.subr.bf16.mxu0 0
        %648 = vmatpush1.bf16.msra.mxu0 0
        %649 = vmatprep.mubr.bf16.mxu0 0
        %650 = vmatmul.mubr.bf16.gmra.mrb[0].mxu0 %v615
        %v651 = vpop.f32.mrb[0].mxu0
        %v652 = vadd.f32 0.0, %v651
        %v653 = vpop.f32.mrb[0].mxu0
        %v654 = vpop.f32.mrb[0].mxu0
        %v655 = vpop.f32.mrb[0].mxu0
        %656 = vdwg.mxu0
        %v657 = vadd.f32 %v606, %v652
        %658 = vst.msk [vmem:[#allocation3] sm:$0xff] %vm528, %v657
        %659 = vst.msk [vmem:[#allocation4] sm:$0xff] %vm598, %v580
        %v660 = vld [vmem:[#allocation2] sm:$0xf]
        %v662 = vunpack.c.l.b16 %v660
        %v663 = vpack.c.b16 %v662, %v662
        %664 = vrot.lane.b32.xlu0 %v663, 120
        %v665 = vpop.permute.xlu0 %664
        %666 = vrot.lane.b32.xlu0 %v527, 120
        %v667 = vpop.permute.xlu0 %666
        %v669 = vsel %vm528, %v665, 0
        %v672 = vsel %vm528, %v667, 0
        %674 = vmatprep.subr.bf16.mxu0 0
        %675 = vmatpush1.bf16.xpose.msra.mxu0 %v672
        %676 = vmatprep.subr.bf16.mxu0 0
        %677 = vmatpush1.bf16.xpose.msra.mxu0 0
        %678 = vmatprep.subr.bf16.mxu0 0
        %679 = vmatpush1.bf16.xpose.msra.mxu0 0
        %680 = vmatprep.subr.bf16.mxu0 0
        %681 = vmatpush1.bf16.xpose.msra.mxu0 0
        %682 = vmatprep.subr.bf16.mxu0 0
        %683 = vmatpush1.bf16.xpose.msra.mxu0 0
        %684 = vmatprep.subr.bf16.mxu0 0
        %685 = vmatpush1.bf16.xpose.msra.mxu0 0
        %686 = vmatprep.subr.bf16.mxu0 0
        %687 = vmatpush1.bf16.xpose.msra.mxu0 0
        %688 = vmatprep.subr.bf16.mxu0 0
        %689 = vmatpush1.bf16.xpose.msra.mxu0 0
        %690 = vmatprep.subr.bf16.mxu0 0
        %691 = vmatpush1.bf16.xpose.msra.mxu0 0
        %692 = vmatprep.subr.bf16.mxu0 0
        %693 = vmatpush1.bf16.xpose.msra.mxu0 0
        %694 = vmatprep.subr.bf16.mxu0 0
        %695 = vmatpush1.bf16.xpose.msra.mxu0 0
        %696 = vmatprep.subr.bf16.mxu0 0
        %697 = vmatpush1.bf16.xpose.msra.mxu0 0
        %698 = vmatprep.subr.bf16.mxu0 0
        %699 = vmatpush1.bf16.xpose.msra.mxu0 0
        %700 = vmatprep.subr.bf16.mxu0 0
        %701 = vmatpush1.bf16.xpose.msra.mxu0 0
        %702 = vmatprep.subr.bf16.mxu0 0
        %703 = vmatpush1.bf16.xpose.msra.mxu0 0
        %704 = vmatprep.subr.bf16.mxu0 0
        %705 = vmatpush1.bf16.xpose.msra.mxu0 0
        %706 = vmatprep.mubr.bf16.mxu0 0
        %707 = vmatmul.mubr.bf16.gmra.mrb[0].mxu0 %v669
        %v708 = vpop.f32.mrb[0].mxu0
        %v709 = vadd.f32 %v520, %v708
        %v710 = vpop.f32.mrb[0].mxu0
        %v711 = vpop.f32.mrb[0].mxu0
        %v712 = vpop.f32.mrb[0].mxu0
        %713 = vdwg.mxu0
        %v714 = vld [vmem:[#allocation4] sm:$0xff]
        %v715 = vsel %vm576, %v709, -inf
        %716 = vmax.xlane.f32.xlu0 %v715
        %v717 = vpop.xlane.xlu0 %716
        %v718 = vmax.f32 %v714, %v717
        %v719 = vsub.f32 %v714, %v718
        %v720 = vmul.f32 %v719, 1.442695
        %v721 = vpow.pop %v720
        %723 = vset.pattern.permute.xlu0 1
        %724 = vperm.xlu0 %723, %v718
        %v725 = vpop.permute.xlu0 %724
        %v727 = vsub.f32 %v709, %v725
        %v728 = vmul.f32 %v727, 1.442695
        %v729 = vpow.pop %v728
        %v730 = vld [vmem:[#allocation5] sm:$0xff]
        %v731 = vmul.f32 %v721, %v730
        %v732 = vsel %vm576, %v729, 0.0
        %733 = vadd.xlane.f32.xlu0 %v732
        %v734 = vpop.xlane.xlu0 %733
        %v735 = vadd.f32 %v731, %v734
        %vm736 = vcmask 15368
        %737 = vst.msk [vmem:[#allocation5] sm:$0xff] %vm736, %v735
        %v738 = vld [vmem:[#allocation3] sm:$0xff]
        %740 = vset.pattern.permute.xlu0 1
        %741 = vperm.xlu0 %740, %v721
        %v742 = vpop.permute.xlu0 %741
        %v744 = vmul.f32 %v742, %v738
        %v745 = vpack.c.bf16 %v729, %v729
        %746 = vrot.lane.b32.xlu0 %v612, 120
        %v747 = vpop.permute.xlu0 %746
        %v750 = vsel %vm576, %v745, 0
        %752 = vmatprep.subr.bf16.mxu0 0
        %753 = vmatpush1.bf16.msra.mxu0 %v747
        %754 = vmatprep.subr.bf16.mxu0 0
        %755 = vmatpush1.bf16.msra.mxu0 0
        %756 = vmatprep.subr.bf16.mxu0 0
        %757 = vmatpush1.bf16.msra.mxu0 0
        %758 = vmatprep.subr.bf16.mxu0 0
        %759 = vmatpush1.bf16.msra.mxu0 0
        %760 = vmatprep.subr.bf16.mxu0 0
        %761 = vmatpush1.bf16.msra.mxu0 0
        %762 = vmatprep.subr.bf16.mxu0 0
        %763 = vmatpush1.bf16.msra.mxu0 0
        %764 = vmatprep.subr.bf16.mxu0 0
        %765 = vmatpush1.bf16.msra.mxu0 0
        %766 = vmatprep.subr.bf16.mxu0 0
        %767 = vmatpush1.bf16.msra.mxu0 0
        %768 = vmatprep.subr.bf16.mxu0 0
        %769 = vmatpush1.bf16.msra.mxu0 0
        %770 = vmatprep.subr.bf16.mxu0 0
        %771 = vmatpush1.bf16.msra.mxu0 0
        %772 = vmatprep.subr.bf16.mxu0 0
        %773 = vmatpush1.bf16.msra.mxu0 0
        %774 = vmatprep.subr.bf16.mxu0 0
        %775 = vmatpush1.bf16.msra.mxu0 0
        %776 = vmatprep.subr.bf16.mxu0 0
        %777 = vmatpush1.bf16.msra.mxu0 0
        %778 = vmatprep.subr.bf16.mxu0 0
        %779 = vmatpush1.bf16.msra.mxu0 0
        %780 = vmatprep.subr.bf16.mxu0 0
        %781 = vmatpush1.bf16.msra.mxu0 0
        %782 = vmatprep.subr.bf16.mxu0 0
        %783 = vmatpush1.bf16.msra.mxu0 0
        %784 = vmatprep.mubr.bf16.mxu0 0
        %785 = vmatmul.mubr.bf16.gmra.mrb[0].mxu0 %v750
        %v786 = vpop.f32.mrb[0].mxu0
        %v787 = vadd.f32 0.0, %v786
        %v788 = vpop.f32.mrb[0].mxu0
        %v789 = vpop.f32.mrb[0].mxu0
        %v790 = vpop.f32.mrb[0].mxu0
        %791 = vdwg.mxu0
        %793 = vrot.lane.b32.xlu0 %v787, 8
        %v794 = vpop.permute.xlu0 %793
        %v796 = vadd.f32 %v744, %v794
        %vm797 = vcmask 130112
        %798 = vst.msk [vmem:[#allocation3] sm:$0xff] %vm797, %v796
        %799 = vst.msk [vmem:[#allocation4] sm:$0xff] %vm736, %v718
        %v800 = vld [vmem:[#allocation2] sm:$0xf]
        %v802 = vunpack.c.l.b16 %v800
        %v803 = vpack.c.b16 %v802, %v802
        %804 = vrot.lane.b32.xlu0 %v803, 112
        %v805 = vpop.permute.xlu0 %804
        %806 = vrot.lane.b32.xlu0 %v527, 112
        %v807 = vpop.permute.xlu0 %806
        %v809 = vsel %vm528, %v805, 0
        %v812 = vsel %vm528, %v807, 0
        %814 = vmatprep.subr.bf16.mxu0 0
        %815 = vmatpush1.bf16.xpose.msra.mxu0 %v812
        %816 = vmatprep.subr.bf16.mxu0 0
        %817 = vmatpush1.bf16.xpose.msra.mxu0 0
        %818 = vmatprep.subr.bf16.mxu0 0
        %819 = vmatpush1.bf16.xpose.msra.mxu0 0
        %820 = vmatprep.subr.bf16.mxu0 0
        %821 = vmatpush1.bf16.xpose.msra.mxu0 0
        %822 = vmatprep.subr.bf16.mxu0 0
        %823 = vmatpush1.bf16.xpose.msra.mxu0 0
        %824 = vmatprep.subr.bf16.mxu0 0
        %825 = vmatpush1.bf16.xpose.msra.mxu0 0
        %826 = vmatprep.subr.bf16.mxu0 0
        %827 = vmatpush1.bf16.xpose.msra.mxu0 0
        %828 = vmatprep.subr.bf16.mxu0 0
        %829 = vmatpush1.bf16.xpose.msra.mxu0 0
        %830 = vmatprep.subr.bf16.mxu0 0
        %831 = vmatpush1.bf16.xpose.msra.mxu0 0
        %832 = vmatprep.subr.bf16.mxu0 0
        %833 = vmatpush1.bf16.xpose.msra.mxu0 0
        %834 = vmatprep.subr.bf16.mxu0 0
        %835 = vmatpush1.bf16.xpose.msra.mxu0 0
        %836 = vmatprep.subr.bf16.mxu0 0
        %837 = vmatpush1.bf16.xpose.msra.mxu0 0
        %838 = vmatprep.subr.bf16.mxu0 0
        %839 = vmatpush1.bf16.xpose.msra.mxu0 0
        %840 = vmatprep.subr.bf16.mxu0 0
        %841 = vmatpush1.bf16.xpose.msra.mxu0 0
        %842 = vmatprep.subr.bf16.mxu0 0
        %843 = vmatpush1.bf16.xpose.msra.mxu0 0
        %844 = vmatprep.subr.bf16.mxu0 0
        %845 = vmatpush1.bf16.xpose.msra.mxu0 0
        %846 = vmatprep.mubr.bf16.mxu0 0
        %847 = vmatmul.mubr.bf16.gmra.mrb[0].mxu0 %v809
        %v848 = vpop.f32.mrb[0].mxu0
        %v849 = vadd.f32 %v520, %v848
        %v850 = vpop.f32.mrb[0].mxu0
        %v851 = vpop.f32.mrb[0].mxu0
        %v852 = vpop.f32.mrb[0].mxu0
        %853 = vdwg.mxu0
        %v854 = vld [vmem:[#allocation4] sm:$0xff]
        %v855 = vsel %vm576, %v849, -inf
        %856 = vmax.xlane.f32.xlu0 %v855
        %v857 = vpop.xlane.xlu0 %856
        %v858 = vmax.f32 %v854, %v857
        %v859 = vsub.f32 %v854, %v858
        %v860 = vmul.f32 %v859, 1.442695
        %v861 = vpow.pop %v860
        %863 = vset.pattern.permute.xlu0 2
        %864 = vperm.xlu0 %863, %v858
        %v865 = vpop.permute.xlu0 %864
        %v867 = vsub.f32 %v849, %v865
        %v868 = vmul.f32 %v867, 1.442695
        %v869 = vpow.pop %v868
        %v870 = vld [vmem:[#allocation5] sm:$0xff]
        %v871 = vmul.f32 %v861, %v870
        %v872 = vsel %vm576, %v869, 0.0
        %873 = vadd.xlane.f32.xlu0 %v872
        %v874 = vpop.xlane.xlu0 %873
        %v875 = vadd.f32 %v871, %v874
        %vm876 = vcmask 23568
        %877 = vst.msk [vmem:[#allocation5] sm:$0xff] %vm876, %v875
        %v878 = vld [vmem:[#allocation3] sm:$0xff]
        %880 = vset.pattern.permute.xlu0 2
        %881 = vperm.xlu0 %880, %v861
        %v882 = vpop.permute.xlu0 %881
        %v884 = vmul.f32 %v882, %v878
        %v885 = vpack.c.bf16 %v869, %v869
        %886 = vrot.lane.b32.xlu0 %v612, 112
        %v887 = vpop.permute.xlu0 %886
        %v890 = vsel %vm576, %v885, 0
        %892 = vmatprep.subr.bf16.mxu0 0
        %893 = vmatpush1.bf16.msra.mxu0 %v887
        %894 = vmatprep.subr.bf16.mxu0 0
        %895 = vmatpush1.bf16.msra.mxu0 0
        %896 = vmatprep.subr.bf16.mxu0 0
        %897 = vmatpush1.bf16.msra.mxu0 0
        %898 = vmatprep.subr.bf16.mxu0 0
        %899 = vmatpush1.bf16.msra.mxu0 0
        %900 = vmatprep.subr.bf16.mxu0 0
        %901 = vmatpush1.bf16.msra.mxu0 0
        %902 = vmatprep.subr.bf16.mxu0 0
        %903 = vmatpush1.bf16.msra.mxu0 0
        %904 = vmatprep.subr.bf16.mxu0 0
        %905 = vmatpush1.bf16.msra.mxu0 0
        %906 = vmatprep.subr.bf16.mxu0 0
        %907 = vmatpush1.bf16.msra.mxu0 0
        %908 = vmatprep.subr.bf16.mxu0 0
        %909 = vmatpush1.bf16.msra.mxu0 0
        %910 = vmatprep.subr.bf16.mxu0 0
        %911 = vmatpush1.bf16.msra.mxu0 0
        %912 = vmatprep.subr.bf16.mxu0 0
        %913 = vmatpush1.bf16.msra.mxu0 0
        %914 = vmatprep.subr.bf16.mxu0 0
        %915 = vmatpush1.bf16.msra.mxu0 0
        %916 = vmatprep.subr.bf16.mxu0 0
        %917 = vmatpush1.bf16.msra.mxu0 0
        %918 = vmatprep.subr.bf16.mxu0 0
        %919 = vmatpush1.bf16.msra.mxu0 0
        %920 = vmatprep.subr.bf16.mxu0 0
        %921 = vmatpush1.bf16.msra.mxu0 0
        %922 = vmatprep.subr.bf16.mxu0 0
        %923 = vmatpush1.bf16.msra.mxu0 0
        %924 = vmatprep.mubr.bf16.mxu0 0
        %925 = vmatmul.mubr.bf16.gmra.mrb[0].mxu0 %v890
        %v926 = vpop.f32.mrb[0].mxu0
        %v927 = vadd.f32 0.0, %v926
        %v928 = vpop.f32.mrb[0].mxu0
        %v929 = vpop.f32.mrb[0].mxu0
        %v930 = vpop.f32.mrb[0].mxu0
        %931 = vdwg.mxu0
        %933 = vrot.lane.b32.xlu0 %v927, 16
        %v934 = vpop.permute.xlu0 %933
        %v936 = vadd.f32 %v884, %v934
        %vm937 = vcmask 195712
        %938 = vst.msk [vmem:[#allocation3] sm:$0xff] %vm937, %v936
        %939 = vst.msk [vmem:[#allocation4] sm:$0xff] %vm876, %v858
        %v940 = vld [vmem:[#allocation2] sm:$0xf]
        %v942 = vunpack.c.l.b16 %v940
        %v943 = vpack.c.b16 %v942, %v942
        %944 = vrot.lane.b32.xlu0 %v943, 104
        %v945 = vpop.permute.xlu0 %944
        %946 = vrot.lane.b32.xlu0 %v527, 104
        %v947 = vpop.permute.xlu0 %946
        %v949 = vsel %vm528, %v945, 0
        %v952 = vsel %vm528, %v947, 0
        %954 = vmatprep.subr.bf16.mxu0 0
        %955 = vmatpush1.bf16.xpose.msra.mxu0 %v952
        %956 = vmatprep.subr.bf16.mxu0 0
        %957 = vmatpush1.bf16.xpose.msra.mxu0 0
        %958 = vmatprep.subr.bf16.mxu0 0
        %959 = vmatpush1.bf16.xpose.msra.mxu0 0
        %960 = vmatprep.subr.bf16.mxu0 0
        %961 = vmatpush1.bf16.xpose.msra.mxu0 0
        %962 = vmatprep.subr.bf16.mxu0 0
        %963 = vmatpush1.bf16.xpose.msra.mxu0 0
        %964 = vmatprep.subr.bf16.mxu0 0
        %965 = vmatpush1.bf16.xpose.msra.mxu0 0
        %966 = vmatprep.subr.bf16.mxu0 0
        %967 = vmatpush1.bf16.xpose.msra.mxu0 0
        %968 = vmatprep.subr.bf16.mxu0 0
        %969 = vmatpush1.bf16.xpose.msra.mxu0 0
        %970 = vmatprep.subr.bf16.mxu0 0
        %971 = vmatpush1.bf16.xpose.msra.mxu0 0
        %972 = vmatprep.subr.bf16.mxu0 0
        %973 = vmatpush1.bf16.xpose.msra.mxu0 0
        %974 = vmatprep.subr.bf16.mxu0 0
        %975 = vmatpush1.bf16.xpose.msra.mxu0 0
        %976 = vmatprep.subr.bf16.mxu0 0
        %977 = vmatpush1.bf16.xpose.msra.mxu0 0
        %978 = vmatprep.subr.bf16.mxu0 0
        %979 = vmatpush1.bf16.xpose.msra.mxu0 0
        %980 = vmatprep.subr.bf16.mxu0 0
        %981 = vmatpush1.bf16.xpose.msra.mxu0 0
        %982 = vmatprep.subr.bf16.mxu0 0
        %983 = vmatpush1.bf16.xpose.msra.mxu0 0
        %984 = vmatprep.subr.bf16.mxu0 0
        %985 = vmatpush1.bf16.xpose.msra.mxu0 0
        %986 = vmatprep.mubr.bf16.mxu0 0
        %987 = vmatmul.mubr.bf16.gmra.mrb[0].mxu0 %v949
        %v988 = vpop.f32.mrb[0].mxu0
        %v989 = vadd.f32 %v520, %v988
        %v990 = vpop.f32.mrb[0].mxu0
        %v991 = vpop.f32.mrb[0].mxu0
        %v992 = vpop.f32.mrb[0].mxu0
        %993 = vdwg.mxu0
        %v994 = vld [vmem:[#allocation4] sm:$0xff]
        %v995 = vsel %vm576, %v989, -inf
        %996 = vmax.xlane.f32.xlu0 %v995
        %v997 = vpop.xlane.xlu0 %996
        %v998 = vmax.f32 %v994, %v997
        %v999 = vsub.f32 %v994, %v998
        %v1000 = vmul.f32 %v999, 1.442695
        %v1001 = vpow.pop %v1000
        %1003 = vset.pattern.permute.xlu0 3
        %1004 = vperm.xlu0 %1003, %v998
        %v1005 = vpop.permute.xlu0 %1004
        %v1007 = vsub.f32 %v989, %v1005
        %v1008 = vmul.f32 %v1007, 1.442695
        %v1009 = vpow.pop %v1008
        %v1010 = vld [vmem:[#allocation5] sm:$0xff]
        %v1011 = vmul.f32 %v1001, %v1010
        %v1012 = vsel %vm576, %v1009, 0.0
        %1013 = vadd.xlane.f32.xlu0 %v1012
        %v1014 = vpop.xlane.xlu0 %1013
        %v1015 = vadd.f32 %v1011, %v1014
        %vm1016 = vcmask 31768
        %1017 = vst.msk [vmem:[#allocation5] sm:$0xff] %vm1016, %v1015
        %v1018 = vld [vmem:[#allocation3] sm:$0xff]
        %1020 = vset.pattern.permute.xlu0 3
        %1021 = vperm.xlu0 %1020, %v1001
        %v1022 = vpop.permute.xlu0 %1021
        %v1024 = vmul.f32 %v1022, %v1018
        %v1025 = vpack.c.bf16 %v1009, %v1009
        %1026 = vrot.lane.b32.xlu0 %v612, 104
        %v1027 = vpop.permute.xlu0 %1026
        %v1030 = vsel %vm576, %v1025, 0
        %1032 = vmatprep.subr.bf16.mxu0 0
        %1033 = vmatpush1.bf16.msra.mxu0 %v1027
        %1034 = vmatprep.subr.bf16.mxu0 0
        %1035 = vmatpush1.bf16.msra.mxu0 0
        %1036 = vmatprep.subr.bf16.mxu0 0
        %1037 = vmatpush1.bf16.msra.mxu0 0
        %1038 = vmatprep.subr.bf16.mxu0 0
        %1039 = vmatpush1.bf16.msra.mxu0 0
        %1040 = vmatprep.subr.bf16.mxu0 0
        %1041 = vmatpush1.bf16.msra.mxu0 0
        %1042 = vmatprep.subr.bf16.mxu0 0
        %1043 = vmatpush1.bf16.msra.mxu0 0
        %1044 = vmatprep.subr.bf16.mxu0 0
        %1045 = vmatpush1.bf16.msra.mxu0 0
        %1046 = vmatprep.subr.bf16.mxu0 0
        %1047 = vmatpush1.bf16.msra.mxu0 0
        %1048 = vmatprep.subr.bf16.mxu0 0
        %1049 = vmatpush1.bf16.msra.mxu0 0
        %1050 = vmatprep.subr.bf16.mxu0 0
        %1051 = vmatpush1.bf16.msra.mxu0 0
        %1052 = vmatprep.subr.bf16.mxu0 0
        %1053 = vmatpush1.bf16.msra.mxu0 0
        %1054 = vmatprep.subr.bf16.mxu0 0
        %1055 = vmatpush1.bf16.msra.mxu0 0
        %1056 = vmatprep.subr.bf16.mxu0 0
        %1057 = vmatpush1.bf16.msra.mxu0 0
        %1058 = vmatprep.subr.bf16.mxu0 0
        %1059 = vmatpush1.bf16.msra.mxu0 0
        %1060 = vmatprep.subr.bf16.mxu0 0
        %1061 = vmatpush1.bf16.msra.mxu0 0
        %1062 = vmatprep.subr.bf16.mxu0 0
        %1063 = vmatpush1.bf16.msra.mxu0 0
        %1064 = vmatprep.mubr.bf16.mxu0 0
        %1065 = vmatmul.mubr.bf16.gmra.mrb[0].mxu0 %v1030
        %v1066 = vpop.f32.mrb[0].mxu0
        %v1067 = vadd.f32 0.0, %v1066
        %v1068 = vpop.f32.mrb[0].mxu0
        %v1069 = vpop.f32.mrb[0].mxu0
        %v1070 = vpop.f32.mrb[0].mxu0
        %1071 = vdwg.mxu0
        %1073 = vrot.lane.b32.xlu0 %v1067, 24
        %v1074 = vpop.permute.xlu0 %1073
        %v1076 = vadd.f32 %v1024, %v1074
        %vm1077 = vcmask 261312
        %1078 = vst.msk [vmem:[#allocation3] sm:$0xff] %vm1077, %v1076
        %1079 = vst.msk [vmem:[#allocation4] sm:$0xff] %vm1016, %v998
        // Predicated region
        $region57: #{_cross_attention_impl.1} parent=51 // pred_check
          %p1080 = pneg %p431
        $region58: #{_cross_attention_impl.1} parent=51 // pred_check_branch
          %1082 = sbr.rel (%p1080) target = $region60
        $region59: #{_cross_attention_impl.1} parent=51 // pred_region
          %v1083 = vld [vmem:[#allocation5] sm:$0xff]
          %v1084 = vrcp.pop %v1083
          %v1085 = vld [vmem:[#allocation3] sm:$0xff]
          %1087 = vset.pattern.permute.xlu0 0
          %1088 = vperm.xlu0 %1087, %v1084
          %v1089 = vpop.permute.xlu0 %1088
          %v1091 = vmul.f32 %v1085, %v1089
          %v1092 = vpack.c.bf16 %v1091, %v1091
          %vm1093 = vcmask 60416
          %1094 = vst.msk [vmem:[#allocation6] sm:$0xf] %vm1093, %v1092
          %v1095 = vld [vmem:[#allocation5] sm:$0xff]
          %v1096 = vrcp.pop %v1095
          %v1097 = vld [vmem:[#allocation3] sm:$0xff]
          %1099 = vset.pattern.permute.xlu0 1
          %1100 = vperm.xlu0 %1099, %v1096
          %v1101 = vpop.permute.xlu0 %1100
          %v1103 = vmul.f32 %v1097, %v1101
          %v1104 = vpack.c.bf16 %v1103, %v1103
          %vm1105 = vcmask 126016
          %1106 = vst.msk [vmem:[#allocation6] sm:$0xf] %vm1105, %v1104
          %v1107 = vld [vmem:[#allocation5] sm:$0xff]
          %v1108 = vrcp.pop %v1107
          %v1109 = vld [vmem:[#allocation3] sm:$0xff]
          %1111 = vset.pattern.permute.xlu0 2
          %1112 = vperm.xlu0 %1111, %v1108
          %v1113 = vpop.permute.xlu0 %1112
          %v1115 = vmul.f32 %v1109, %v1113
          %v1116 = vpack.c.bf16 %v1115, %v1115
          %vm1117 = vcmask 191616
          %1118 = vst.msk [vmem:[#allocation6] sm:$0xf] %vm1117, %v1116
          %v1119 = vld [vmem:[#allocation5] sm:$0xff]
          %v1120 = vrcp.pop %v1119
          %v1121 = vld [vmem:[#allocation3] sm:$0xff]
          %1123 = vset.pattern.permute.xlu0 3
          %1124 = vperm.xlu0 %1123, %v1120
          %v1125 = vpop.permute.xlu0 %1124
          %v1127 = vmul.f32 %v1121, %v1125
          %v1128 = vpack.c.bf16 %v1127, %v1127
          %vm1129 = vcmask 257216
          %1130 = vst.msk [vmem:[#allocation6] sm:$0xf] %vm1129, %v1128
          %v1131 = vld [vmem:[#allocation6] sm:$0xf]
          %v1132 = vld [vmem:[%s6] sm:$0xf]
          %v1133 = vld [vmem:[%s6 + $0x4] sm:$0xf]
          %v1134 = vld [vmem:[%s6 + $0x8] sm:$0xf]
          %v1135 = vld [vmem:[%s6 + $0xc] sm:$0xf]
          %v1136 = vld [vmem:[%s7] sm:$0x1]
          %v1138 = vlaneseq
          %v1139 = vshrl.u32 %v1138, 7
          %v1140 = vsub.s32 0, %v1139
          %v1141 = vrot.slane %v1136, %v1140
          %v1147 = vunpack.c.l.b16 %v1132
          %v1148 = vunpack.c.l.b16 %v1133
          %v1149 = vunpack.c.l.b16 %v1134
          %v1150 = vunpack.c.l.b16 %v1135
          %v1151 = vpack.c.b16 %v1148, %v1147
          %v1152 = vpack.c.b16 %v1150, %v1149
          %vm1155 = vcmask 261120
          %v1157 = vsel %vm1155, %v1131, 0
          %1159 = vmatprep.subr.bf16.mxu0 0
          %1160 = vmatpush1.bf16.msra.mxu0 %v1151
          %1161 = vmatprep.subr.bf16.mxu0 0
          %1162 = vmatpush1.bf16.msra.mxu0 %v1152
          %1163 = vmatprep.subr.bf16.mxu0 0
          %1164 = vmatpush1.bf16.msra.mxu0 0
          %1165 = vmatprep.subr.bf16.mxu0 0
          %1166 = vmatpush1.bf16.msra.mxu0 0
          %1167 = vmatprep.subr.bf16.mxu0 0
          %1168 = vmatpush1.bf16.msra.mxu0 0
          %1169 = vmatprep.subr.bf16.mxu0 0
          %1170 = vmatpush1.bf16.msra.mxu0 0
          %1171 = vmatprep.subr.bf16.mxu0 0
          %1172 = vmatpush1.bf16.msra.mxu0 0
          %1173 = vmatprep.subr.bf16.mxu0 0
          %1174 = vmatpush1.bf16.msra.mxu0 0
          %1175 = vmatprep.subr.bf16.mxu0 0
          %1176 = vmatpush1.bf16.msra.mxu0 0
          %1177 = vmatprep.subr.bf16.mxu0 0
          %1178 = vmatpush1.bf16.msra.mxu0 0
          %1179 = vmatprep.subr.bf16.mxu0 0
          %1180 = vmatpush1.bf16.msra.mxu0 0
          %1181 = vmatprep.subr.bf16.mxu0 0
          %1182 = vmatpush1.bf16.msra.mxu0 0
          %1183 = vmatprep.subr.bf16.mxu0 0
          %1184 = vmatpush1.bf16.msra.mxu0 0
          %1185 = vmatprep.subr.bf16.mxu0 0
          %1186 = vmatpush1.bf16.msra.mxu0 0
          %1187 = vmatprep.subr.bf16.mxu0 0
          %1188 = vmatpush1.bf16.msra.mxu0 0
          %1189 = vmatprep.subr.bf16.mxu0 0
          %1190 = vmatpush1.bf16.msra.mxu0 0
          %1191 = vmatprep.mubr.bf16.mxu0 0
          %1192 = vmatmul.mubr.bf16.gmra.mrb[0].mxu0 %v1157
          %v1193 = vpop.f32.mrb[0].mxu0
          %v1194 = vadd.f32 %v1141, %v1193
          %v1195 = vpop.f32.mrb[0].mxu0
          %v1196 = vpop.f32.mrb[0].mxu0
          %v1197 = vpop.f32.mrb[0].mxu0
          %1198 = vdwg.mxu0
          %1199 = vst.msk [vmem:[%s396] sm:$0xff] %vm1155, %v1194
        $region60: #{_cross_attention_impl.1} parent=51 // pred_fallthru
          _
        %s1200 = sand.u32 %s247, 1
        %s1201 = scalar_lea.sflag [#allocation8], %s1200
        %s1202 = sand.u32 %s247, 1
        %s1203 = smul.addr %s1202, 8
        %s1204 = scalar_lea.vmem [#allocation7], %s1203
        // Predicated region
        $region61: #{_cross_attention_impl.1} parent=51 // pred_check
          %p1205 = pneg %p257
        $region62: #{_cross_attention_impl.1} parent=51 // pred_check_branch
          %1207 = sbr.rel (%p1205) target = $region64
        $region63: #{_cross_attention_impl.1} parent=51 // pred_region
          %s1209 = ssub.s32 128, 128
          %1210 = vsyncadd %s1201, %s1209
          %s1211 = sadd.s32 %s28, %s27
          %s1212 = smul.addr %s1211, 128
          %s1213 = scalar_lea.hbm %s8, %s1212
          %s1215 = sshll.u32 %s1204, 4
          %s1216 = int_to_ptr.vmem [resolvable:$true] %s1215
          %1218 = dma.vmem_to_hbm [thread:$0]  %s1216, 128, %s1213, %s1201
        $region64: #{_cross_attention_impl.1} parent=51 // pred_fallthru
          _
      $region52: #{_cross_attention_impl.1} parent=5 // pred_fallthru
        _
      %p1219 = scmp.le.s32.totalorder 2, %s17
      // Predicated region
      $region65: #{_cross_attention_impl.1} parent=5 // pred_check
        %p1220 = pneg %p1219
      $region66: #{_cross_attention_impl.1} parent=5 // pred_check_branch
        %1222 = sbr.rel (%p1220) target = $region68
      $region67: #{_cross_attention_impl.1} parent=5 // pred_region
        %s1223 = ssub.s32 %s17, 2
        // Predicated region
        $region69: #{_cross_attention_impl.1} parent=67 // pred_check
          %p1224 = pneg %p263
        $region70: #{_cross_attention_impl.1} parent=67 // pred_check_branch
          %1226 = sbr.rel (%p1224) target = $region72
        $region71: #{_cross_attention_impl.1} parent=67 // pred_region
          %s1227 = sand.u32 %s248, 1
          %s1228 = scalar_lea.sflag [#allocation8], %s1227
          %s1229 = sand.u32 %s248, 1
          %s1230 = smul.addr %s1229, 8
          %s1231 = scalar_lea.vmem [#allocation7], %s1230
          %1232 = dma.done %s1228, 128
        $region72: #{_cross_attention_impl.1} parent=67 // pred_fallthru
          _
      $region68: #{_cross_attention_impl.1} parent=5 // pred_fallthru
        _
    $region6: #{_cross_attention_impl.1} parent=1 // loop_footer
      %s21 = sadd.s32 1, %s17
    $region7: #{_cross_attention_impl.1} parent=1 // loop_footer_branch
      %16 = sbr.rel target = $region3
    $region8: #{_cross_attention_impl.1} parent=1 // loop_exit
      _
    %1233 = vsyncpa [#allocation8], 1
    %s1234 = scalar_lea.sflag [#allocation8], 1
    %1235 = vsyncpa %s1234, 1

// kernel: _cross_attention_impl.1
$region0: #{_cross_attention_impl.1}
  #allocation0 [shape = 'u32[]', space=smem, size = 0x4, offset = 0x4, fixed_abs, tag = 'smem constant byte address 0x4 - core index']
  #allocation1 [shape = 'u32[144,128]{1,0:T(1,128)}', space=vmem, size = 0x12000, scoped, tag = 'internal scratch']
  #allocation2 [shape = 'bf16[8,32]{1,0:T(8,128)(2,1)}', space=vmem, size = 0x800, scoped, tag = 'scratch operand']
  #allocation3 [shape = 'f32[8,32]{1,0:T(8,128)}', space=vmem, size = 0x1000, scoped, tag = 'scratch operand']
  #allocation4 [shape = 'f32[8,4]{1,0:T(8,128)}', space=vmem, size = 0x1000, scoped, tag = 'scratch operand']
  #allocation5 [shape = 'f32[8,4]{1,0:T(8,128)}', space=vmem, size = 0x1000, scoped, tag = 'scratch operand']
  #allocation6 [shape = 'bf16[8,32]{1,0:T(8,128)(2,1)}', space=vmem, size = 0x800, scoped, tag = 'scratch operand']
  %s0 = inlined_call_operand.vmem [shape: bf16[2,8,32], index: 0, kind: input, shape index: {}]
  %s1 = inlined_call_operand.vmem [shape: bf16[2,16,32], index: 1, kind: input, shape index: {}]
  %s2 = inlined_call_operand.vmem [shape: bf16[2,16,32], index: 2, kind: input, shape index: {}]
  %s3 = inlined_call_operand.vmem [shape: f32[2,1,16], index: 3, kind: input, shape index: {}]
  %s4 = inlined_call_operand.vmem [shape: bf16[32,32], index: 4, kind: input, shape index: {}]
  %s5 = inlined_call_operand.vmem [shape: f32[1,32], index: 5, kind: input, shape index: {}]
  %s6 = inlined_call_operand.vmem [shape: bf16[32,32], index: 6, kind: input, shape index: {}]
  %s7 = inlined_call_operand.vmem [shape: f32[1,32], index: 7, kind: input, shape index: {}]
  %s8 = inlined_call_operand.hbm [shape: f32[2,8,32], index: 8, kind: output, shape index: {}]
  %s9 = sld [smem:[#allocation0]]
  $region73: #{_cross_attention_impl.1} parent=0
    _
  %s11 = ssub.s32 1, %s9
  %s12 = scalar_select 0, %s11, %s9
  $region1: #{_cross_attention_impl.1} parent=0
    #allocation7 [shape = 'u8[8192]{0}', space=vmem, size = 0x2000, scoped, tag = 'output window, operand 0']
    #allocation8 [shape = 's32[2]{0}', space=sflag, size = 0x8, scoped, tag = 'scoped memory for _cross_attention_impl.1']
    %13 = vsyncpa [#allocation8], 0
    %s14 = scalar_lea.sflag [#allocation8], 1
    %15 = vsyncpa %s14, 0
    loop: start=0, step=1, limit=4
    $region2: #{_cross_attention_impl.1} parent=1 // loop_pre_header
      _
    $region3: #{_cross_attention_impl.1} parent=1 // loop_header
      %s17 = sphi 0, %s21
      %p18 = scmp.ge.s32.totalorder %s17, 4
      %s24 = sphi 0, %s43
      %s25 = sphi 0, %s39
      %s26 = sphi 0, %s35
      %s27 = sphi 0, %s24
      %s28 = sphi 0, %s25
      %s29 = sphi 0, %s26
      %s30 = sphi 0, %s27
      %s31 = sphi 0, %s28
      %s32 = sphi 0, %s29
      %s48 = sphi 0, %s50
      %s51 = sphi 0, %s48
      %s52 = sphi 0, %s51
      %s68 = sphi 0, %s52
      %s76 = sphi 0, %s78
      %s79 = sphi 0, %s76
      %s80 = sphi 0, %s79
      %s96 = sphi 0, %s80
      %s104 = sphi 0, %s106
      %s107 = sphi 0, %s104
      %s108 = sphi 0, %s107
      %s124 = sphi 0, %s108
      %s132 = sphi 0, %s134
      %s135 = sphi 0, %s132
      %s136 = sphi 0, %s135
      %s152 = sphi 0, %s136
      %s156 = sphi 0, %s156
      %s158 = sphi 0, %s156
      %s159 = sphi 0, %s158
      %s173 = sphi 0, %s159
      %s177 = sphi 0, %s177
      %s179 = sphi 0, %s177
      %s180 = sphi 0, %s179
      %s194 = sphi 0, %s180
      %s198 = sphi 0, %s198
      %s200 = sphi 0, %s198
      %s201 = sphi 0, %s200
      %s215 = sphi 0, %s201
      %s219 = sphi 0, %s219
      %s221 = sphi 0, %s219
      %s222 = sphi 0, %s221
      %s236 = sphi 0, %s222
      %s244 = sphi 0, %s246
      %s247 = sphi 0, %s244
      %s248 = sphi 0, %s247
      %s264 = sphi 0, %s248
    $region4: #{_cross_attention_impl.1} parent=1 // loop_header_branch
      %20 = sbr.rel (%p18) target = $region8
    $region5: #{_cross_attention_impl.1} parent=1 // loop_body
      %s22 = ssub.s32 %s17, 1
      %s23 = ssub.s32 %s17, 2
      %s33 = sadd.s32 1, %s26
      %p34 = scmp.ge.s32.totalorder %s33, 1
      %s35 = scalar_select %p34, 0, %s33
      %s36 = sadd.s32 1, %s25
      %s37 = scalar_select %p34, %s36, %s25
      %p38 = scmp.ge.s32.totalorder %s37, 1
      %s39 = scalar_select %p38, 0, %s37
      %s40 = sadd.s32 1, %s24
      %s41 = scalar_select %p38, %s40, %s24
      %p42 = scmp.ge.s32.totalorder %s41, 2
      %s43 = scalar_select %p42, 0, %s41
      %s44 = ssub.s32 %s24, %s43
      %s45 = ssub.s32 %s25, %s39
      %s46 = sor.u32 %s44, %s45
      %p47 = scmp.eq.s32.totalorder %s46, 0
      %s49 = sadd.s32 %s48, 1
      %s50 = scalar_select %p47, %s48, %s49
      %p53 = pneg %p47
      %p54 = scmp.eq.s32.totalorder %s17, 1
      %p55 = por %p53, %p54
      %p56 = scmp.ne.s32.totalorder %s48, %s51
      %p57 = scmp.eq.s32.totalorder %s17, 0
      %p58 = por %p56, %p57
      %p59 = scmp.ne.s32.totalorder %s48, %s51
      %p60 = scmp.eq.s32.totalorder %s22, 1
      %p61 = por %p59, %p60
      %p62 = scmp.ne.s32.totalorder %s51, %s52
      %p63 = scmp.eq.s32.totalorder %s22, 0
      %p64 = por %p62, %p63
      %p65 = scmp.ne.s32.totalorder %s51, %s52
      %p66 = scmp.eq.s32.totalorder %s23, 1
      %p67 = por %p65, %p66
      %p69 = scmp.ne.s32.totalorder %s52, %s68
      %p70 = scmp.eq.s32.totalorder %s23, 0
      %p71 = por %p69, %p70
      %s72 = ssub.s32 %s24, %s43
      %s73 = ssub.s32 %s26, %s35
      %s74 = sor.u32 %s72, %s73
      %p75 = scmp.eq.s32.totalorder %s74, 0
      %s77 = sadd.s32 %s76, 1
      %s78 = scalar_select %p75, %s76, %s77
      %p81 = pneg %p75
      %p82 = scmp.eq.s32.totalorder %s17, 1
      %p83 = por %p81, %p82
      %p84 = scmp.ne.s32.totalorder %s76, %s79
      %p85 = scmp.eq.s32.totalorder %s17, 0
      %p86 = por %p84, %p85
      %p87 = scmp.ne.s32.totalorder %s76, %s79
      %p88 = scmp.eq.s32.totalorder %s22, 1
      %p89 = por %p87, %p88
      %p90 = scmp.ne.s32.totalorder %s79, %s80
      %p91 = scmp.eq.s32.totalorder %s22, 0
      %p92 = por %p90, %p91
      %p93 = scmp.ne.s32.totalorder %s79, %s80
      %p94 = scmp.eq.s32.totalorder %s23, 1
      %p95 = por %p93, %p94
      %p97 = scmp.ne.s32.totalorder %s80, %s96
      %p98 = scmp.eq.s32.totalorder %s23, 0
      %p99 = por %p97, %p98
      %s100 = ssub.s32 %s24, %s43
      %s101 = ssub.s32 %s26, %s35
      %s102 = sor.u32 %s100, %s101
      %p103 = scmp.eq.s32.totalorder %s102, 0
      %s105 = sadd.s32 %s104, 1
      %s106 = scalar_select %p103, %s104, %s105
      %p109 = pneg %p103
      %p110 = scmp.eq.s32.totalorder %s17, 1
      %p111 = por %p109, %p110
      %p112 = scmp.ne.s32.totalorder %s104, %s107
      %p113 = scmp.eq.s32.totalorder %s17, 0
      %p114 = por %p112, %p113
      %p115 = scmp.ne.s32.totalorder %s104, %s107
      %p116 = scmp.eq.s32.totalorder %s22, 1
      %p117 = por %p115, %p116
      %p118 = scmp.ne.s32.totalorder %s107, %s108
      %p119 = scmp.eq.s32.totalorder %s22, 0
      %p120 = por %p118, %p119
      %p121 = scmp.ne.s32.totalorder %s107, %s108
      %p122 = scmp.eq.s32.totalorder %s23, 1
      %p123 = por %p121, %p122
      %p125 = scmp.ne.s32.totalorder %s108, %s124
      %p126 = scmp.eq.s32.totalorder %s23, 0
      %p127 = por %p125, %p126
      %s128 = ssub.s32 %s24, %s43
      %s129 = ssub.s32 %s26, %s35
      %s130 = sor.u32 %s128, %s129
      %p131 = scmp.eq.s32.totalorder %s130, 0
      %s133 = sadd.s32 %s132, 1
      %s134 = scalar_select %p131, %s132, %s133
      %p137 = pneg %p131
      %p138 = scmp.eq.s32.totalorder %s17, 1
      %p139 = por %p137, %p138
      %p140 = scmp.ne.s32.totalorder %s132, %s135
      %p141 = scmp.eq.s32.totalorder %s17, 0
      %p142 = por %p140, %p141
      %p143 = scmp.ne.s32.totalorder %s132, %s135
      %p144 = scmp.eq.s32.totalorder %s22, 1
      %p145 = por %p143, %p144
      %p146 = scmp.ne.s32.totalorder %s135, %s136
      %p147 = scmp.eq.s32.totalorder %s22, 0
      %p148 = por %p146, %p147
      %p149 = scmp.ne.s32.totalorder %s135, %s136
      %p150 = scmp.eq.s32.totalorder %s23, 1
      %p151 = por %p149, %p150
      %p153 = scmp.ne.s32.totalorder %s136, %s152
      %p154 = scmp.eq.s32.totalorder %s23, 0
      %p155 = por %p153, %p154
      %s157 = sadd.s32 %s156, 1
      %p160 = scmp.eq.s32.totalorder %s17, 1
      %p161 = scmp.ne.s32.totalorder %s156, %s158
      %p162 = scmp.eq.s32.totalorder %s17, 0
      %p163 = por %p161, %p162
      %p164 = scmp.ne.s32.totalorder %s156, %s158
      %p165 = scmp.eq.s32.totalorder %s22, 1
      %p166 = por %p164, %p165
      %p167 = scmp.ne.s32.totalorder %s158, %s159
      %p168 = scmp.eq.s32.totalorder %s22, 0
      %p169 = por %p167, %p168
      %p170 = scmp.ne.s32.totalorder %s158, %s159
      %p171 = scmp.eq.s32.totalorder %s23, 1
      %p172 = por %p170, %p171
      %p174 = scmp.ne.s32.totalorder %s159, %s173
      %p175 = scmp.eq.s32.totalorder %s23, 0
      %p176 = por %p174, %p175
      %s178 = sadd.s32 %s177, 1
      %p181 = scmp.eq.s32.totalorder %s17, 1
      %p182 = scmp.ne.s32.totalorder %s177, %s179
      %p183 = scmp.eq.s32.totalorder %s17, 0
      %p184 = por %p182, %p183
      %p185 = scmp.ne.s32.totalorder %s177, %s179
      %p186 = scmp.eq.s32.totalorder %s22, 1
      %p187 = por %p185, %p186
      %p188 = scmp.ne.s32.totalorder %s179, %s180
      %p189 = scmp.eq.s32.totalorder %s22, 0
      %p190 = por %p188, %p189
      %p191 = scmp.ne.s32.totalorder %s179, %s180
      %p192 = scmp.eq.s32.totalorder %s23, 1
      %p193 = por %p191, %p192
      %p195 = scmp.ne.s32.totalorder %s180, %s194
      %p196 = scmp.eq.s32.totalorder %s23, 0
      %p197 = por %p195, %p196
      %s199 = sadd.s32 %s198, 1
      %p202 = scmp.eq.s32.totalorder %s17, 1
      %p203 = scmp.ne.s32.totalorder %s198, %s200
      %p204 = scmp.eq.s32.totalorder %s17, 0
      %p205 = por %p203, %p204
      %p206 = scmp.ne.s32.totalorder %s198, %s200
      %p207 = scmp.eq.s32.totalorder %s22, 1
      %p208 = por %p206, %p207
      %p209 = scmp.ne.s32.totalorder %s200, %s201
      %p210 = scmp.eq.s32.totalorder %s22, 0
      %p211 = por %p209, %p210
      %p212 = scmp.ne.s32.totalorder %s200, %s201
      %p213 = scmp.eq.s32.totalorder %s23, 1
      %p214 = por %p212, %p213
      %p216 = scmp.ne.s32.totalorder %s201, %s215
      %p217 = scmp.eq.s32.totalorder %s23, 0
      %p218 = por %p216, %p217
      %s220 = sadd.s32 %s219, 1
      %p223 = scmp.eq.s32.totalorder %s17, 1
      %p224 = scmp.ne.s32.totalorder %s219, %s221
      %p225 = scmp.eq.s32.totalorder %s17, 0
      %p226 = por %p224, %p225
      %p227 = scmp.ne.s32.totalorder %s219, %s221
      %p228 = scmp.eq.s32.totalorder %s22, 1
      %p229 = por %p227, %p228
      %p230 = scmp.ne.s32.totalorder %s221, %s222
      %p231 = scmp.eq.s32.totalorder %s22, 0
      %p232 = por %p230, %p231
      %p233 = scmp.ne.s32.totalorder %s221, %s222
      %p234 = scmp.eq.s32.totalorder %s23, 1
      %p235 = por %p233, %p234
      %p237 = scmp.ne.s32.totalorder %s222, %s236
      %p238 = scmp.eq.s32.totalorder %s23, 0
      %p239 = por %p237, %p238
      %s240 = ssub.s32 %s24, %s43
      %s241 = ssub.s32 %s25, %s39
      %s242 = sor.u32 %s240, %s241
      %p243 = scmp.eq.s32.totalorder %s242, 0
      %s245 = sadd.s32 %s244, 1
      %s246 = scalar_select %p243, %s244, %s245
      %p249 = pneg %p243
      %p250 = scmp.eq.s32.totalorder %s17, 1
      %p251 = por %p249, %p250
      %p252 = scmp.ne.s32.totalorder %s244, %s247
      %p253 = scmp.eq.s32.totalorder %s17, 0
      %p254 = por %p252, %p253
      %p255 = scmp.ne.s32.totalorder %s244, %s247
      %p256 = scmp.eq.s32.totalorder %s22, 1
      %p257 = por %p255, %p256
      %p258 = scmp.ne.s32.totalorder %s247, %s248
      %p259 = scmp.eq.s32.totalorder %s22, 0
      %p260 = por %p258, %p259
      %p261 = scmp.ne.s32.totalorder %s247, %s248
      %p262 = scmp.eq.s32.totalorder %s23, 1
      %p263 = por %p261, %p262
      %p265 = scmp.ne.s32.totalorder %s248, %s264
      %p266 = scmp.eq.s32.totalorder %s23, 0
      %p267 = por %p265, %p266
      %p268 = scmp.le.s32.totalorder 1, %s17
      %p269 = scmp.lt.s32.totalorder %s17, 3
      %p270 = pnand %p268, %p269
      %p271 = pneg %p270
      // Predicated region
      $region9: #{_cross_attention_impl.1} parent=5 // pred_check
        _
      $region10: #{_cross_attention_impl.1} parent=5 // pred_check_branch
        %273 = sbr.rel (%p270) target = $region12
      $region11: #{_cross_attention_impl.1} parent=5 // pred_region
        %s274 = ssub.s32 %s17, 1
        // Predicated region
        $region13: #{_cross_attention_impl.1} parent=11 // pred_check
          %p275 = pneg %p169
        $region14: #{_cross_attention_impl.1} parent=11 // pred_check_branch
          %277 = sbr.rel (%p275) target = $region16
        $region15: #{_cross_attention_impl.1} parent=11 // pred_region
          _
        $region16: #{_cross_attention_impl.1} parent=11 // pred_fallthru
          _
        // Predicated region
        $region17: #{_cross_attention_impl.1} parent=11 // pred_check
          %p278 = pneg %p190
        $region18: #{_cross_attention_impl.1} parent=11 // pred_check_branch
          %280 = sbr.rel (%p278) target = $region20
        $region19: #{_cross_attention_impl.1} parent=11 // pred_region
          _
        $region20: #{_cross_attention_impl.1} parent=11 // pred_fallthru
          _
        // Predicated region
        $region21: #{_cross_attention_impl.1} parent=11 // pred_check
          %p281 = pneg %p211
        $region22: #{_cross_attention_impl.1} parent=11 // pred_check_branch
          %283 = sbr.rel (%p281) target = $region24
        $region23: #{_cross_attention_impl.1} parent=11 // pred_region
          _
        $region24: #{_cross_attention_impl.1} parent=11 // pred_fallthru
          _
        // Predicated region
        $region25: #{_cross_attention_impl.1} parent=11 // pred_check
          %p284 = pneg %p232
        $region26: #{_cross_attention_impl.1} parent=11 // pred_check_branch
          %286 = sbr.rel (%p284) target = $region28
        $region27: #{_cross_attention_impl.1} parent=11 // pred_region
          _
        $region28: #{_cross_attention_impl.1} parent=11 // pred_fallthru
          _
      $region12: #{_cross_attention_impl.1} parent=5 // pred_fallthru
        _
      %p287 = scmp.lt.s32.totalorder %s17, 2
      // Predicated region
      $region29: #{_cross_attention_impl.1} parent=5 // pred_check
        %p288 = pneg %p287
      $region30: #{_cross_attention_impl.1} parent=5 // pred_check_branch
        %290 = sbr.rel (%p288) target = $region32
      $region31: #{_cross_attention_impl.1} parent=5 // pred_region
        // Predicated region
        $region33: #{_cross_attention_impl.1} parent=31 // pred_check
          %p291 = pneg %p58
        $region34: #{_cross_attention_impl.1} parent=31 // pred_check_branch
          %293 = sbr.rel (%p291) target = $region36
        $region35: #{_cross_attention_impl.1} parent=31 // pred_region
          %p294 = scmp.lt.s32.totalorder %s24, 1
          %s295 = scalar_select %p294, %s24, 1
          %p296 = scmp.lt.s32.totalorder %s25, 0
          %s297 = scalar_select %p296, %s25, 0
          %s298 = sadd.s32 %s297, %s295
          %s299 = smul.addr %s298, 4
          %s300 = scalar_lea.vmem %s0, %s299
        $region36: #{_cross_attention_impl.1} parent=31 // pred_fallthru
          _
        // Predicated region
        $region37: #{_cross_attention_impl.1} parent=31 // pred_check
          %p301 = pneg %p86
        $region38: #{_cross_attention_impl.1} parent=31 // pred_check_branch
          %303 = sbr.rel (%p301) target = $region40
        $region39: #{_cross_attention_impl.1} parent=31 // pred_region
          %s304 = smul.u32 2, %s26
          %p305 = scmp.lt.s32.totalorder %s24, 1
          %s306 = scalar_select %p305, %s24, 1
          %p307 = scmp.lt.s32.totalorder %s304, 1
          %s308 = scalar_select %p307, %s304, 1
          %s309 = smul.addr %s306, 2
          %s310 = sadd.s32 %s308, %s309
          %s311 = smul.addr %s310, 4
          %s312 = scalar_lea.vmem %s1, %s311
          %s313 = smul.u32 2, %s26
        $region40: #{_cross_attention_impl.1} parent=31 // pred_fallthru
          _
        // Predicated region
        $region41: #{_cross_attention_impl.1} parent=31 // pred_check
          %p314 = pneg %p114
        $region42: #{_cross_attention_impl.1} parent=31 // pred_check_branch
          %316 = sbr.rel (%p314) target = $region44
        $region43: #{_cross_attention_impl.1} parent=31 // pred_region
          %s317 = smul.u32 2, %s26
          %p318 = scmp.lt.s32.totalorder %s24, 1
          %s319 = scalar_select %p318, %s24, 1
          %p320 = scmp.lt.s32.totalorder %s317, 1
          %s321 = scalar_select %p320, %s317, 1
          %s322 = smul.addr %s319, 2
          %s323 = sadd.s32 %s321, %s322
          %s324 = smul.addr %s323, 4
          %s325 = scalar_lea.vmem %s2, %s324
          %s326 = smul.u32 2, %s26
        $region44: #{_cross_attention_impl.1} parent=31 // pred_fallthru
          _
        // Predicated region
        $region45: #{_cross_attention_impl.1} parent=31 // pred_check
          %p327 = pneg %p142
        $region46: #{_cross_attention_impl.1} parent=31 // pred_check_branch
          %329 = sbr.rel (%p327) target = $region48
        $region47: #{_cross_attention_impl.1} parent=31 // pred_region
          %p330 = scmp.lt.s32.totalorder %s24, 1
          %s331 = scalar_select %p330, %s24, 1
          %p332 = scmp.lt.s32.totalorder %s26, 0
          %s333 = scalar_select %p332, %s26, 0
          %s334 = sadd.s32 %s333, %s331
          %s335 = scalar_lea.vmem %s3, %s334
        $region48: #{_cross_attention_impl.1} parent=31 // pred_fallthru
          _
      $region32: #{_cross_attention_impl.1} parent=5 // pred_fallthru
        _
      %p336 = scmp.le.s32.totalorder 1, %s17
      %p337 = scmp.lt.s32.totalorder %s17, 3
      %p338 = pnand %p336, %p337
      %p339 = pneg %p338
      // Predicated region
      $region49: #{_cross_attention_impl.1} parent=5 // pred_check
        _
      $region50: #{_cross_attention_impl.1} parent=5 // pred_check_branch
        %341 = sbr.rel (%p338) target = $region52
      $region51: #{_cross_attention_impl.1} parent=5 // pred_region
        %s342 = ssub.s32 %s17, 1
        %p343 = scmp.lt.s32.totalorder %s27, 1
        %s344 = scalar_select %p343, %s27, 1
        %p345 = scmp.lt.s32.totalorder %s28, 0
        %s346 = scalar_select %p345, %s28, 0
        %s347 = sadd.s32 %s346, %s344
        %s348 = smul.addr %s347, 4
        %s349 = scalar_lea.vmem %s0, %s348
        %p350 = pneg %p64
        %p351 = pneg %p61
        %s352 = smul.u32 2, %s29
        %p353 = scmp.lt.s32.totalorder %s27, 1
        %s354 = scalar_select %p353, %s27, 1
        %p355 = scmp.lt.s32.totalorder %s352, 1
        %s356 = scalar_select %p355, %s352, 1
        %s357 = smul.addr %s354, 2
        %s358 = sadd.s32 %s356, %s357
        %s359 = smul.addr %s358, 4
        %s360 = scalar_lea.vmem %s1, %s359
        %p361 = pneg %p92
        %p362 = pneg %p89
        %s363 = smul.u32 2, %s29
        %p364 = scmp.lt.s32.totalorder %s27, 1
        %s365 = scalar_select %p364, %s27, 1
        %p366 = scmp.lt.s32.totalorder %s363, 1
        %s367 = scalar_select %p366, %s363, 1
        %s368 = smul.addr %s365, 2
        %s369 = sadd.s32 %s367, %s368
        %s370 = smul.addr %s369, 4
        %s371 = scalar_lea.vmem %s2, %s370
        %p372 = pneg %p120
        %p373 = pneg %p117
        %p374 = scmp.lt.s32.totalorder %s27, 1
        %s375 = scalar_select %p374, %s27, 1
        %p376 = scmp.lt.s32.totalorder %s29, 0
        %s377 = scalar_select %p376, %s29, 0
        %s378 = sadd.s32 %s377, %s375
        %s379 = scalar_lea.vmem %s3, %s378
        %p380 = pneg %p148
        %p381 = pneg %p145
        %p382 = pneg %p169
        %p383 = pneg %p166
        %p384 = pneg %p190
        %p385 = pneg %p187
        %p386 = pneg %p211
        %p387 = pneg %p208
        %p388 = pneg %p232
        %p389 = pneg %p229
        %p390 = pneg %p260
        %p391 = pneg %p257
        %s392 = sand.u32 %s247, 1
        %s393 = scalar_lea.sflag [#allocation8], %s392
        %s394 = sand.u32 %s247, 1
        %s395 = smul.addr %s394, 8
        %s396 = scalar_lea.vmem [#allocation7], %s395
        %p397 = scmp.lt.s32.totalorder %s27, 1
        %s398 = scalar_select %p397, %s27, 1
        %p399 = scmp.lt.s32.totalorder %s28, 0
        %s400 = scalar_select %p399, %s28, 0
        %s401 = sadd.s32 %s400, %s398
        %s402 = smul.addr %s401, 4
        %s403 = scalar_lea.vmem %s0, %s402
        %s404 = smul.u32 2, %s29
        %p405 = scmp.lt.s32.totalorder %s27, 1
        %s406 = scalar_select %p405, %s27, 1
        %p407 = scmp.lt.s32.totalorder %s404, 1
        %s408 = scalar_select %p407, %s404, 1
        %s409 = smul.addr %s406, 2
        %s410 = sadd.s32 %s408, %s409
        %s411 = smul.addr %s410, 4
        %s412 = scalar_lea.vmem %s1, %s411
        %s413 = smul.u32 2, %s29
        %s414 = smul.u32 2, %s29
        %p415 = scmp.lt.s32.totalorder %s27, 1
        %s416 = scalar_select %p415, %s27, 1
        %p417 = scmp.lt.s32.totalorder %s414, 1
        %s418 = scalar_select %p417, %s414, 1
        %s419 = smul.addr %s416, 2
        %s420 = sadd.s32 %s418, %s419
        %s421 = smul.addr %s420, 4
        %s422 = scalar_lea.vmem %s2, %s421
        %s423 = smul.u32 2, %s29
        %p424 = scmp.lt.s32.totalorder %s27, 1
        %s425 = scalar_select %p424, %s27, 1
        %p426 = scmp.lt.s32.totalorder %s29, 0
        %s427 = scalar_select %p426, %s29, 0
        %s428 = sadd.s32 %s427, %s425
        %s429 = scalar_lea.vmem %s3, %s428
        %p431 = scmp.eq.s32.totalorder %s29, 0
        // Predicated region
        $region53: #{_cross_attention_impl.1} parent=51 // pred_check
          %p432 = pneg %p431
        $region54: #{_cross_attention_impl.1} parent=51 // pred_check_branch
          %434 = sbr.rel (%p432) target = $region56
        $region55: #{_cross_attention_impl.1} parent=51 // pred_region
          %v435 = vld [vmem:[%s403] sm:$0xf]
          %v436 = vld [vmem:[%s4] sm:$0xf]
          %v437 = vld [vmem:[%s4 + $0x4] sm:$0xf]
          %v438 = vld [vmem:[%s4 + $0x8] sm:$0xf]
          %v439 = vld [vmem:[%s4 + $0xc] sm:$0xf]
          %v440 = vld [vmem:[%s5] sm:$0x1]
          %v442 = vlaneseq
          %v443 = vshrl.u32 %v442, 7
          %v444 = vsub.s32 0, %v443
          %v445 = vrot.slane %v440, %v444
          %v451 = vunpack.c.l.b16 %v436
          %v452 = vunpack.c.l.b16 %v437
          %v453 = vunpack.c.l.b16 %v438
          %v454 = vunpack.c.l.b16 %v439
          %v455 = vpack.c.b16 %v452, %v451
          %v456 = vpack.c.b16 %v454, %v453
          %vm459 = vcmask 261120
          %v461 = vsel %vm459, %v435, 0
          %463 = vmatprep.subr.bf16.mxu0 0
          %464 = vmatpush1.bf16.msra.mxu0 %v455
          %465 = vmatprep.subr.bf16.mxu0 0
          %466 = vmatpush1.bf16.msra.mxu0 %v456
          %467 = vmatprep.subr.bf16.mxu0 0
          %468 = vmatpush1.bf16.msra.mxu0 0
          %469 = vmatprep.subr.bf16.mxu0 0
          %470 = vmatpush1.bf16.msra.mxu0 0
          %471 = vmatprep.subr.bf16.mxu0 0
          %472 = vmatpush1.bf16.msra.mxu0 0
          %473 = vmatprep.subr.bf16.mxu0 0
          %474 = vmatpush1.bf16.msra.mxu0 0
          %475 = vmatprep.subr.bf16.mxu0 0
          %476 = vmatpush1.bf16.msra.mxu0 0
          %477 = vmatprep.subr.bf16.mxu0 0
          %478 = vmatpush1.bf16.msra.mxu0 0
          %479 = vmatprep.subr.bf16.mxu0 0
          %480 = vmatpush1.bf16.msra.mxu0 0
          %481 = vmatprep.subr.bf16.mxu0 0
          %482 = vmatpush1.bf16.msra.mxu0 0
          %483 = vmatprep.subr.bf16.mxu0 0
          %484 = vmatpush1.bf16.msra.mxu0 0
          %485 = vmatprep.subr.bf16.mxu0 0
          %486 = vmatpush1.bf16.msra.mxu0 0
          %487 = vmatprep.subr.bf16.mxu0 0
          %488 = vmatpush1.bf16.msra.mxu0 0
          %489 = vmatprep.subr.bf16.mxu0 0
          %490 = vmatpush1.bf16.msra.mxu0 0
          %491 = vmatprep.subr.bf16.mxu0 0
          %492 = vmatpush1.bf16.msra.mxu0 0
          %493 = vmatprep.subr.bf16.mxu0 0
          %494 = vmatpush1.bf16.msra.mxu0 0
          %495 = vmatprep.mubr.bf16.mxu0 0
          %496 = vmatmul.mubr.bf16.gmra.mrb[0].mxu0 %v461
          %v497 = vpop.f32.mrb[0].mxu0
          %v498 = vadd.f32 %v445, %v497
          %v499 = vpop.f32.mrb[0].mxu0
          %v500 = vpop.f32.mrb[0].mxu0
          %v501 = vpop.f32.mrb[0].mxu0
          %502 = vdwg.mxu0
          %v503 = vmul.f32 %v498, 0.35355338
          %v504 = vpack.c.bf16 %v503, %v503
          %vm505 = vcmask 257024
          %506 = vst.msk [vmem:[#allocation2] sm:$0xf] %vm505, %v504
          %vm507 = vcmask 31744
          %508 = vst.msk [vmem:[#allocation4] sm:$0xff] %vm507, -1e+30
          %509 = vst.msk [vmem:[#allocation5] sm:$0xff] %vm507, 0.0
          %510 = vst.msk [vmem:[#allocation3] sm:$0xff] %vm459, 0.0
        $region56: #{_cross_attention_impl.1} parent=51 // pred_fallthru
          _
        %v511 = vld [vmem:[%s412] sm:$0xf]
        %v512 = vld [vmem:[%s412 + $0x4] sm:$0xf]
        %v513 = vld [vmem:[%s422] sm:$0xf]
        %v514 = vld [vmem:[%s422 + $0x4] sm:$0xf]
        %v515 = vld [vmem:[%s429] sm:$0x1]
        %v517 = vlaneseq
        %v518 = vshrl.u32 %v517, 7
        %v519 = vsub.s32 0, %v518
        %v520 = vrot.slane %v515, %v519
        %v522 = vld [vmem:[#allocation2] sm:$0xf]
        %v525 = vunpack.c.l.b16 %v511
        %v526 = vunpack.c.l.b16 %v512
        %v527 = vpack.c.b16 %v526, %v525
        %vm528 = vcmask 64512
        %v530 = vsel %vm528, %v522, 0
        %v533 = vsel %vm528, %v527, 0
        %535 = vmatprep.subr.bf16.mxu0 0
        %536 = vmatpush1.bf16.xpose.msra.mxu0 %v533
        %537 = vmatprep.subr.bf16.mxu0 0
        %538 = vmatpush1.bf16.xpose.msra.mxu0 0
        %539 = vmatprep.subr.bf16.mxu0 0
        %540 = vmatpush1.bf16.xpose.msra.mxu0 0
        %541 = vmatprep.subr.bf16.mxu0 0
        %542 = vmatpush1.bf16.xpose.msra.mxu0 0
        %543 = vmatprep.subr.bf16.mxu0 0
        %544 = vmatpush1.bf16.xpose.msra.mxu0 0
        %545 = vmatprep.subr.bf16.mxu0 0
        %546 = vmatpush1.bf16.xpose.msra.mxu0 0
        %547 = vmatprep.subr.bf16.mxu0 0
        %548 = vmatpush1.bf16.xpose.msra.mxu0 0
        %549 = vmatprep.subr.bf16.mxu0 0
        %550 = vmatpush1.bf16.xpose.msra.mxu0 0
        %551 = vmatprep.subr.bf16.mxu0 0
        %552 = vmatpush1.bf16.xpose.msra.mxu0 0
        %553 = vmatprep.subr.bf16.mxu0 0
        %554 = vmatpush1.bf16.xpose.msra.mxu0 0
        %555 = vmatprep.subr.bf16.mxu0 0
        %556 = vmatpush1.bf16.xpose.msra.mxu0 0
        %557 = vmatprep.subr.bf16.mxu0 0
        %558 = vmatpush1.bf16.xpose.msra.mxu0 0
        %559 = vmatprep.subr.bf16.mxu0 0
        %560 = vmatpush1.bf16.xpose.msra.mxu0 0
        %561 = vmatprep.subr.bf16.mxu0 0
        %562 = vmatpush1.bf16.xpose.msra.mxu0 0
        %563 = vmatprep.subr.bf16.mxu0 0
        %564 = vmatpush1.bf16.xpose.msra.mxu0 0
        %565 = vmatprep.subr.bf16.mxu0 0
        %566 = vmatpush1.bf16.xpose.msra.mxu0 0
        %567 = vmatprep.mubr.bf16.mxu0 0
        %568 = vmatmul.mubr.bf16.gmra.mrb[0].mxu0 %v530
        %v569 = vpop.f32.mrb[0].mxu0
        %v570 = vadd.f32 %v520, %v569
        %v571 = vpop.f32.mrb[0].mxu0
        %v572 = vpop.f32.mrb[0].mxu0
        %v573 = vpop.f32.mrb[0].mxu0
        %574 = vdwg.mxu0
        %v575 = vld [vmem:[#allocation4] sm:$0xff]
        %vm576 = vcmask 130048
        %v577 = vsel %vm576, %v570, -inf
        %578 = vmax.xlane.f32.xlu0 %v577
        %v579 = vpop.xlane.xlu0 %578
        %v580 = vmax.f32 %v575, %v579
        %v581 = vsub.f32 %v575, %v580
        %v582 = vmul.f32 %v581, 1.442695
        %v583 = vpow.pop %v582
        %585 = vset.pattern.permute.xlu0 0
        %586 = vperm.xlu0 %585, %v580
        %v587 = vpop.permute.xlu0 %586
        %v589 = vsub.f32 %v570, %v587
        %v590 = vmul.f32 %v589, 1.442695
        %v591 = vpow.pop %v590
        %v592 = vld [vmem:[#allocation5] sm:$0xff]
        %v593 = vmul.f32 %v583, %v592
        %v594 = vsel %vm576, %v591, 0.0
        %595 = vadd.xlane.f32.xlu0 %v594
        %v596 = vpop.xlane.xlu0 %595
        %v597 = vadd.f32 %v593, %v596
        %vm598 = vcmask 7168
        %599 = vst.msk [vmem:[#allocation5] sm:$0xff] %vm598, %v597
        %v600 = vld [vmem:[#allocation3] sm:$0xff]
        %602 = vset.pattern.permute.xlu0 0
        %603 = vperm.xlu0 %602, %v583
        %v604 = vpop.permute.xlu0 %603
        %v606 = vmul.f32 %v604, %v600
        %v607 = vpack.c.bf16 %v591, %v591
        %v610 = vunpack.c.l.b16 %v513
        %v611 = vunpack.c.l.b16 %v514
        %v612 = vpack.c.b16 %v611, %v610
        %v615 = vsel %vm576, %v607, 0
        %617 = vmatprep.subr.bf16.mxu0 0
        %618 = vmatpush1.bf16.msra.mxu0 %v612
        %619 = vmatprep.subr.bf16.mxu0 0
        %620 = vmatpush1.bf16.msra.mxu0 0
        %621 = vmatprep.subr.bf16.mxu0 0
        %622 = vmatpush1.bf16.msra.mxu0 0
        %623 = vmatprep.subr.bf16.mxu0 0
        %624 = vmatpush1.bf16.msra.mxu0 0
        %625 = vmatprep.subr.bf16.mxu0 0
        %626 = vmatpush1.bf16.msra.mxu0 0
        %627 = vmatprep.subr.bf16.mxu0 0
        %628 = vmatpush1.bf16.msra.mxu0 0
        %629 = vmatprep.subr.bf16.mxu0 0
        %630 = vmatpush1.bf16.msra.mxu0 0
        %631 = vmatprep.subr.bf16.mxu0 0
        %632 = vmatpush1.bf16.msra.mxu0 0
        %633 = vmatprep.subr.bf16.mxu0 0
        %634 = vmatpush1.bf16.msra.mxu0 0
        %635 = vmatprep.subr.bf16.mxu0 0
        %636 = vmatpush1.bf16.msra.mxu0 0
        %637 = vmatprep.subr.bf16.mxu0 0
        %638 = vmatpush1.bf16.msra.mxu0 0
        %639 = vmatprep.subr.bf16.mxu0 0
        %640 = vmatpush1.bf16.msra.mxu0 0
        %641 = vmatprep.subr.bf16.mxu0 0
        %642 = vmatpush1.bf16.msra.mxu0 0
        %643 = vmatprep.subr.bf16.mxu0 0
        %644 = vmatpush1.bf16.msra.mxu0 0
        %645 = vmatprep.subr.bf16.mxu0 0
        %646 = vmatpush1.bf16.msra.mxu0 0
        %647 = vmatprep.subr.bf16.mxu0 0
        %648 = vmatpush1.bf16.msra.mxu0 0
        %649 = vmatprep.mubr.bf16.mxu0 0
        %650 = vmatmul.mubr.bf16.gmra.mrb[0].mxu0 %v615
        %v651 = vpop.f32.mrb[0].mxu0
        %v652 = vadd.f32 0.0, %v651
        %v653 = vpop.f32.mrb[0].mxu0
        %v654 = vpop.f32.mrb[0].mxu0
        %v655 = vpop.f32.mrb[0].mxu0
        %656 = vdwg.mxu0
        %v657 = vadd.f32 %v606, %v652
        %658 = vst.msk [vmem:[#allocation3] sm:$0xff] %vm528, %v657
        %659 = vst.msk [vmem:[#allocation4] sm:$0xff] %vm598, %v580
        %v660 = vld [vmem:[#allocation2] sm:$0xf]
        %v662 = vunpack.c.l.b16 %v660
        %v663 = vpack.c.b16 %v662, %v662
        %664 = vrot.lane.b32.xlu0 %v663, 120
        %v665 = vpop.permute.xlu0 %664
        %666 = vrot.lane.b32.xlu0 %v527, 120
        %v667 = vpop.permute.xlu0 %666
        %v669 = vsel %vm528, %v665, 0
        %v672 = vsel %vm528, %v667, 0
        %674 = vmatprep.subr.bf16.mxu0 0
        %675 = vmatpush1.bf16.xpose.msra.mxu0 %v672
        %676 = vmatprep.subr.bf16.mxu0 0
        %677 = vmatpush1.bf16.xpose.msra.mxu0 0
        %678 = vmatprep.subr.bf16.mxu0 0
        %679 = vmatpush1.bf16.xpose.msra.mxu0 0
        %680 = vmatprep.subr.bf16.mxu0 0
        %681 = vmatpush1.bf16.xpose.msra.mxu0 0
        %682 = vmatprep.subr.bf16.mxu0 0
        %683 = vmatpush1.bf16.xpose.msra.mxu0 0
        %684 = vmatprep.subr.bf16.mxu0 0
        %685 = vmatpush1.bf16.xpose.msra.mxu0 0
        %686 = vmatprep.subr.bf16.mxu0 0
        %687 = vmatpush1.bf16.xpose.msra.mxu0 0
        %688 = vmatprep.subr.bf16.mxu0 0
        %689 = vmatpush1.bf16.xpose.msra.mxu0 0
        %690 = vmatprep.subr.bf16.mxu0 0
        %691 = vmatpush1.bf16.xpose.msra.mxu0 0
        %692 = vmatprep.subr.bf16.mxu0 0
        %693 = vmatpush1.bf16.xpose.msra.mxu0 0
        %694 = vmatprep.subr.bf16.mxu0 0
        %695 = vmatpush1.bf16.xpose.msra.mxu0 0
        %696 = vmatprep.subr.bf16.mxu0 0
        %697 = vmatpush1.bf16.xpose.msra.mxu0 0
        %698 = vmatprep.subr.bf16.mxu0 0
        %699 = vmatpush1.bf16.xpose.msra.mxu0 0
        %700 = vmatprep.subr.bf16.mxu0 0
        %701 = vmatpush1.bf16.xpose.msra.mxu0 0
        %702 = vmatprep.subr.bf16.mxu0 0
        %703 = vmatpush1.bf16.xpose.msra.mxu0 0
        %704 = vmatprep.subr.bf16.mxu0 0
        %705 = vmatpush1.bf16.xpose.msra.mxu0 0
        %706 = vmatprep.mubr.bf16.mxu0 0
        %707 = vmatmul.mubr.bf16.gmra.mrb[0].mxu0 %v669
        %v708 = vpop.f32.mrb[0].mxu0
        %v709 = vadd.f32 %v520, %v708
        %v710 = vpop.f32.mrb[0].mxu0
        %v711 = vpop.f32.mrb[0].mxu0
        %v712 = vpop.f32.mrb[0].mxu0
        %713 = vdwg.mxu0
        %v714 = vld [vmem:[#allocation4] sm:$0xff]
        %v715 = vsel %vm576, %v709, -inf
        %716 = vmax.xlane.f32.xlu0 %v715
        %v717 = vpop.xlane.xlu0 %716
        %v718 = vmax.f32 %v714, %v717
        %v719 = vsub.f32 %v714, %v718
        %v720 = vmul.f32 %v719, 1.442695
        %v721 = vpow.pop %v720
        %723 = vset.pattern.permute.xlu0 1
        %724 = vperm.xlu0 %723, %v718
        %v725 = vpop.permute.xlu0 %724
        %v727 = vsub.f32 %v709, %v725
        %v728 = vmul.f32 %v727, 1.442695
        %v729 = vpow.pop %v728
        %v730 = vld [vmem:[#allocation5] sm:$0xff]
        %v731 = vmul.f32 %v721, %v730
        %v732 = vsel %vm576, %v729, 0.0
        %733 = vadd.xlane.f32.xlu0 %v732
        %v734 = vpop.xlane.xlu0 %733
        %v735 = vadd.f32 %v731, %v734
        %vm736 = vcmask 15368
        %737 = vst.msk [vmem:[#allocation5] sm:$0xff] %vm736, %v735
        %v738 = vld [vmem:[#allocation3] sm:$0xff]
        %740 = vset.pattern.permute.xlu0 1
        %741 = vperm.xlu0 %740, %v721
        %v742 = vpop.permute.xlu0 %741
        %v744 = vmul.f32 %v742, %v738
        %v745 = vpack.c.bf16 %v729, %v729
        %746 = vrot.lane.b32.xlu0 %v612, 120
        %v747 = vpop.permute.xlu0 %746
        %v750 = vsel %vm576, %v745, 0
        %752 = vmatprep.subr.bf16.mxu0 0
        %753 = vmatpush1.bf16.msra.mxu0 %v747
        %754 = vmatprep.subr.bf16.mxu0 0
        %755 = vmatpush1.bf16.msra.mxu0 0
        %756 = vmatprep.subr.bf16.mxu0 0
        %757 = vmatpush1.bf16.msra.mxu0 0
        %758 = vmatprep.subr.bf16.mxu0 0
        %759 = vmatpush1.bf16.msra.mxu0 0
        %760 = vmatprep.subr.bf16.mxu0 0
        %761 = vmatpush1.bf16.msra.mxu0 0
        %762 = vmatprep.subr.bf16.mxu0 0
        %763 = vmatpush1.bf16.msra.mxu0 0
        %764 = vmatprep.subr.bf16.mxu0 0
        %765 = vmatpush1.bf16.msra.mxu0 0
        %766 = vmatprep.subr.bf16.mxu0 0
        %767 = vmatpush1.bf16.msra.mxu0 0
        %768 = vmatprep.subr.bf16.mxu0 0
        %769 = vmatpush1.bf16.msra.mxu0 0
        %770 = vmatprep.subr.bf16.mxu0 0
        %771 = vmatpush1.bf16.msra.mxu0 0
        %772 = vmatprep.subr.bf16.mxu0 0
        %773 = vmatpush1.bf16.msra.mxu0 0
        %774 = vmatprep.subr.bf16.mxu0 0
        %775 = vmatpush1.bf16.msra.mxu0 0
        %776 = vmatprep.subr.bf16.mxu0 0
        %777 = vmatpush1.bf16.msra.mxu0 0
        %778 = vmatprep.subr.bf16.mxu0 0
        %779 = vmatpush1.bf16.msra.mxu0 0
        %780 = vmatprep.subr.bf16.mxu0 0
        %781 = vmatpush1.bf16.msra.mxu0 0
        %782 = vmatprep.subr.bf16.mxu0 0
        %783 = vmatpush1.bf16.msra.mxu0 0
        %784 = vmatprep.mubr.bf16.mxu0 0
        %785 = vmatmul.mubr.bf16.gmra.mrb[0].mxu0 %v750
        %v786 = vpop.f32.mrb[0].mxu0
        %v787 = vadd.f32 0.0, %v786
        %v788 = vpop.f32.mrb[0].mxu0
        %v789 = vpop.f32.mrb[0].mxu0
        %v790 = vpop.f32.mrb[0].mxu0
        %791 = vdwg.mxu0
        %793 = vrot.lane.b32.xlu0 %v787, 8
        %v794 = vpop.permute.xlu0 %793
        %v796 = vadd.f32 %v744, %v794
        %vm797 = vcmask 130112
        %798 = vst.msk [vmem:[#allocation3] sm:$0xff] %vm797, %v796
        %799 = vst.msk [vmem:[#allocation4] sm:$0xff] %vm736, %v718
        %v800 = vld [vmem:[#allocation2] sm:$0xf]
        %v802 = vunpack.c.l.b16 %v800
        %v803 = vpack.c.b16 %v802, %v802
        %804 = vrot.lane.b32.xlu0 %v803, 112
        %v805 = vpop.permute.xlu0 %804
        %806 = vrot.lane.b32.xlu0 %v527, 112
        %v807 = vpop.permute.xlu0 %806
        %v809 = vsel %vm528, %v805, 0
        %v812 = vsel %vm528, %v807, 0
        %814 = vmatprep.subr.bf16.mxu0 0
        %815 = vmatpush1.bf16.xpose.msra.mxu0 %v812
        %816 = vmatprep.subr.bf16.mxu0 0
        %817 = vmatpush1.bf16.xpose.msra.mxu0 0
        %818 = vmatprep.subr.bf16.mxu0 0
        %819 = vmatpush1.bf16.xpose.msra.mxu0 0
        %820 = vmatprep.subr.bf16.mxu0 0
        %821 = vmatpush1.bf16.xpose.msra.mxu0 0
        %822 = vmatprep.subr.bf16.mxu0 0
        %823 = vmatpush1.bf16.xpose.msra.mxu0 0
        %824 = vmatprep.subr.bf16.mxu0 0
        %825 = vmatpush1.bf16.xpose.msra.mxu0 0
        %826 = vmatprep.subr.bf16.mxu0 0
        %827 = vmatpush1.bf16.xpose.msra.mxu0 0
        %828 = vmatprep.subr.bf16.mxu0 0
        %829 = vmatpush1.bf16.xpose.msra.mxu0 0
        %830 = vmatprep.subr.bf16.mxu0 0
        %831 = vmatpush1.bf16.xpose.msra.mxu0 0
        %832 = vmatprep.subr.bf16.mxu0 0
        %833 = vmatpush1.bf16.xpose.msra.mxu0 0
        %834 = vmatprep.subr.bf16.mxu0 0
        %835 = vmatpush1.bf16.xpose.msra.mxu0 0
        %836 = vmatprep.subr.bf16.mxu0 0
        %837 = vmatpush1.bf16.xpose.msra.mxu0 0
        %838 = vmatprep.subr.bf16.mxu0 0
        %839 = vmatpush1.bf16.xpose.msra.mxu0 0
        %840 = vmatprep.subr.bf16.mxu0 0
        %841 = vmatpush1.bf16.xpose.msra.mxu0 0
        %842 = vmatprep.subr.bf16.mxu0 0
        %843 = vmatpush1.bf16.xpose.msra.mxu0 0
        %844 = vmatprep.subr.bf16.mxu0 0
        %845 = vmatpush1.bf16.xpose.msra.mxu0 0
        %846 = vmatprep.mubr.bf16.mxu0 0
        %847 = vmatmul.mubr.bf16.gmra.mrb[0].mxu0 %v809
        %v848 = vpop.f32.mrb[0].mxu0
        %v849 = vadd.f32 %v520, %v848
        %v850 = vpop.f32.mrb[0].mxu0
        %v851 = vpop.f32.mrb[0].mxu0
        %v852 = vpop.f32.mrb[0].mxu0
        %853 = vdwg.mxu0
        %v854 = vld [vmem:[#allocation4] sm:$0xff]
        %v855 = vsel %vm576, %v849, -inf
        %856 = vmax.xlane.f32.xlu0 %v855
        %v857 = vpop.xlane.xlu0 %856
        %v858 = vmax.f32 %v854, %v857
        %v859 = vsub.f32 %v854, %v858
        %v860 = vmul.f32 %v859, 1.442695
        %v861 = vpow.pop %v860
        %863 = vset.pattern.permute.xlu0 2
        %864 = vperm.xlu0 %863, %v858
        %v865 = vpop.permute.xlu0 %864
        %v867 = vsub.f32 %v849, %v865
        %v868 = vmul.f32 %v867, 1.442695
        %v869 = vpow.pop %v868
        %v870 = vld [vmem:[#allocation5] sm:$0xff]
        %v871 = vmul.f32 %v861, %v870
        %v872 = vsel %vm576, %v869, 0.0
        %873 = vadd.xlane.f32.xlu0 %v872
        %v874 = vpop.xlane.xlu0 %873
        %v875 = vadd.f32 %v871, %v874
        %vm876 = vcmask 23568
        %877 = vst.msk [vmem:[#allocation5] sm:$0xff] %vm876, %v875
        %v878 = vld [vmem:[#allocation3] sm:$0xff]
        %880 = vset.pattern.permute.xlu0 2
        %881 = vperm.xlu0 %880, %v861
        %v882 = vpop.permute.xlu0 %881
        %v884 = vmul.f32 %v882, %v878
        %v885 = vpack.c.bf16 %v869, %v869
        %886 = vrot.lane.b32.xlu0 %v612, 112
        %v887 = vpop.permute.xlu0 %886
        %v890 = vsel %vm576, %v885, 0
        %892 = vmatprep.subr.bf16.mxu0 0
        %893 = vmatpush1.bf16.msra.mxu0 %v887
        %894 = vmatprep.subr.bf16.mxu0 0
        %895 = vmatpush1.bf16.msra.mxu0 0
        %896 = vmatprep.subr.bf16.mxu0 0
        %897 = vmatpush1.bf16.msra.mxu0 0
        %898 = vmatprep.subr.bf16.mxu0 0
        %899 = vmatpush1.bf16.msra.mxu0 0
        %900 = vmatprep.subr.bf16.mxu0 0
        %901 = vmatpush1.bf16.msra.mxu0 0
        %902 = vmatprep.subr.bf16.mxu0 0
        %903 = vmatpush1.bf16.msra.mxu0 0
        %904 = vmatprep.subr.bf16.mxu0 0
        %905 = vmatpush1.bf16.msra.mxu0 0
        %906 = vmatprep.subr.bf16.mxu0 0
        %907 = vmatpush1.bf16.msra.mxu0 0
        %908 = vmatprep.subr.bf16.mxu0 0
        %909 = vmatpush1.bf16.msra.mxu0 0
        %910 = vmatprep.subr.bf16.mxu0 0
        %911 = vmatpush1.bf16.msra.mxu0 0
        %912 = vmatprep.subr.bf16.mxu0 0
        %913 = vmatpush1.bf16.msra.mxu0 0
        %914 = vmatprep.subr.bf16.mxu0 0
        %915 = vmatpush1.bf16.msra.mxu0 0
        %916 = vmatprep.subr.bf16.mxu0 0
        %917 = vmatpush1.bf16.msra.mxu0 0
        %918 = vmatprep.subr.bf16.mxu0 0
        %919 = vmatpush1.bf16.msra.mxu0 0
        %920 = vmatprep.subr.bf16.mxu0 0
        %921 = vmatpush1.bf16.msra.mxu0 0
        %922 = vmatprep.subr.bf16.mxu0 0
        %923 = vmatpush1.bf16.msra.mxu0 0
        %924 = vmatprep.mubr.bf16.mxu0 0
        %925 = vmatmul.mubr.bf16.gmra.mrb[0].mxu0 %v890
        %v926 = vpop.f32.mrb[0].mxu0
        %v927 = vadd.f32 0.0, %v926
        %v928 = vpop.f32.mrb[0].mxu0
        %v929 = vpop.f32.mrb[0].mxu0
        %v930 = vpop.f32.mrb[0].mxu0
        %931 = vdwg.mxu0
        %933 = vrot.lane.b32.xlu0 %v927, 16
        %v934 = vpop.permute.xlu0 %933
        %v936 = vadd.f32 %v884, %v934
        %vm937 = vcmask 195712
        %938 = vst.msk [vmem:[#allocation3] sm:$0xff] %vm937, %v936
        %939 = vst.msk [vmem:[#allocation4] sm:$0xff] %vm876, %v858
        %v940 = vld [vmem:[#allocation2] sm:$0xf]
        %v942 = vunpack.c.l.b16 %v940
        %v943 = vpack.c.b16 %v942, %v942
        %944 = vrot.lane.b32.xlu0 %v943, 104
        %v945 = vpop.permute.xlu0 %944
        %946 = vrot.lane.b32.xlu0 %v527, 104
        %v947 = vpop.permute.xlu0 %946
        %v949 = vsel %vm528, %v945, 0
        %v952 = vsel %vm528, %v947, 0
        %954 = vmatprep.subr.bf16.mxu0 0
        %955 = vmatpush1.bf16.xpose.msra.mxu0 %v952
        %956 = vmatprep.subr.bf16.mxu0 0
        %957 = vmatpush1.bf16.xpose.msra.mxu0 0
        %958 = vmatprep.subr.bf16.mxu0 0
        %959 = vmatpush1.bf16.xpose.msra.mxu0 0
        %960 = vmatprep.subr.bf16.mxu0 0
        %961 = vmatpush1.bf16.xpose.msra.mxu0 0
        %962 = vmatprep.subr.bf16.mxu0 0
        %963 = vmatpush1.bf16.xpose.msra.mxu0 0
        %964 = vmatprep.subr.bf16.mxu0 0
        %965 = vmatpush1.bf16.xpose.msra.mxu0 0
        %966 = vmatprep.subr.bf16.mxu0 0
        %967 = vmatpush1.bf16.xpose.msra.mxu0 0
        %968 = vmatprep.subr.bf16.mxu0 0
        %969 = vmatpush1.bf16.xpose.msra.mxu0 0
        %970 = vmatprep.subr.bf16.mxu0 0
        %971 = vmatpush1.bf16.xpose.msra.mxu0 0
        %972 = vmatprep.subr.bf16.mxu0 0
        %973 = vmatpush1.bf16.xpose.msra.mxu0 0
        %974 = vmatprep.subr.bf16.mxu0 0
        %975 = vmatpush1.bf16.xpose.msra.mxu0 0
        %976 = vmatprep.subr.bf16.mxu0 0
        %977 = vmatpush1.bf16.xpose.msra.mxu0 0
        %978 = vmatprep.subr.bf16.mxu0 0
        %979 = vmatpush1.bf16.xpose.msra.mxu0 0
        %980 = vmatprep.subr.bf16.mxu0 0
        %981 = vmatpush1.bf16.xpose.msra.mxu0 0
        %982 = vmatprep.subr.bf16.mxu0 0
        %983 = vmatpush1.bf16.xpose.msra.mxu0 0
        %984 = vmatprep.subr.bf16.mxu0 0
        %985 = vmatpush1.bf16.xpose.msra.mxu0 0
        %986 = vmatprep.mubr.bf16.mxu0 0
        %987 = vmatmul.mubr.bf16.gmra.mrb[0].mxu0 %v949
        %v988 = vpop.f32.mrb[0].mxu0
        %v989 = vadd.f32 %v520, %v988
        %v990 = vpop.f32.mrb[0].mxu0
        %v991 = vpop.f32.mrb[0].mxu0
        %v992 = vpop.f32.mrb[0].mxu0
        %993 = vdwg.mxu0
        %v994 = vld [vmem:[#allocation4] sm:$0xff]
        %v995 = vsel %vm576, %v989, -inf
        %996 = vmax.xlane.f32.xlu0 %v995
        %v997 = vpop.xlane.xlu0 %996
        %v998 = vmax.f32 %v994, %v997
        %v999 = vsub.f32 %v994, %v998
        %v1000 = vmul.f32 %v999, 1.442695
        %v1001 = vpow.pop %v1000
        %1003 = vset.pattern.permute.xlu0 3
        %1004 = vperm.xlu0 %1003, %v998
        %v1005 = vpop.permute.xlu0 %1004
        %v1007 = vsub.f32 %v989, %v1005
        %v1008 = vmul.f32 %v1007, 1.442695
        %v1009 = vpow.pop %v1008
        %v1010 = vld [vmem:[#allocation5] sm:$0xff]
        %v1011 = vmul.f32 %v1001, %v1010
        %v1012 = vsel %vm576, %v1009, 0.0
        %1013 = vadd.xlane.f32.xlu0 %v1012
        %v1014 = vpop.xlane.xlu0 %1013
        %v1015 = vadd.f32 %v1011, %v1014
        %vm1016 = vcmask 31768
        %1017 = vst.msk [vmem:[#allocation5] sm:$0xff] %vm1016, %v1015
        %v1018 = vld [vmem:[#allocation3] sm:$0xff]
        %1020 = vset.pattern.permute.xlu0 3
        %1021 = vperm.xlu0 %1020, %v1001
        %v1022 = vpop.permute.xlu0 %1021
        %v1024 = vmul.f32 %v1022, %v1018
        %v1025 = vpack.c.bf16 %v1009, %v1009
        %1026 = vrot.lane.b32.xlu0 %v612, 104
        %v1027 = vpop.permute.xlu0 %1026
        %v1030 = vsel %vm576, %v1025, 0
        %1032 = vmatprep.subr.bf16.mxu0 0
        %1033 = vmatpush1.bf16.msra.mxu0 %v1027
        %1034 = vmatprep.subr.bf16.mxu0 0
        %1035 = vmatpush1.bf16.msra.mxu0 0
        %1036 = vmatprep.subr.bf16.mxu0 0
        %1037 = vmatpush1.bf16.msra.mxu0 0
        %1038 = vmatprep.subr.bf16.mxu0 0
        %1039 = vmatpush1.bf16.msra.mxu0 0
        %1040 = vmatprep.subr.bf16.mxu0 0
        %1041 = vmatpush1.bf16.msra.mxu0 0
        %1042 = vmatprep.subr.bf16.mxu0 0
        %1043 = vmatpush1.bf16.msra.mxu0 0
        %1044 = vmatprep.subr.bf16.mxu0 0
        %1045 = vmatpush1.bf16.msra.mxu0 0
        %1046 = vmatprep.subr.bf16.mxu0 0
        %1047 = vmatpush1.bf16.msra.mxu0 0
        %1048 = vmatprep.subr.bf16.mxu0 0
        %1049 = vmatpush1.bf16.msra.mxu0 0
        %1050 = vmatprep.subr.bf16.mxu0 0
        %1051 = vmatpush1.bf16.msra.mxu0 0
        %1052 = vmatprep.subr.bf16.mxu0 0
        %1053 = vmatpush1.bf16.msra.mxu0 0
        %1054 = vmatprep.subr.bf16.mxu0 0
        %1055 = vmatpush1.bf16.msra.mxu0 0
        %1056 = vmatprep.subr.bf16.mxu0 0
        %1057 = vmatpush1.bf16.msra.mxu0 0
        %1058 = vmatprep.subr.bf16.mxu0 0
        %1059 = vmatpush1.bf16.msra.mxu0 0
        %1060 = vmatprep.subr.bf16.mxu0 0
        %1061 = vmatpush1.bf16.msra.mxu0 0
        %1062 = vmatprep.subr.bf16.mxu0 0
        %1063 = vmatpush1.bf16.msra.mxu0 0
        %1064 = vmatprep.mubr.bf16.mxu0 0
        %1065 = vmatmul.mubr.bf16.gmra.mrb[0].mxu0 %v1030
        %v1066 = vpop.f32.mrb[0].mxu0
        %v1067 = vadd.f32 0.0, %v1066
        %v1068 = vpop.f32.mrb[0].mxu0
        %v1069 = vpop.f32.mrb[0].mxu0
        %v1070 = vpop.f32.mrb[0].mxu0
        %1071 = vdwg.mxu0
        %1073 = vrot.lane.b32.xlu0 %v1067, 24
        %v1074 = vpop.permute.xlu0 %1073
        %v1076 = vadd.f32 %v1024, %v1074
        %vm1077 = vcmask 261312
        %1078 = vst.msk [vmem:[#allocation3] sm:$0xff] %vm1077, %v1076
        %1079 = vst.msk [vmem:[#allocation4] sm:$0xff] %vm1016, %v998
        // Predicated region
        $region57: #{_cross_attention_impl.1} parent=51 // pred_check
          %p1080 = pneg %p431
        $region58: #{_cross_attention_impl.1} parent=51 // pred_check_branch
          %1082 = sbr.rel (%p1080) target = $region60
        $region59: #{_cross_attention_impl.1} parent=51 // pred_region
          %v1083 = vld [vmem:[#allocation5] sm:$0xff]
          %v1084 = vrcp.pop %v1083
          %v1085 = vld [vmem:[#allocation3] sm:$0xff]
          %1087 = vset.pattern.permute.xlu0 0
          %1088 = vperm.xlu0 %1087, %v1084
          %v1089 = vpop.permute.xlu0 %1088
          %v1091 = vmul.f32 %v1085, %v1089
          %v1092 = vpack.c.bf16 %v1091, %v1091
          %vm1093 = vcmask 60416
          %1094 = vst.msk [vmem:[#allocation6] sm:$0xf] %vm1093, %v1092
          %v1095 = vld [vmem:[#allocation5] sm:$0xff]
          %v1096 = vrcp.pop %v1095
          %v1097 = vld [vmem:[#allocation3] sm:$0xff]
          %1099 = vset.pattern.permute.xlu0 1
          %1100 = vperm.xlu0 %1099, %v1096
          %v1101 = vpop.permute.xlu0 %1100
          %v1103 = vmul.f32 %v1097, %v1101
          %v1104 = vpack.c.bf16 %v1103, %v1103
          %vm1105 = vcmask 126016
          %1106 = vst.msk [vmem:[#allocation6] sm:$0xf] %vm1105, %v1104
          %v1107 = vld [vmem:[#allocation5] sm:$0xff]
          %v1108 = vrcp.pop %v1107
          %v1109 = vld [vmem:[#allocation3] sm:$0xff]
          %1111 = vset.pattern.permute.xlu0 2
          %1112 = vperm.xlu0 %1111, %v1108
          %v1113 = vpop.permute.xlu0 %1112
          %v1115 = vmul.f32 %v1109, %v1113
          %v1116 = vpack.c.bf16 %v1115, %v1115
          %vm1117 = vcmask 191616
          %1118 = vst.msk [vmem:[#allocation6] sm:$0xf] %vm1117, %v1116
          %v1119 = vld [vmem:[#allocation5] sm:$0xff]
          %v1120 = vrcp.pop %v1119
          %v1121 = vld [vmem:[#allocation3] sm:$0xff]
          %1123 = vset.pattern.permute.xlu0 3
          %1124 = vperm.xlu0 %1123, %v1120
          %v1125 = vpop.permute.xlu0 %1124
          %v1127 = vmul.f32 %v1121, %v1125
          %v1128 = vpack.c.bf16 %v1127, %v1127
          %vm1129 = vcmask 257216
          %1130 = vst.msk [vmem:[#allocation6] sm:$0xf] %vm1129, %v1128
          %v1131 = vld [vmem:[#allocation6] sm:$0xf]
          %v1132 = vld [vmem:[%s6] sm:$0xf]
          %v1133 = vld [vmem:[%s6 + $0x4] sm:$0xf]
          %v1134 = vld [vmem:[%s6 + $0x8] sm:$0xf]
          %v1135 = vld [vmem:[%s6 + $0xc] sm:$0xf]
          %v1136 = vld [vmem:[%s7] sm:$0x1]
          %v1138 = vlaneseq
          %v1139 = vshrl.u32 %v1138, 7
          %v1140 = vsub.s32 0, %v1139
          %v1141 = vrot.slane %v1136, %v1140
          %v1147 = vunpack.c.l.b16 %v1132
          %v1148 = vunpack.c.l.b16 %v1133
          %v1149 = vunpack.c.l.b16 %v1134
          %v1150 = vunpack.c.l.b16 %v1135
          %v1151 = vpack.c.b16 %v1148, %v1147
          %v1152 = vpack.c.b16 %v1150, %v1149
          %vm1155 = vcmask 261120
          %v1157 = vsel %vm1155, %v1131, 0
          %1159 = vmatprep.subr.bf16.mxu0 0
          %1160 = vmatpush1.bf16.msra.mxu0 %v1151
          %1161 = vmatprep.subr.bf16.mxu0 0
          %1162 = vmatpush1.bf16.msra.mxu0 %v1152
          %1163 = vmatprep.subr.bf16.mxu0 0
          %1164 = vmatpush1.bf16.msra.mxu0 0
          %1165 = vmatprep.subr.bf16.mxu0 0
          %1166 = vmatpush1.bf16.msra.mxu0 0
          %1167 = vmatprep.subr.bf16.mxu0 0
          %1168 = vmatpush1.bf16.msra.mxu0 0
          %1169 = vmatprep.subr.bf16.mxu0 0
          %1170 = vmatpush1.bf16.msra.mxu0 0
          %1171 = vmatprep.subr.bf16.mxu0 0
          %1172 = vmatpush1.bf16.msra.mxu0 0
          %1173 = vmatprep.subr.bf16.mxu0 0
          %1174 = vmatpush1.bf16.msra.mxu0 0
          %1175 = vmatprep.subr.bf16.mxu0 0
          %1176 = vmatpush1.bf16.msra.mxu0 0
          %1177 = vmatprep.subr.bf16.mxu0 0
          %1178 = vmatpush1.bf16.msra.mxu0 0
          %1179 = vmatprep.subr.bf16.mxu0 0
          %1180 = vmatpush1.bf16.msra.mxu0 0
          %1181 = vmatprep.subr.bf16.mxu0 0
          %1182 = vmatpush1.bf16.msra.mxu0 0
          %1183 = vmatprep.subr.bf16.mxu0 0
          %1184 = vmatpush1.bf16.msra.mxu0 0
          %1185 = vmatprep.subr.bf16.mxu0 0
          %1186 = vmatpush1.bf16.msra.mxu0 0
          %1187 = vmatprep.subr.bf16.mxu0 0
          %1188 = vmatpush1.bf16.msra.mxu0 0
          %1189 = vmatprep.subr.bf16.mxu0 0
          %1190 = vmatpush1.bf16.msra.mxu0 0
          %1191 = vmatprep.mubr.bf16.mxu0 0
          %1192 = vmatmul.mubr.bf16.gmra.mrb[0].mxu0 %v1157
          %v1193 = vpop.f32.mrb[0].mxu0
          %v1194 = vadd.f32 %v1141, %v1193
          %v1195 = vpop.f32.mrb[0].mxu0
          %v1196 = vpop.f32.mrb[0].mxu0
          %v1197 = vpop.f32.mrb[0].mxu0
          %1198 = vdwg.mxu0
          %1199 = vst.msk [vmem:[%s396] sm:$0xff] %vm1155, %v1194
        $region60: #{_cross_attention_impl.1} parent=51 // pred_fallthru
          _
        %s1200 = sand.u32 %s247, 1
        %s1201 = scalar_lea.sflag [#allocation8], %s1200
        %s1202 = sand.u32 %s247, 1
        %s1203 = smul.addr %s1202, 8
        %s1204 = scalar_lea.vmem [#allocation7], %s1203
        // Predicated region
        $region61: #{_cross_attention_impl.1} parent=51 // pred_check
          %p1205 = pneg %p257
        $region62: #{_cross_attention_impl.1} parent=51 // pred_check_branch
          %1207 = sbr.rel (%p1205) target = $region64
        $region63: #{_cross_attention_impl.1} parent=51 // pred_region
          %s1209 = ssub.s32 128, 128
          %1210 = vsyncadd %s1201, %s1209
          %s1211 = sadd.s32 %s28, %s27
          %s1212 = smul.addr %s1211, 128
          %s1213 = scalar_lea.hbm %s8, %s1212
          %s1215 = sshll.u32 %s1204, 4
          %s1216 = int_to_ptr.vmem [resolvable:$true] %s1215
          %1218 = dma.vmem_to_hbm [thread:$0]  %s1216, 128, %s1213, %s1201
        $region64: #{_cross_attention_impl.1} parent=51 // pred_fallthru
          _
      $region52: #{_cross_attention_impl.1} parent=5 // pred_fallthru
        _
      %p1219 = scmp.le.s32.totalorder 2, %s17
      // Predicated region
      $region65: #{_cross_attention_impl.1} parent=5 // pred_check
        %p1220 = pneg %p1219
      $region66: #{_cross_attention_impl.1} parent=5 // pred_check_branch
        %1222 = sbr.rel (%p1220) target = $region68
      $region67: #{_cross_attention_impl.1} parent=5 // pred_region
        %s1223 = ssub.s32 %s17, 2
        // Predicated region
        $region69: #{_cross_attention_impl.1} parent=67 // pred_check
          %p1224 = pneg %p263
        $region70: #{_cross_attention_impl.1} parent=67 // pred_check_branch
          %1226 = sbr.rel (%p1224) target = $region72
        $region71: #{_cross_attention_impl.1} parent=67 // pred_region
          %s1227 = sand.u32 %s248, 1
          %s1228 = scalar_lea.sflag [#allocation8], %s1227
          %s1229 = sand.u32 %s248, 1
          %s1230 = smul.addr %s1229, 8
          %s1231 = scalar_lea.vmem [#allocation7], %s1230
          %1232 = dma.done %s1228, 128
        $region72: #{_cross_attention_impl.1} parent=67 // pred_fallthru
          _
      $region68: #{_cross_attention_impl.1} parent=5 // pred_fallthru
        _
    $region6: #{_cross_attention_impl.1} parent=1 // loop_footer
      %s21 = sadd.s32 1, %s17
    $region7: #{_cross_attention_impl.1} parent=1 // loop_footer_branch
      %16 = sbr.rel target = $region3
    $region8: #{_cross_attention_impl.1} parent=1 // loop_exit
      _
    %1233 = vsyncpa [#allocation8], 1
    %s1234 = scalar_lea.sflag [#allocation8], 1
    %1235 = vsyncpa %s1234, 1

</llo_original>
